<compile_context>
chip_gen: v7x
topology: tpu7x:2x2x1
jax: 0.10.0
libtpu: 0.0.40
codegen_flags: <defaults>
</compile_context>

<pallas_src>
import functools

import jax
import jax.numpy as jnp
from jax.experimental import pallas as pl
from jax.experimental.pallas import tpu as pltpu


def transformer_block_kernel(num_heads,
                             q_ref, k_ref, v_ref, bias_ref,
                             wq_ref, bq_ref, wk_ref, bk_ref, wv_ref, bv_ref,
                             wo_ref, bo_ref,
                             g1_ref, be1_ref,
                             w1_ref, b1_ref, w2_ref, b2_ref,
                             g2_ref, be2_ref,
                             out_ref,
                             qp_sc, m_sc, l_sc, acc_sc):
    kv = pl.program_id(2)
    n_kv = pl.num_programs(2)
    D = q_ref.shape[2]
    hd = D // num_heads
    scale = jnp.float32(1.0 / (hd ** 0.5))

    # ---- init: first kv tile of this (batch, q-tile) -------------------------
    @pl.when(kv == 0)
    def _init():
        q = q_ref[0].astype(jnp.bfloat16)                                   # (TQ, D)
        qp = jnp.dot(q, wq_ref[...], preferred_element_type=jnp.float32) + bq_ref[...]
        qp_sc[...] = (qp * scale).astype(jnp.bfloat16)    # fold 1/sqrt(hd) once here
        m_sc[...] = jnp.full_like(m_sc, -1e30)
        l_sc[...] = jnp.zeros_like(l_sc)
        acc_sc[...] = jnp.zeros_like(acc_sc)

    # ---- per-kv-tile flash/online-softmax update ------------------------------
    k = k_ref[0].astype(jnp.bfloat16)                                        # (TKV, D)
    v = v_ref[0].astype(jnp.bfloat16)                                        # (TKV, D)
    kp = (jnp.dot(k, wk_ref[...], preferred_element_type=jnp.float32)
          + bk_ref[...]).astype(jnp.bfloat16)
    vp = (jnp.dot(v, wv_ref[...], preferred_element_type=jnp.float32)
          + bv_ref[...]).astype(jnp.bfloat16)
    bias = bias_ref[0].astype(jnp.float32)          # additive mask bias, once per step

    for h in range(num_heads):                      # static unroll; lane slices only
        hs = slice(h * hd, (h + 1) * hd)
        qh = qp_sc[:, hs]                           # (TQ,  hd) bf16, pre-scaled
        kh = kp[:, hs]                              # (TKV, hd) bf16
        vh = vp[:, hs]                              # (TKV, hd) bf16
        # q @ k^T via contraction over the last dims (no materialized transpose).
        s = jax.lax.dot_general(qh, kh, (((1,), (1,)), ((), ())),
                                preferred_element_type=jnp.float32)          # (TQ, TKV)
        s = s + bias
        m_prev = m_sc[h]                                                     # (TQ, 1)
        m_new = jnp.maximum(m_prev, jnp.max(s, axis=-1, keepdims=True))
        alpha = jnp.exp(m_prev - m_new)
        p = jnp.exp(s - m_new)                                               # f32
        l_sc[h] = alpha * l_sc[h] + jnp.sum(p, axis=-1, keepdims=True)
        acc_sc[:, hs] = alpha * acc_sc[:, hs] + jnp.dot(
            p.astype(jnp.bfloat16), vh, preferred_element_type=jnp.float32)
        m_sc[h] = m_new

    # ---- finalize: normalize, output projection, residual/LN, FF, residual/LN --
    @pl.when(kv == n_kv - 1)
    def _finalize():
        for h in range(num_heads):
            hs = slice(h * hd, (h + 1) * hd)
            acc_sc[:, hs] = acc_sc[:, hs] * pl.reciprocal(l_sc[h], approx=True)
        ctx = acc_sc[...].astype(jnp.bfloat16)                               # (TQ, D)
        attn = jnp.dot(ctx, wo_ref[...],
                       preferred_element_type=jnp.float32) + bo_ref[...]

        def layer_norm(x, gamma, beta):
            mu = jnp.mean(x, axis=-1, keepdims=True)
            xc = x - mu
            var = jnp.mean(xc * xc, axis=-1, keepdims=True)
            return xc * jax.lax.rsqrt(var + 1e-5) * gamma + beta

        x = layer_norm(attn + q_ref[0].astype(jnp.float32), g1_ref[...], be1_ref[...])
        # dropout (eval) == identity
        # TODO(synk): for large D/H, tile the FF hidden dim (reduction axis / second
        # pass) instead of keeping w1/w2 fully resident (they are bf16 + single-
        # buffered here, which is enough for moderate sizes).
        h1 = jnp.dot(x.astype(jnp.bfloat16), w1_ref[...],
                     preferred_element_type=jnp.float32) + b1_ref[...]
        h1 = jnp.maximum(h1, 0.0)
        ff = jnp.dot(h1.astype(jnp.bfloat16), w2_ref[...],
                     preferred_element_type=jnp.float32) + b2_ref[...]
        y = layer_norm(x + ff, g2_ref[...], be2_ref[...])
        # TODO(synk): for D < 128 on v5e, pack rows into lanes in the wrapper so the
        # output store is lane-dense (avoids masked vst.msk partial stores).
        out_ref[0] = y.astype(out_ref.dtype)


def transformer_block(keys, values, queries, mask, params, num_heads,
                      tq=None, tkv=None, single_buffer_params=True):
    B, S, D = queries.shape
    assert D % num_heads == 0, "num_heads must divide the model dimension"

    # Tile sizes: prefer 256-row tiles (MXU-friendly on v6e/v7x) when they divide S.
    if tq is None:
        tq = S if S <= 256 else (256 if S % 256 == 0 else 128)
    if tkv is None:
        tkv = S if S <= 512 else (512 if S % 512 == 0 else
                                  256 if S % 256 == 0 else 128)
    assert S % tq == 0 and S % tkv == 0, "tiles must divide the sequence length"
    n_qt, n_kv = S // tq, S // tkv

    # Additive mask bias in bf16 (2x less mask DMA, no in-kernel compare/select).
    mask_bias = jnp.where(mask == 0.0, jnp.float32(-1e20),
                          jnp.float32(0.0)).astype(jnp.bfloat16)

    # Matmul weights in bf16 (MXU-native, halves weight DMA + VMEM residency);
    # biases / LayerNorm params stay f32 (added to f32 accumulators).
    bf16_names = {"wq", "wk", "wv", "wo", "w1", "w2"}
    param_order = ["wq", "bq", "wk", "bk", "wv", "bv", "wo", "bo",
                   "g1", "be1", "w1", "b1", "w2", "b2", "g2", "be2"]
    param_arrays = [params[n].astype(jnp.bfloat16) if n in bf16_names
                    else params[n].astype(jnp.float32) for n in param_order]

    q_spec = pl.BlockSpec((1, tq, D), lambda b, qt, kv: (b, qt, 0))
    k_spec = pl.BlockSpec((1, tkv, D), lambda b, qt, kv: (b, kv, 0))
    v_spec = pl.BlockSpec((1, tkv, D), lambda b, qt, kv: (b, kv, 0))
    bias_spec = pl.BlockSpec((1, tq, tkv), lambda b, qt, kv: (b, qt, kv))
    out_spec = pl.BlockSpec((1, tq, D), lambda b, qt, kv: (b, qt, 0))

    def full_spec(arr):
        nd = arr.ndim
        idx = lambda b, qt, kv, _nd=nd: (0,) * _nd
        if single_buffer_params:
            # Block index never changes => a single VMEM buffer is enough.
            return pl.BlockSpec(arr.shape, idx, pipeline_mode=pl.Buffered(1))
        return pl.BlockSpec(arr.shape, idx)

    param_specs = [full_spec(a) for a in param_arrays]

    scratch = [
        pltpu.VMEM((tq, D), jnp.bfloat16),             # scaled q projection
        pltpu.VMEM((num_heads, tq, 1), jnp.float32),   # running max m
        pltpu.VMEM((num_heads, tq, 1), jnp.float32),   # running denom l
        pltpu.VMEM((tq, D), jnp.float32),              # running context accumulator
    ]

    # Explicit VMEM budget from the actual block footprint (headroom included),
    # clamped so a tiling that fits v6e also fits v7x's 64 MiB.
    def nbytes(shape, itemsize):
        n = itemsize
        for d in shape:
            n *= d
        return n

    in_sz = queries.dtype.itemsize
    streamed = 2 * (nbytes((1, tq, D), in_sz) + 2 * nbytes((1, tkv, D), in_sz)
                    + nbytes((1, tq, tkv), 2) + nbytes((1, tq, D), in_sz))
    nbuf = 1 if single_buffer_params else 2
    param_bytes = nbuf * sum(
        nbytes(a.shape, 2 if a.dtype == jnp.bfloat16 else 4) for a in param_arrays)
    scratch_bytes = (nbytes((tq, D), 2) + nbytes((tq, D), 4)
                     + 2 * nbytes((num_heads, tq, 128), 4))      # m/l lane-padded
    vmem_limit = int(1.5 * (streamed + param_bytes + scratch_bytes)) + (4 << 20)
    vmem_limit = max(32 << 20, min(vmem_limit, 64 << 20))

    kernel = functools.partial(transformer_block_kernel, num_heads)
    return pl.pallas_call(
        kernel,
        out_shape=jax.ShapeDtypeStruct((B, S, D), queries.dtype),
        grid_spec=pltpu.PrefetchScalarGridSpec(
            num_scalar_prefetch=0,
            grid=(B, n_qt, n_kv),
            in_specs=[q_spec, k_spec, v_spec, bias_spec] + param_specs,
            out_specs=out_spec,
            scratch_shapes=scratch,
        ),
        # (batch, q-tile) are embarrassingly parallel (v7x can shard them across its
        # 2 TensorCores); the kv axis carries the online-softmax state => arbitrary.
        compiler_params=pltpu.CompilerParams(
            dimension_semantics=("parallel", "parallel", "arbitrary"),
            vmem_limit_bytes=vmem_limit,
        ),
    )(queries, keys, values, mask_bias, *param_arrays)


def make_params(key, D, H):
    ks = jax.random.split(key, 8)
    s_in = 1.0 / (D ** 0.5)
    s_h = 1.0 / (H ** 0.5)
    return {
        "wq": jax.random.normal(ks[0], (D, D), jnp.float32) * s_in,
        "bq": jnp.zeros((1, D), jnp.float32),
        "wk": jax.random.normal(ks[1], (D, D), jnp.float32) * s_in,
        "bk": jnp.zeros((1, D), jnp.float32),
        "wv": jax.random.normal(ks[2], (D, D), jnp.float32) * s_in,
        "bv": jnp.zeros((1, D), jnp.float32),
        "wo": jax.random.normal(ks[3], (D, D), jnp.float32) * s_in,
        "bo": jnp.zeros((1, D), jnp.float32),
        "g1": jnp.ones((1, D), jnp.float32),
        "be1": jnp.zeros((1, D), jnp.float32),
        "w1": jax.random.normal(ks[4], (D, H), jnp.float32) * s_in,
        "b1": jnp.zeros((1, H), jnp.float32),
        "w2": jax.random.normal(ks[5], (H, D), jnp.float32) * s_h,
        "b2": jnp.zeros((1, D), jnp.float32),
        "g2": jnp.ones((1, D), jnp.float32),
        "be2": jnp.zeros((1, D), jnp.float32),
    }


def reference(keys, values, queries, mask, p, num_heads):
    """Pure-JAX reference mirroring the kernel's mixed precision (bf16 matmul
    operands, f32 accumulation/statistics) so the comparison is apples-to-apples."""
    B, S, D = queries.shape
    hd = D // num_heads
    bf, f32 = jnp.bfloat16, jnp.float32

    def ln(x, g, b):
        mu = jnp.mean(x, -1, keepdims=True)
        var = jnp.mean((x - mu) ** 2, -1, keepdims=True)
        return (x - mu) * jax.lax.rsqrt(var + 1e-5) * g + b

    qp = (jnp.einsum("bsd,dk->bsk", queries.astype(bf), p["wq"].astype(bf),
                     preferred_element_type=f32) + p["bq"]) * (1.0 / (hd ** 0.5))
    kp = jnp.einsum("bsd,dk->bsk", keys.astype(bf), p["wk"].astype(bf),
                    preferred_element_type=f32) + p["bk"]
    vp = jnp.einsum("bsd,dk->bsk", values.astype(bf), p["wv"].astype(bf),
                    preferred_element_type=f32) + p["bv"]
    qh = qp.astype(bf).reshape(B, S, num_heads, hd).transpose(0, 2, 1, 3)
    kh = kp.astype(bf).reshape(B, S, num_heads, hd).transpose(0, 2, 1, 3)
    vh = vp.astype(bf).reshape(B, S, num_heads, hd).transpose(0, 2, 1, 3)
    sc = jnp.einsum("bhqd,bhkd->bhqk", qh, kh, preferred_element_type=f32)
    sc = jnp.where(mask[:, None, :, :] == 0.0, -1e20, sc)
    pr = jax.nn.softmax(sc, axis=-1)
    ctx = jnp.einsum("bhqk,bhkd->bhqd", pr.astype(bf), vh,
                     preferred_element_type=f32).transpose(0, 2, 1, 3).reshape(B, S, D)
    attn = jnp.einsum("bsd,dk->bsk", ctx.astype(bf), p["wo"].astype(bf),
                      preferred_element_type=f32) + p["bo"]
    x = ln(attn + queries, p["g1"], p["be1"])
    h1 = jnp.maximum(jnp.einsum("bsd,dk->bsk", x.astype(bf), p["w1"].astype(bf),
                                preferred_element_type=f32) + p["b1"], 0.0)
    ff = jnp.einsum("bsh,hd->bsd", h1.astype(bf), p["w2"].astype(bf),
                    preferred_element_type=f32) + p["b2"]
    return ln(x + ff, p["g2"], p["be2"])


if __name__ == "__main__":
    B, S, D = 2, 8, 32
    NUM_HEADS = 4
    FWD_EXPANSION = 4
    H = FWD_EXPANSION * D

    root = jax.random.PRNGKey(0)
    kq, kk, kv_, kp_ = jax.random.split(root, 4)
    queries = jax.random.normal(kq, (B, S, D), jnp.float32)
    keys = jax.random.normal(kk, (B, S, D), jnp.float32)
    values = jax.random.normal(kv_, (B, S, D), jnp.float32)
    mask = jnp.ones((B, S, S), jnp.float32)       # 0 => masked position

    params = make_params(kp_, D, H)

    try:
        out = jax.block_until_ready(
            transformer_block(keys, values, queries, mask, params, NUM_HEADS))
    except Exception:
        # TODO(synk): this jax build rejects pl.Buffered(1) single-buffering of the
        # grid-invariant parameter blocks; fall back to default double-buffering.
        out = jax.block_until_ready(
            transformer_block(keys, values, queries, mask, params, NUM_HEADS,
                              single_buffer_params=False))

    ref = reference(keys, values, queries, mask, params, NUM_HEADS)
    assert out.shape == (B, S, D)
    # Tolerance covers bf16 matmul operands + approx reciprocal (both sides use the
    # same bf16 cast points, so residual error is flash-vs-direct softmax ordering).
    assert jnp.allclose(out, ref, atol=3e-2, rtol=3e-2), "mismatch vs reference"
    print("KERNEL_OK")
</pallas_src>

<mosaic_0001>
module attributes {stable_mosaic.version = 11 : i64} {
  func.func @transformer_block_kernel(%arg0: i32, %arg1: i32, %arg2: i32, %arg3: memref<1x8x32xf32, #tpu.memory_space<vmem>>, %arg4: memref<1x8x32xf32, #tpu.memory_space<vmem>>, %arg5: memref<1x8x32xf32, #tpu.memory_space<vmem>>, %arg6: memref<1x8x8xbf16, #tpu.memory_space<vmem>>, %arg7: memref<32x32xbf16, #tpu.memory_space<vmem>>, %arg8: memref<1x32xf32, #tpu.memory_space<vmem>>, %arg9: memref<32x32xbf16, #tpu.memory_space<vmem>>, %arg10: memref<1x32xf32, #tpu.memory_space<vmem>>, %arg11: memref<32x32xbf16, #tpu.memory_space<vmem>>, %arg12: memref<1x32xf32, #tpu.memory_space<vmem>>, %arg13: memref<32x32xbf16, #tpu.memory_space<vmem>>, %arg14: memref<1x32xf32, #tpu.memory_space<vmem>>, %arg15: memref<1x32xf32, #tpu.memory_space<vmem>>, %arg16: memref<1x32xf32, #tpu.memory_space<vmem>>, %arg17: memref<32x128xbf16, #tpu.memory_space<vmem>>, %arg18: memref<1x128xf32, #tpu.memory_space<vmem>>, %arg19: memref<128x32xbf16, #tpu.memory_space<vmem>>, %arg20: memref<1x32xf32, #tpu.memory_space<vmem>>, %arg21: memref<1x32xf32, #tpu.memory_space<vmem>>, %arg22: memref<1x32xf32, #tpu.memory_space<vmem>>, %arg23: memref<1x8x32xf32, #tpu.memory_space<vmem>>, %arg24: memref<8x32xbf16, #tpu.memory_space<vmem>>, %arg25: memref<4x8x1xf32, #tpu.memory_space<vmem>>, %arg26: memref<4x8x1xf32, #tpu.memory_space<vmem>>, %arg27: memref<8x32xf32, #tpu.memory_space<vmem>>) attributes {dimension_semantics = [#tpu.dimension_semantics<parallel>, #tpu.dimension_semantics<parallel>, #tpu.dimension_semantics<arbitrary>], iteration_bounds = array<i64: 2, 1, 1>, scalar_prefetch = 0 : i64, scratch_operands = 4 : i64, tpu.core_type = #tpu.core_type<tc>, window_params = [{transform_indices = @transform_0, window_bounds = array<i64: 1, 8, 32>}, {transform_indices = @transform_1, window_bounds = array<i64: 1, 8, 32>}, {transform_indices = @transform_2, window_bounds = array<i64: 1, 8, 32>}, {transform_indices = @transform_3, window_bounds = array<i64: 1, 8, 8>}, {pipeline_mode = #tpu.pipeline_mode<synchronous>, transform_indices = @transform_4, window_bounds = array<i64: 32, 32>}, {pipeline_mode = #tpu.pipeline_mode<synchronous>, transform_indices = @transform_5, window_bounds = array<i64: 1, 32>}, {pipeline_mode = #tpu.pipeline_mode<synchronous>, transform_indices = @transform_6, window_bounds = array<i64: 32, 32>}, {pipeline_mode = #tpu.pipeline_mode<synchronous>, transform_indices = @transform_7, window_bounds = array<i64: 1, 32>}, {pipeline_mode = #tpu.pipeline_mode<synchronous>, transform_indices = @transform_8, window_bounds = array<i64: 32, 32>}, {pipeline_mode = #tpu.pipeline_mode<synchronous>, transform_indices = @transform_9, window_bounds = array<i64: 1, 32>}, {pipeline_mode = #tpu.pipeline_mode<synchronous>, transform_indices = @transform_10, window_bounds = array<i64: 32, 32>}, {pipeline_mode = #tpu.pipeline_mode<synchronous>, transform_indices = @transform_11, window_bounds = array<i64: 1, 32>}, {pipeline_mode = #tpu.pipeline_mode<synchronous>, transform_indices = @transform_12, window_bounds = array<i64: 1, 32>}, {pipeline_mode = #tpu.pipeline_mode<synchronous>, transform_indices = @transform_13, window_bounds = array<i64: 1, 32>}, {pipeline_mode = #tpu.pipeline_mode<synchronous>, transform_indices = @transform_14, window_bounds = array<i64: 32, 128>}, {pipeline_mode = #tpu.pipeline_mode<synchronous>, transform_indices = @transform_15, window_bounds = array<i64: 1, 128>}, {pipeline_mode = #tpu.pipeline_mode<synchronous>, transform_indices = @transform_16, window_bounds = array<i64: 128, 32>}, {pipeline_mode = #tpu.pipeline_mode<synchronous>, transform_indices = @transform_17, window_bounds = array<i64: 1, 32>}, {pipeline_mode = #tpu.pipeline_mode<synchronous>, transform_indices = @transform_18, window_bounds = array<i64: 1, 32>}, {pipeline_mode = #tpu.pipeline_mode<synchronous>, transform_indices = @transform_19, window_bounds = array<i64: 1, 32>}, {transform_indices = @transform_20, window_bounds = array<i64: 1, 8, 32>}]} {
    %c0_i32 = arith.constant 0 : i32
    %0 = arith.cmpi eq, %arg2, %c0_i32 : i32
    %1 = arith.extui %0 : i1 to i32
    %cst = arith.constant 0.353553385 : f32
    %c0_i32_0 = arith.constant 0 : i32
    %2 = arith.cmpi ne, %1, %c0_i32_0 : i32
    scf.if %2 {
      %c0_103 = arith.constant 0 : index
      %c0_104 = arith.constant 0 : index
      %c0_105 = arith.constant 0 : index
      %163 = vector.load %arg3[%c0_103, %c0_104, %c0_105] : memref<1x8x32xf32, #tpu.memory_space<vmem>>, vector<1x8x32xf32>
      %164 = vector.shape_cast %163 : vector<1x8x32xf32> to vector<8x32xf32>
      %165 = arith.truncf %164 : vector<8x32xf32> to vector<8x32xbf16>
      %c0_106 = arith.constant 0 : index
      %c0_107 = arith.constant 0 : index
      %166 = vector.load %arg7[%c0_106, %c0_107] : memref<32x32xbf16, #tpu.memory_space<vmem>>, vector<32x32xbf16>
      %cst_108 = arith.constant dense<0.000000e+00> : vector<8x32xf32>
      %167 = tpu.matmul %165, %166, %cst_108 {dimension_numbers = #tpu.dot_dimension_numbers<[1], [0], [0], [1], [0, 0, 1, 1], [], []>} : vector<8x32xbf16>, vector<32x32xbf16>, vector<8x32xf32> -> vector<8x32xf32>
      %c0_109 = arith.constant 0 : index
      %c0_110 = arith.constant 0 : index
      %168 = vector.load %arg8[%c0_109, %c0_110] : memref<1x32xf32, #tpu.memory_space<vmem>>, vector<1x32xf32>
      %169 = vector.broadcast %168 : vector<1x32xf32> to vector<8x32xf32>
      %170 = arith.addf %167, %169 : vector<8x32xf32>
      %171 = vector.broadcast %cst : f32 to vector<8x32xf32>
      %172 = arith.mulf %170, %171 : vector<8x32xf32>
      %173 = arith.truncf %172 : vector<8x32xf32> to vector<8x32xbf16>
      %c0_111 = arith.constant 0 : index
      %c0_112 = arith.constant 0 : index
      %174 = vector.load %arg24[%c0_111, %c0_112] : memref<8x32xbf16, #tpu.memory_space<vmem>>, vector<8x32xbf16>
      tpu.vector_store %arg24[%c0_111, %c0_112], %173 {strides = array<i32>} : memref<8x32xbf16, #tpu.memory_space<vmem>>, vector<8x32xbf16>,
      %cst_113 = arith.constant -1.000000e+30 : f32
      %175 = vector.broadcast %cst_113 : f32 to vector<4x8x1xf32>
      %c0_114 = arith.constant 0 : index
      %c0_115 = arith.constant 0 : index
      %c0_116 = arith.constant 0 : index
      %176 = vector.load %arg25[%c0_114, %c0_115, %c0_116] : memref<4x8x1xf32, #tpu.memory_space<vmem>>, vector<4x8x1xf32>
      tpu.vector_store %arg25[%c0_114, %c0_115, %c0_116], %175 {strides = array<i32>} : memref<4x8x1xf32, #tpu.memory_space<vmem>>, vector<4x8x1xf32>,
      %cst_117 = arith.constant 0.000000e+00 : f32
      %177 = vector.broadcast %cst_117 : f32 to vector<4x8x1xf32>
      %c0_118 = arith.constant 0 : index
      %c0_119 = arith.constant 0 : index
      %c0_120 = arith.constant 0 : index
      %178 = vector.load %arg26[%c0_118, %c0_119, %c0_120] : memref<4x8x1xf32, #tpu.memory_space<vmem>>, vector<4x8x1xf32>
      tpu.vector_store %arg26[%c0_118, %c0_119, %c0_120], %177 {strides = array<i32>} : memref<4x8x1xf32, #tpu.memory_space<vmem>>, vector<4x8x1xf32>,
      %cst_121 = arith.constant 0.000000e+00 : f32
      %179 = vector.broadcast %cst_121 : f32 to vector<8x32xf32>
      %c0_122 = arith.constant 0 : index
      %c0_123 = arith.constant 0 : index
      %180 = vector.load %arg27[%c0_122, %c0_123] : memref<8x32xf32, #tpu.memory_space<vmem>>, vector<8x32xf32>
      tpu.vector_store %arg27[%c0_122, %c0_123], %179 {strides = array<i32>} : memref<8x32xf32, #tpu.memory_space<vmem>>, vector<8x32xf32>,
    } else {
    }
    %c0 = arith.constant 0 : index
    %c0_1 = arith.constant 0 : index
    %c0_2 = arith.constant 0 : index
    %3 = vector.load %arg4[%c0, %c0_1, %c0_2] : memref<1x8x32xf32, #tpu.memory_space<vmem>>, vector<1x8x32xf32>
    %4 = vector.shape_cast %3 : vector<1x8x32xf32> to vector<8x32xf32>
    %5 = arith.truncf %4 : vector<8x32xf32> to vector<8x32xbf16>
    %c0_3 = arith.constant 0 : index
    %c0_4 = arith.constant 0 : index
    %c0_5 = arith.constant 0 : index
    %6 = vector.load %arg5[%c0_3, %c0_4, %c0_5] : memref<1x8x32xf32, #tpu.memory_space<vmem>>, vector<1x8x32xf32>
    %7 = vector.shape_cast %6 : vector<1x8x32xf32> to vector<8x32xf32>
    %8 = arith.truncf %7 : vector<8x32xf32> to vector<8x32xbf16>
    %c0_6 = arith.constant 0 : index
    %c0_7 = arith.constant 0 : index
    %9 = vector.load %arg9[%c0_6, %c0_7] : memref<32x32xbf16, #tpu.memory_space<vmem>>, vector<32x32xbf16>
    %cst_8 = arith.constant dense<0.000000e+00> : vector<8x32xf32>
    %10 = tpu.matmul %5, %9, %cst_8 {dimension_numbers = #tpu.dot_dimension_numbers<[1], [0], [0], [1], [0, 0, 1, 1], [], []>} : vector<8x32xbf16>, vector<32x32xbf16>, vector<8x32xf32> -> vector<8x32xf32>
    %c0_9 = arith.constant 0 : index
    %c0_10 = arith.constant 0 : index
    %11 = vector.load %arg10[%c0_9, %c0_10] : memref<1x32xf32, #tpu.memory_space<vmem>>, vector<1x32xf32>
    %12 = vector.broadcast %11 : vector<1x32xf32> to vector<8x32xf32>
    %13 = arith.addf %10, %12 : vector<8x32xf32>
    %14 = arith.truncf %13 : vector<8x32xf32> to vector<8x32xbf16>
    %c0_11 = arith.constant 0 : index
    %c0_12 = arith.constant 0 : index
    %15 = vector.load %arg11[%c0_11, %c0_12] : memref<32x32xbf16, #tpu.memory_space<vmem>>, vector<32x32xbf16>
    %cst_13 = arith.constant dense<0.000000e+00> : vector<8x32xf32>
    %16 = tpu.matmul %8, %15, %cst_13 {dimension_numbers = #tpu.dot_dimension_numbers<[1], [0], [0], [1], [0, 0, 1, 1], [], []>} : vector<8x32xbf16>, vector<32x32xbf16>, vector<8x32xf32> -> vector<8x32xf32>
    %c0_14 = arith.constant 0 : index
    %c0_15 = arith.constant 0 : index
    %17 = vector.load %arg12[%c0_14, %c0_15] : memref<1x32xf32, #tpu.memory_space<vmem>>, vector<1x32xf32>
    %18 = vector.broadcast %17 : vector<1x32xf32> to vector<8x32xf32>
    %19 = arith.addf %16, %18 : vector<8x32xf32>
    %20 = arith.truncf %19 : vector<8x32xf32> to vector<8x32xbf16>
    %c0_16 = arith.constant 0 : index
    %c0_17 = arith.constant 0 : index
    %c0_18 = arith.constant 0 : index
    %21 = vector.load %arg6[%c0_16, %c0_17, %c0_18] : memref<1x8x8xbf16, #tpu.memory_space<vmem>>, vector<1x8x8xbf16>
    %22 = vector.shape_cast %21 : vector<1x8x8xbf16> to vector<8x8xbf16>
    %23 = arith.extf %22 : vector<8x8xbf16> to vector<8x8xf32>
    %c0_19 = arith.constant 0 : index
    %c0_20 = arith.constant 0 : index
    %24 = vector.load %arg24[%c0_19, %c0_20] : memref<8x32xbf16, #tpu.memory_space<vmem>>, vector<8x8xbf16>
    %25 = vector.extract_strided_slice %14 {offsets = [0, 0], sizes = [8, 8], strides = [1, 1]} : vector<8x32xbf16> to vector<8x8xbf16>
    %26 = vector.extract_strided_slice %20 {offsets = [0, 0], sizes = [8, 8], strides = [1, 1]} : vector<8x32xbf16> to vector<8x8xbf16>
    %cst_21 = arith.constant dense<0.000000e+00> : vector<8x8xf32>
    %27 = tpu.matmul %24, %25, %cst_21 {dimension_numbers = #tpu.dot_dimension_numbers<[1], [1], [0], [0], [0, 0, 1, 0], [], []>} : vector<8x8xbf16>, vector<8x8xbf16>, vector<8x8xf32> -> vector<8x8xf32>
    %28 = arith.addf %27, %23 : vector<8x8xf32>
    %c0_22 = arith.constant 0 : index
    %c0_23 = arith.constant 0 : index
    %c0_24 = arith.constant 0 : index
    %29 = vector.load %arg25[%c0_22, %c0_23, %c0_24] : memref<4x8x1xf32, #tpu.memory_space<vmem>>, vector<1x8x1xf32>
    %30 = vector.shape_cast %29 : vector<1x8x1xf32> to vector<8x1xf32>
    %cst_25 = arith.constant dense<0xFF800000> : vector<8xf32>
    %31 = vector.multi_reduction <maximumf>, %28, %cst_25 [1] : vector<8x8xf32> to vector<8xf32>
    %32 = vector.shape_cast %31 : vector<8xf32> to vector<8x1xf32>
    %33 = arith.maximumf %30, %32 : vector<8x1xf32>
    %34 = arith.subf %30, %33 : vector<8x1xf32>
    %35 = math.exp %34 : vector<8x1xf32>
    %36 = vector.broadcast %33 : vector<8x1xf32> to vector<8x8xf32>
    %37 = arith.subf %28, %36 : vector<8x8xf32>
    %38 = math.exp %37 : vector<8x8xf32>
    %c0_26 = arith.constant 0 : index
    %c0_27 = arith.constant 0 : index
    %c0_28 = arith.constant 0 : index
    %39 = vector.load %arg26[%c0_26, %c0_27, %c0_28] : memref<4x8x1xf32, #tpu.memory_space<vmem>>, vector<1x8x1xf32>
    %40 = vector.shape_cast %39 : vector<1x8x1xf32> to vector<8x1xf32>
    %41 = arith.mulf %35, %40 : vector<8x1xf32>
    %cst_29 = arith.constant dense<0.000000e+00> : vector<8xf32>
    %42 = vector.multi_reduction <add>, %38, %cst_29 [1] : vector<8x8xf32> to vector<8xf32>
    %43 = vector.shape_cast %42 : vector<8xf32> to vector<8x1xf32>
    %44 = arith.addf %41, %43 : vector<8x1xf32>
    %c0_30 = arith.constant 0 : index
    %c0_31 = arith.constant 0 : index
    %c0_32 = arith.constant 0 : index
    %45 = vector.load %arg26[%c0_30, %c0_31, %c0_32] : memref<4x8x1xf32, #tpu.memory_space<vmem>>, vector<1x8x1xf32>
    %46 = vector.shape_cast %45 : vector<1x8x1xf32> to vector<8x1xf32>
    %47 = vector.shape_cast %44 : vector<8x1xf32> to vector<1x8x1xf32>
    tpu.vector_store %arg26[%c0_30, %c0_31, %c0_32], %47 {strides = array<i32>} : memref<4x8x1xf32, #tpu.memory_space<vmem>>, vector<1x8x1xf32>,
    %c0_33 = arith.constant 0 : index
    %c0_34 = arith.constant 0 : index
    %48 = vector.load %arg27[%c0_33, %c0_34] : memref<8x32xf32, #tpu.memory_space<vmem>>, vector<8x8xf32>
    %49 = vector.broadcast %35 : vector<8x1xf32> to vector<8x8xf32>
    %50 = arith.mulf %49, %48 : vector<8x8xf32>
    %51 = arith.truncf %38 : vector<8x8xf32> to vector<8x8xbf16>
    %cst_35 = arith.constant dense<0.000000e+00> : vector<8x8xf32>
    %52 = tpu.matmul %51, %26, %cst_35 {dimension_numbers = #tpu.dot_dimension_numbers<[1], [0], [0], [1], [0, 0, 1, 1], [], []>} : vector<8x8xbf16>, vector<8x8xbf16>, vector<8x8xf32> -> vector<8x8xf32>
    %53 = arith.addf %50, %52 : vector<8x8xf32>
    %c0_36 = arith.constant 0 : index
    %c0_37 = arith.constant 0 : index
    %54 = vector.load %arg27[%c0_36, %c0_37] : memref<8x32xf32, #tpu.memory_space<vmem>>, vector<8x8xf32>
    tpu.vector_store %arg27[%c0_36, %c0_37], %53 {strides = array<i32>} : memref<8x32xf32, #tpu.memory_space<vmem>>, vector<8x8xf32>,
    %c0_38 = arith.constant 0 : index
    %c0_39 = arith.constant 0 : index
    %c0_40 = arith.constant 0 : index
    %55 = vector.load %arg25[%c0_38, %c0_39, %c0_40] : memref<4x8x1xf32, #tpu.memory_space<vmem>>, vector<1x8x1xf32>
    %56 = vector.shape_cast %55 : vector<1x8x1xf32> to vector<8x1xf32>
    %57 = vector.shape_cast %33 : vector<8x1xf32> to vector<1x8x1xf32>
    tpu.vector_store %arg25[%c0_38, %c0_39, %c0_40], %57 {strides = array<i32>} : memref<4x8x1xf32, #tpu.memory_space<vmem>>, vector<1x8x1xf32>,
    %c0_41 = arith.constant 0 : index
    %c8 = arith.constant 8 : index
    %58 = vector.load %arg24[%c0_41, %c8] : memref<8x32xbf16, #tpu.memory_space<vmem>>, vector<8x8xbf16>
    %59 = vector.extract_strided_slice %14 {offsets = [0, 8], sizes = [8, 8], strides = [1, 1]} : vector<8x32xbf16> to vector<8x8xbf16>
    %60 = vector.extract_strided_slice %20 {offsets = [0, 8], sizes = [8, 8], strides = [1, 1]} : vector<8x32xbf16> to vector<8x8xbf16>
    %cst_42 = arith.constant dense<0.000000e+00> : vector<8x8xf32>
    %61 = tpu.matmul %58, %59, %cst_42 {dimension_numbers = #tpu.dot_dimension_numbers<[1], [1], [0], [0], [0, 0, 1, 0], [], []>} : vector<8x8xbf16>, vector<8x8xbf16>, vector<8x8xf32> -> vector<8x8xf32>
    %62 = arith.addf %61, %23 : vector<8x8xf32>
    %c1 = arith.constant 1 : index
    %c0_43 = arith.constant 0 : index
    %c0_44 = arith.constant 0 : index
    %63 = vector.load %arg25[%c1, %c0_43, %c0_44] : memref<4x8x1xf32, #tpu.memory_space<vmem>>, vector<1x8x1xf32>
    %64 = vector.shape_cast %63 : vector<1x8x1xf32> to vector<8x1xf32>
    %cst_45 = arith.constant dense<0xFF800000> : vector<8xf32>
    %65 = vector.multi_reduction <maximumf>, %62, %cst_45 [1] : vector<8x8xf32> to vector<8xf32>
    %66 = vector.shape_cast %65 : vector<8xf32> to vector<8x1xf32>
    %67 = arith.maximumf %64, %66 : vector<8x1xf32>
    %68 = arith.subf %64, %67 : vector<8x1xf32>
    %69 = math.exp %68 : vector<8x1xf32>
    %70 = vector.broadcast %67 : vector<8x1xf32> to vector<8x8xf32>
    %71 = arith.subf %62, %70 : vector<8x8xf32>
    %72 = math.exp %71 : vector<8x8xf32>
    %c1_46 = arith.constant 1 : index
    %c0_47 = arith.constant 0 : index
    %c0_48 = arith.constant 0 : index
    %73 = vector.load %arg26[%c1_46, %c0_47, %c0_48] : memref<4x8x1xf32, #tpu.memory_space<vmem>>, vector<1x8x1xf32>
    %74 = vector.shape_cast %73 : vector<1x8x1xf32> to vector<8x1xf32>
    %75 = arith.mulf %69, %74 : vector<8x1xf32>
    %cst_49 = arith.constant dense<0.000000e+00> : vector<8xf32>
    %76 = vector.multi_reduction <add>, %72, %cst_49 [1] : vector<8x8xf32> to vector<8xf32>
    %77 = vector.shape_cast %76 : vector<8xf32> to vector<8x1xf32>
    %78 = arith.addf %75, %77 : vector<8x1xf32>
    %c1_50 = arith.constant 1 : index
    %c0_51 = arith.constant 0 : index
    %c0_52 = arith.constant 0 : index
    %79 = vector.load %arg26[%c1_50, %c0_51, %c0_52] : memref<4x8x1xf32, #tpu.memory_space<vmem>>, vector<1x8x1xf32>
    %80 = vector.shape_cast %79 : vector<1x8x1xf32> to vector<8x1xf32>
    %81 = vector.shape_cast %78 : vector<8x1xf32> to vector<1x8x1xf32>
    tpu.vector_store %arg26[%c1_50, %c0_51, %c0_52], %81 {strides = array<i32>} : memref<4x8x1xf32, #tpu.memory_space<vmem>>, vector<1x8x1xf32>,
    %c0_53 = arith.constant 0 : index
    %c8_54 = arith.constant 8 : index
    %82 = vector.load %arg27[%c0_53, %c8_54] : memref<8x32xf32, #tpu.memory_space<vmem>>, vector<8x8xf32>
    %83 = vector.broadcast %69 : vector<8x1xf32> to vector<8x8xf32>
    %84 = arith.mulf %83, %82 : vector<8x8xf32>
    %85 = arith.truncf %72 : vector<8x8xf32> to vector<8x8xbf16>
    %cst_55 = arith.constant dense<0.000000e+00> : vector<8x8xf32>
    %86 = tpu.matmul %85, %60, %cst_55 {dimension_numbers = #tpu.dot_dimension_numbers<[1], [0], [0], [1], [0, 0, 1, 1], [], []>} : vector<8x8xbf16>, vector<8x8xbf16>, vector<8x8xf32> -> vector<8x8xf32>
    %87 = arith.addf %84, %86 : vector<8x8xf32>
    %c0_56 = arith.constant 0 : index
    %c8_57 = arith.constant 8 : index
    %88 = vector.load %arg27[%c0_56, %c8_57] : memref<8x32xf32, #tpu.memory_space<vmem>>, vector<8x8xf32>
    tpu.vector_store %arg27[%c0_56, %c8_57], %87 {strides = array<i32>} : memref<8x32xf32, #tpu.memory_space<vmem>>, vector<8x8xf32>,
    %c1_58 = arith.constant 1 : index
    %c0_59 = arith.constant 0 : index
    %c0_60 = arith.constant 0 : index
    %89 = vector.load %arg25[%c1_58, %c0_59, %c0_60] : memref<4x8x1xf32, #tpu.memory_space<vmem>>, vector<1x8x1xf32>
    %90 = vector.shape_cast %89 : vector<1x8x1xf32> to vector<8x1xf32>
    %91 = vector.shape_cast %67 : vector<8x1xf32> to vector<1x8x1xf32>
    tpu.vector_store %arg25[%c1_58, %c0_59, %c0_60], %91 {strides = array<i32>} : memref<4x8x1xf32, #tpu.memory_space<vmem>>, vector<1x8x1xf32>,
    %c0_61 = arith.constant 0 : index
    %c16 = arith.constant 16 : index
    %92 = vector.load %arg24[%c0_61, %c16] : memref<8x32xbf16, #tpu.memory_space<vmem>>, vector<8x8xbf16>
    %93 = vector.extract_strided_slice %14 {offsets = [0, 16], sizes = [8, 8], strides = [1, 1]} : vector<8x32xbf16> to vector<8x8xbf16>
    %94 = vector.extract_strided_slice %20 {offsets = [0, 16], sizes = [8, 8], strides = [1, 1]} : vector<8x32xbf16> to vector<8x8xbf16>
    %cst_62 = arith.constant dense<0.000000e+00> : vector<8x8xf32>
    %95 = tpu.matmul %92, %93, %cst_62 {dimension_numbers = #tpu.dot_dimension_numbers<[1], [1], [0], [0], [0, 0, 1, 0], [], []>} : vector<8x8xbf16>, vector<8x8xbf16>, vector<8x8xf32> -> vector<8x8xf32>
    %96 = arith.addf %95, %23 : vector<8x8xf32>
    %c2 = arith.constant 2 : index
    %c0_63 = arith.constant 0 : index
    %c0_64 = arith.constant 0 : index
    %97 = vector.load %arg25[%c2, %c0_63, %c0_64] : memref<4x8x1xf32, #tpu.memory_space<vmem>>, vector<1x8x1xf32>
    %98 = vector.shape_cast %97 : vector<1x8x1xf32> to vector<8x1xf32>
    %cst_65 = arith.constant dense<0xFF800000> : vector<8xf32>
    %99 = vector.multi_reduction <maximumf>, %96, %cst_65 [1] : vector<8x8xf32> to vector<8xf32>
    %100 = vector.shape_cast %99 : vector<8xf32> to vector<8x1xf32>
    %101 = arith.maximumf %98, %100 : vector<8x1xf32>
    %102 = arith.subf %98, %101 : vector<8x1xf32>
    %103 = math.exp %102 : vector<8x1xf32>
    %104 = vector.broadcast %101 : vector<8x1xf32> to vector<8x8xf32>
    %105 = arith.subf %96, %104 : vector<8x8xf32>
    %106 = math.exp %105 : vector<8x8xf32>
    %c2_66 = arith.constant 2 : index
    %c0_67 = arith.constant 0 : index
    %c0_68 = arith.constant 0 : index
    %107 = vector.load %arg26[%c2_66, %c0_67, %c0_68] : memref<4x8x1xf32, #tpu.memory_space<vmem>>, vector<1x8x1xf32>
    %108 = vector.shape_cast %107 : vector<1x8x1xf32> to vector<8x1xf32>
    %109 = arith.mulf %103, %108 : vector<8x1xf32>
    %cst_69 = arith.constant dense<0.000000e+00> : vector<8xf32>
    %110 = vector.multi_reduction <add>, %106, %cst_69 [1] : vector<8x8xf32> to vector<8xf32>
    %111 = vector.shape_cast %110 : vector<8xf32> to vector<8x1xf32>
    %112 = arith.addf %109, %111 : vector<8x1xf32>
    %c2_70 = arith.constant 2 : index
    %c0_71 = arith.constant 0 : index
    %c0_72 = arith.constant 0 : index
    %113 = vector.load %arg26[%c2_70, %c0_71, %c0_72] : memref<4x8x1xf32, #tpu.memory_space<vmem>>, vector<1x8x1xf32>
    %114 = vector.shape_cast %113 : vector<1x8x1xf32> to vector<8x1xf32>
    %115 = vector.shape_cast %112 : vector<8x1xf32> to vector<1x8x1xf32>
    tpu.vector_store %arg26[%c2_70, %c0_71, %c0_72], %115 {strides = array<i32>} : memref<4x8x1xf32, #tpu.memory_space<vmem>>, vector<1x8x1xf32>,
    %c0_73 = arith.constant 0 : index
    %c16_74 = arith.constant 16 : index
    %116 = vector.load %arg27[%c0_73, %c16_74] : memref<8x32xf32, #tpu.memory_space<vmem>>, vector<8x8xf32>
    %117 = vector.broadcast %103 : vector<8x1xf32> to vector<8x8xf32>
    %118 = arith.mulf %117, %116 : vector<8x8xf32>
    %119 = arith.truncf %106 : vector<8x8xf32> to vector<8x8xbf16>
    %cst_75 = arith.constant dense<0.000000e+00> : vector<8x8xf32>
    %120 = tpu.matmul %119, %94, %cst_75 {dimension_numbers = #tpu.dot_dimension_numbers<[1], [0], [0], [1], [0, 0, 1, 1], [], []>} : vector<8x8xbf16>, vector<8x8xbf16>, vector<8x8xf32> -> vector<8x8xf32>
    %121 = arith.addf %118, %120 : vector<8x8xf32>
    %c0_76 = arith.constant 0 : index
    %c16_77 = arith.constant 16 : index
    %122 = vector.load %arg27[%c0_76, %c16_77] : memref<8x32xf32, #tpu.memory_space<vmem>>, vector<8x8xf32>
    tpu.vector_store %arg27[%c0_76, %c16_77], %121 {strides = array<i32>} : memref<8x32xf32, #tpu.memory_space<vmem>>, vector<8x8xf32>,
    %c2_78 = arith.constant 2 : index
    %c0_79 = arith.constant 0 : index
    %c0_80 = arith.constant 0 : index
    %123 = vector.load %arg25[%c2_78, %c0_79, %c0_80] : memref<4x8x1xf32, #tpu.memory_space<vmem>>, vector<1x8x1xf32>
    %124 = vector.shape_cast %123 : vector<1x8x1xf32> to vector<8x1xf32>
    %125 = vector.shape_cast %101 : vector<8x1xf32> to vector<1x8x1xf32>
    tpu.vector_store %arg25[%c2_78, %c0_79, %c0_80], %125 {strides = array<i32>} : memref<4x8x1xf32, #tpu.memory_space<vmem>>, vector<1x8x1xf32>,
    %c0_81 = arith.constant 0 : index
    %c24 = arith.constant 24 : index
    %126 = vector.load %arg24[%c0_81, %c24] : memref<8x32xbf16, #tpu.memory_space<vmem>>, vector<8x8xbf16>
    %127 = vector.extract_strided_slice %14 {offsets = [0, 24], sizes = [8, 8], strides = [1, 1]} : vector<8x32xbf16> to vector<8x8xbf16>
    %128 = vector.extract_strided_slice %20 {offsets = [0, 24], sizes = [8, 8], strides = [1, 1]} : vector<8x32xbf16> to vector<8x8xbf16>
    %cst_82 = arith.constant dense<0.000000e+00> : vector<8x8xf32>
    %129 = tpu.matmul %126, %127, %cst_82 {dimension_numbers = #tpu.dot_dimension_numbers<[1], [1], [0], [0], [0, 0, 1, 0], [], []>} : vector<8x8xbf16>, vector<8x8xbf16>, vector<8x8xf32> -> vector<8x8xf32>
    %130 = arith.addf %129, %23 : vector<8x8xf32>
    %c3 = arith.constant 3 : index
    %c0_83 = arith.constant 0 : index
    %c0_84 = arith.constant 0 : index
    %131 = vector.load %arg25[%c3, %c0_83, %c0_84] : memref<4x8x1xf32, #tpu.memory_space<vmem>>, vector<1x8x1xf32>
    %132 = vector.shape_cast %131 : vector<1x8x1xf32> to vector<8x1xf32>
    %cst_85 = arith.constant dense<0xFF800000> : vector<8xf32>
    %133 = vector.multi_reduction <maximumf>, %130, %cst_85 [1] : vector<8x8xf32> to vector<8xf32>
    %134 = vector.shape_cast %133 : vector<8xf32> to vector<8x1xf32>
    %135 = arith.maximumf %132, %134 : vector<8x1xf32>
    %136 = arith.subf %132, %135 : vector<8x1xf32>
    %137 = math.exp %136 : vector<8x1xf32>
    %138 = vector.broadcast %135 : vector<8x1xf32> to vector<8x8xf32>
    %139 = arith.subf %130, %138 : vector<8x8xf32>
    %140 = math.exp %139 : vector<8x8xf32>
    %c3_86 = arith.constant 3 : index
    %c0_87 = arith.constant 0 : index
    %c0_88 = arith.constant 0 : index
    %141 = vector.load %arg26[%c3_86, %c0_87, %c0_88] : memref<4x8x1xf32, #tpu.memory_space<vmem>>, vector<1x8x1xf32>
    %142 = vector.shape_cast %141 : vector<1x8x1xf32> to vector<8x1xf32>
    %143 = arith.mulf %137, %142 : vector<8x1xf32>
    %cst_89 = arith.constant dense<0.000000e+00> : vector<8xf32>
    %144 = vector.multi_reduction <add>, %140, %cst_89 [1] : vector<8x8xf32> to vector<8xf32>
    %145 = vector.shape_cast %144 : vector<8xf32> to vector<8x1xf32>
    %146 = arith.addf %143, %145 : vector<8x1xf32>
    %c3_90 = arith.constant 3 : index
    %c0_91 = arith.constant 0 : index
    %c0_92 = arith.constant 0 : index
    %147 = vector.load %arg26[%c3_90, %c0_91, %c0_92] : memref<4x8x1xf32, #tpu.memory_space<vmem>>, vector<1x8x1xf32>
    %148 = vector.shape_cast %147 : vector<1x8x1xf32> to vector<8x1xf32>
    %149 = vector.shape_cast %146 : vector<8x1xf32> to vector<1x8x1xf32>
    tpu.vector_store %arg26[%c3_90, %c0_91, %c0_92], %149 {strides = array<i32>} : memref<4x8x1xf32, #tpu.memory_space<vmem>>, vector<1x8x1xf32>,
    %c0_93 = arith.constant 0 : index
    %c24_94 = arith.constant 24 : index
    %150 = vector.load %arg27[%c0_93, %c24_94] : memref<8x32xf32, #tpu.memory_space<vmem>>, vector<8x8xf32>
    %151 = vector.broadcast %137 : vector<8x1xf32> to vector<8x8xf32>
    %152 = arith.mulf %151, %150 : vector<8x8xf32>
    %153 = arith.truncf %140 : vector<8x8xf32> to vector<8x8xbf16>
    %cst_95 = arith.constant dense<0.000000e+00> : vector<8x8xf32>
    %154 = tpu.matmul %153, %128, %cst_95 {dimension_numbers = #tpu.dot_dimension_numbers<[1], [0], [0], [1], [0, 0, 1, 1], [], []>} : vector<8x8xbf16>, vector<8x8xbf16>, vector<8x8xf32> -> vector<8x8xf32>
    %155 = arith.addf %152, %154 : vector<8x8xf32>
    %c0_96 = arith.constant 0 : index
    %c24_97 = arith.constant 24 : index
    %156 = vector.load %arg27[%c0_96, %c24_97] : memref<8x32xf32, #tpu.memory_space<vmem>>, vector<8x8xf32>
    tpu.vector_store %arg27[%c0_96, %c24_97], %155 {strides = array<i32>} : memref<8x32xf32, #tpu.memory_space<vmem>>, vector<8x8xf32>,
    %c3_98 = arith.constant 3 : index
    %c0_99 = arith.constant 0 : index
    %c0_100 = arith.constant 0 : index
    %157 = vector.load %arg25[%c3_98, %c0_99, %c0_100] : memref<4x8x1xf32, #tpu.memory_space<vmem>>, vector<1x8x1xf32>
    %158 = vector.shape_cast %157 : vector<1x8x1xf32> to vector<8x1xf32>
    %159 = vector.shape_cast %135 : vector<8x1xf32> to vector<1x8x1xf32>
    tpu.vector_store %arg25[%c3_98, %c0_99, %c0_100], %159 {strides = array<i32>} : memref<4x8x1xf32, #tpu.memory_space<vmem>>, vector<1x8x1xf32>,
    %c0_i32_101 = arith.constant 0 : i32
    %160 = arith.cmpi eq, %arg2, %c0_i32_101 : i32
    %161 = arith.extui %160 : i1 to i32
    %c0_i32_102 = arith.constant 0 : i32
    %162 = arith.cmpi ne, %161, %c0_i32_102 : i32
    scf.if %162 {
      %c0_103 = arith.constant 0 : index
      %c0_104 = arith.constant 0 : index
      %163 = vector.load %arg27[%c0_103, %c0_104] : memref<8x32xf32, #tpu.memory_space<vmem>>, vector<8x8xf32>
      %c0_105 = arith.constant 0 : index
      %c0_106 = arith.constant 0 : index
      %c0_107 = arith.constant 0 : index
      %164 = vector.load %arg26[%c0_105, %c0_106, %c0_107] : memref<4x8x1xf32, #tpu.memory_space<vmem>>, vector<1x8x1xf32>
      %165 = vector.shape_cast %164 : vector<1x8x1xf32> to vector<8x1xf32>
      %166 = tpu.reciprocal %165 {approx = true} : vector<8x1xf32> -> vector<8x1xf32>
      %167 = vector.broadcast %166 : vector<8x1xf32> to vector<8x8xf32>
      %168 = arith.mulf %163, %167 : vector<8x8xf32>
      %c0_108 = arith.constant 0 : index
      %c0_109 = arith.constant 0 : index
      %169 = vector.load %arg27[%c0_108, %c0_109] : memref<8x32xf32, #tpu.memory_space<vmem>>, vector<8x8xf32>
      tpu.vector_store %arg27[%c0_108, %c0_109], %168 {strides = array<i32>} : memref<8x32xf32, #tpu.memory_space<vmem>>, vector<8x8xf32>,
      %c0_110 = arith.constant 0 : index
      %c8_111 = arith.constant 8 : index
      %170 = vector.load %arg27[%c0_110, %c8_111] : memref<8x32xf32, #tpu.memory_space<vmem>>, vector<8x8xf32>
      %c1_112 = arith.constant 1 : index
      %c0_113 = arith.constant 0 : index
      %c0_114 = arith.constant 0 : index
      %171 = vector.load %arg26[%c1_112, %c0_113, %c0_114] : memref<4x8x1xf32, #tpu.memory_space<vmem>>, vector<1x8x1xf32>
      %172 = vector.shape_cast %171 : vector<1x8x1xf32> to vector<8x1xf32>
      %173 = tpu.reciprocal %172 {approx = true} : vector<8x1xf32> -> vector<8x1xf32>
      %174 = vector.broadcast %173 : vector<8x1xf32> to vector<8x8xf32>
      %175 = arith.mulf %170, %174 : vector<8x8xf32>
      %c0_115 = arith.constant 0 : index
      %c8_116 = arith.constant 8 : index
      %176 = vector.load %arg27[%c0_115, %c8_116] : memref<8x32xf32, #tpu.memory_space<vmem>>, vector<8x8xf32>
      tpu.vector_store %arg27[%c0_115, %c8_116], %175 {strides = array<i32>} : memref<8x32xf32, #tpu.memory_space<vmem>>, vector<8x8xf32>,
      %c0_117 = arith.constant 0 : index
      %c16_118 = arith.constant 16 : index
      %177 = vector.load %arg27[%c0_117, %c16_118] : memref<8x32xf32, #tpu.memory_space<vmem>>, vector<8x8xf32>
      %c2_119 = arith.constant 2 : index
      %c0_120 = arith.constant 0 : index
      %c0_121 = arith.constant 0 : index
      %178 = vector.load %arg26[%c2_119, %c0_120, %c0_121] : memref<4x8x1xf32, #tpu.memory_space<vmem>>, vector<1x8x1xf32>
      %179 = vector.shape_cast %178 : vector<1x8x1xf32> to vector<8x1xf32>
      %180 = tpu.reciprocal %179 {approx = true} : vector<8x1xf32> -> vector<8x1xf32>
      %181 = vector.broadcast %180 : vector<8x1xf32> to vector<8x8xf32>
      %182 = arith.mulf %177, %181 : vector<8x8xf32>
      %c0_122 = arith.constant 0 : index
      %c16_123 = arith.constant 16 : index
      %183 = vector.load %arg27[%c0_122, %c16_123] : memref<8x32xf32, #tpu.memory_space<vmem>>, vector<8x8xf32>
      tpu.vector_store %arg27[%c0_122, %c16_123], %182 {strides = array<i32>} : memref<8x32xf32, #tpu.memory_space<vmem>>, vector<8x8xf32>,
      %c0_124 = arith.constant 0 : index
      %c24_125 = arith.constant 24 : index
      %184 = vector.load %arg27[%c0_124, %c24_125] : memref<8x32xf32, #tpu.memory_space<vmem>>, vector<8x8xf32>
      %c3_126 = arith.constant 3 : index
      %c0_127 = arith.constant 0 : index
      %c0_128 = arith.constant 0 : index
      %185 = vector.load %arg26[%c3_126, %c0_127, %c0_128] : memref<4x8x1xf32, #tpu.memory_space<vmem>>, vector<1x8x1xf32>
      %186 = vector.shape_cast %185 : vector<1x8x1xf32> to vector<8x1xf32>
      %187 = tpu.reciprocal %186 {approx = true} : vector<8x1xf32> -> vector<8x1xf32>
      %188 = vector.broadcast %187 : vector<8x1xf32> to vector<8x8xf32>
      %189 = arith.mulf %184, %188 : vector<8x8xf32>
      %c0_129 = arith.constant 0 : index
      %c24_130 = arith.constant 24 : index
      %190 = vector.load %arg27[%c0_129, %c24_130] : memref<8x32xf32, #tpu.memory_space<vmem>>, vector<8x8xf32>
      tpu.vector_store %arg27[%c0_129, %c24_130], %189 {strides = array<i32>} : memref<8x32xf32, #tpu.memory_space<vmem>>, vector<8x8xf32>,
      %c0_131 = arith.constant 0 : index
      %c0_132 = arith.constant 0 : index
      %191 = vector.load %arg27[%c0_131, %c0_132] : memref<8x32xf32, #tpu.memory_space<vmem>>, vector<8x32xf32>
      %192 = arith.truncf %191 : vector<8x32xf32> to vector<8x32xbf16>
      %c0_133 = arith.constant 0 : index
      %c0_134 = arith.constant 0 : index
      %193 = vector.load %arg13[%c0_133, %c0_134] : memref<32x32xbf16, #tpu.memory_space<vmem>>, vector<32x32xbf16>
      %cst_135 = arith.constant dense<0.000000e+00> : vector<8x32xf32>
      %194 = tpu.matmul %192, %193, %cst_135 {dimension_numbers = #tpu.dot_dimension_numbers<[1], [0], [0], [1], [0, 0, 1, 1], [], []>} : vector<8x32xbf16>, vector<32x32xbf16>, vector<8x32xf32> -> vector<8x32xf32>
      %c0_136 = arith.constant 0 : index
      %c0_137 = arith.constant 0 : index
      %195 = vector.load %arg14[%c0_136, %c0_137] : memref<1x32xf32, #tpu.memory_space<vmem>>, vector<1x32xf32>
      %196 = vector.broadcast %195 : vector<1x32xf32> to vector<8x32xf32>
      %197 = arith.addf %194, %196 : vector<8x32xf32>
      %c0_138 = arith.constant 0 : index
      %c0_139 = arith.constant 0 : index
      %c0_140 = arith.constant 0 : index
      %198 = vector.load %arg3[%c0_138, %c0_139, %c0_140] : memref<1x8x32xf32, #tpu.memory_space<vmem>>, vector<1x8x32xf32>
      %199 = vector.shape_cast %198 : vector<1x8x32xf32> to vector<8x32xf32>
      %200 = arith.addf %197, %199 : vector<8x32xf32>
      %c0_141 = arith.constant 0 : index
      %c0_142 = arith.constant 0 : index
      %201 = vector.load %arg15[%c0_141, %c0_142] : memref<1x32xf32, #tpu.memory_space<vmem>>, vector<1x32xf32>
      %c0_143 = arith.constant 0 : index
      %c0_144 = arith.constant 0 : index
      %202 = vector.load %arg16[%c0_143, %c0_144] : memref<1x32xf32, #tpu.memory_space<vmem>>, vector<1x32xf32>
      %cst_145 = arith.constant dense<0.000000e+00> : vector<8xf32>
      %203 = vector.multi_reduction <add>, %200, %cst_145 [1] : vector<8x32xf32> to vector<8xf32>
      %204 = vector.shape_cast %203 : vector<8xf32> to vector<8x1xf32>
      %cst_146 = arith.constant 3.200000e+01 : f32
      %205 = vector.broadcast %cst_146 : f32 to vector<8x1xf32>
      %206 = arith.divf %204, %205 : vector<8x1xf32>
      %207 = vector.broadcast %206 : vector<8x1xf32> to vector<8x32xf32>
      %208 = arith.subf %200, %207 : vector<8x32xf32>
      %209 = arith.mulf %208, %208 : vector<8x32xf32>
      %cst_147 = arith.constant dense<0.000000e+00> : vector<8xf32>
      %210 = vector.multi_reduction <add>, %209, %cst_147 [1] : vector<8x32xf32> to vector<8xf32>
      %211 = vector.shape_cast %210 : vector<8xf32> to vector<8x1xf32>
      %cst_148 = arith.constant 3.200000e+01 : f32
      %212 = vector.broadcast %cst_148 : f32 to vector<8x1xf32>
      %213 = arith.divf %211, %212 : vector<8x1xf32>
      %cst_149 = arith.constant 9.99999974E-6 : f32
      %214 = vector.broadcast %cst_149 : f32 to vector<8x1xf32>
      %215 = arith.addf %213, %214 : vector<8x1xf32>
      %216 = math.rsqrt %215 : vector<8x1xf32>
      %217 = vector.broadcast %216 : vector<8x1xf32> to vector<8x32xf32>
      %218 = arith.mulf %208, %217 : vector<8x32xf32>
      %219 = vector.broadcast %201 : vector<1x32xf32> to vector<8x32xf32>
      %220 = arith.mulf %218, %219 : vector<8x32xf32>
      %221 = vector.broadcast %202 : vector<1x32xf32> to vector<8x32xf32>
      %222 = arith.addf %220, %221 : vector<8x32xf32>
      %223 = arith.truncf %222 : vector<8x32xf32> to vector<8x32xbf16>
      %c0_150 = arith.constant 0 : index
      %c0_151 = arith.constant 0 : index
      %224 = vector.load %arg17[%c0_150, %c0_151] : memref<32x128xbf16, #tpu.memory_space<vmem>>, vector<32x128xbf16>
      %cst_152 = arith.constant dense<0.000000e+00> : vector<8x128xf32>
      %225 = tpu.matmul %223, %224, %cst_152 {dimension_numbers = #tpu.dot_dimension_numbers<[1], [0], [0], [1], [0, 0, 1, 1], [], []>} : vector<8x32xbf16>, vector<32x128xbf16>, vector<8x128xf32> -> vector<8x128xf32>
      %c0_153 = arith.constant 0 : index
      %c0_154 = arith.constant 0 : index
      %226 = vector.load %arg18[%c0_153, %c0_154] : memref<1x128xf32, #tpu.memory_space<vmem>>, vector<1x128xf32>
      %227 = vector.broadcast %226 : vector<1x128xf32> to vector<8x128xf32>
      %228 = arith.addf %225, %227 : vector<8x128xf32>
      %cst_155 = arith.constant 0.000000e+00 : f32
      %229 = vector.broadcast %cst_155 : f32 to vector<8x128xf32>
      %230 = arith.maximumf %228, %229 : vector<8x128xf32>
      %231 = arith.truncf %230 : vector<8x128xf32> to vector<8x128xbf16>
      %c0_156 = arith.constant 0 : index
      %c0_157 = arith.constant 0 : index
      %232 = vector.load %arg19[%c0_156, %c0_157] : memref<128x32xbf16, #tpu.memory_space<vmem>>, vector<128x32xbf16>
      %cst_158 = arith.constant dense<0.000000e+00> : vector<8x32xf32>
      %233 = tpu.matmul %231, %232, %cst_158 {dimension_numbers = #tpu.dot_dimension_numbers<[1], [0], [0], [1], [0, 0, 1, 1], [], []>} : vector<8x128xbf16>, vector<128x32xbf16>, vector<8x32xf32> -> vector<8x32xf32>
      %c0_159 = arith.constant 0 : index
      %c0_160 = arith.constant 0 : index
      %234 = vector.load %arg20[%c0_159, %c0_160] : memref<1x32xf32, #tpu.memory_space<vmem>>, vector<1x32xf32>
      %235 = vector.broadcast %234 : vector<1x32xf32> to vector<8x32xf32>
      %236 = arith.addf %233, %235 : vector<8x32xf32>
      %237 = arith.addf %222, %236 : vector<8x32xf32>
      %c0_161 = arith.constant 0 : index
      %c0_162 = arith.constant 0 : index
      %238 = vector.load %arg21[%c0_161, %c0_162] : memref<1x32xf32, #tpu.memory_space<vmem>>, vector<1x32xf32>
      %c0_163 = arith.constant 0 : index
      %c0_164 = arith.constant 0 : index
      %239 = vector.load %arg22[%c0_163, %c0_164] : memref<1x32xf32, #tpu.memory_space<vmem>>, vector<1x32xf32>
      %cst_165 = arith.constant dense<0.000000e+00> : vector<8xf32>
      %240 = vector.multi_reduction <add>, %237, %cst_165 [1] : vector<8x32xf32> to vector<8xf32>
      %241 = vector.shape_cast %240 : vector<8xf32> to vector<8x1xf32>
      %cst_166 = arith.constant 3.200000e+01 : f32
      %242 = vector.broadcast %cst_166 : f32 to vector<8x1xf32>
      %243 = arith.divf %241, %242 : vector<8x1xf32>
      %244 = vector.broadcast %243 : vector<8x1xf32> to vector<8x32xf32>
      %245 = arith.subf %237, %244 : vector<8x32xf32>
      %246 = arith.mulf %245, %245 : vector<8x32xf32>
      %cst_167 = arith.constant dense<0.000000e+00> : vector<8xf32>
      %247 = vector.multi_reduction <add>, %246, %cst_167 [1] : vector<8x32xf32> to vector<8xf32>
      %248 = vector.shape_cast %247 : vector<8xf32> to vector<8x1xf32>
      %cst_168 = arith.constant 3.200000e+01 : f32
      %249 = vector.broadcast %cst_168 : f32 to vector<8x1xf32>
      %250 = arith.divf %248, %249 : vector<8x1xf32>
      %cst_169 = arith.constant 9.99999974E-6 : f32
      %251 = vector.broadcast %cst_169 : f32 to vector<8x1xf32>
      %252 = arith.addf %250, %251 : vector<8x1xf32>
      %253 = math.rsqrt %252 : vector<8x1xf32>
      %254 = vector.broadcast %253 : vector<8x1xf32> to vector<8x32xf32>
      %255 = arith.mulf %245, %254 : vector<8x32xf32>
      %256 = vector.broadcast %238 : vector<1x32xf32> to vector<8x32xf32>
      %257 = arith.mulf %255, %256 : vector<8x32xf32>
      %258 = vector.broadcast %239 : vector<1x32xf32> to vector<8x32xf32>
      %259 = arith.addf %257, %258 : vector<8x32xf32>
      %c0_170 = arith.constant 0 : index
      %c0_171 = arith.constant 0 : index
      %c0_172 = arith.constant 0 : index
      %260 = vector.load %arg23[%c0_170, %c0_171, %c0_172] : memref<1x8x32xf32, #tpu.memory_space<vmem>>, vector<1x8x32xf32>
      %261 = vector.shape_cast %260 : vector<1x8x32xf32> to vector<8x32xf32>
      %262 = vector.shape_cast %259 : vector<8x32xf32> to vector<1x8x32xf32>
      tpu.vector_store %arg23[%c0_170, %c0_171, %c0_172], %262 {strides = array<i32>} : memref<1x8x32xf32, #tpu.memory_space<vmem>>, vector<1x8x32xf32>,
    } else {
    }
    return
  }
  func.func @transform_0(%arg0: i32, %arg1: i32, %arg2: i32) -> (i32, i32, i32) {
    %c0_i32 = arith.constant 0 : i32
    %c0_i32_0 = arith.constant 0 : i32
    return %arg0, %arg1, %c0_i32 : i32, i32, i32
  }
  func.func @transform_1(%arg0: i32, %arg1: i32, %arg2: i32) -> (i32, i32, i32) {
    %c0_i32 = arith.constant 0 : i32
    %c0_i32_0 = arith.constant 0 : i32
    return %arg0, %arg2, %c0_i32 : i32, i32, i32
  }
  func.func @transform_2(%arg0: i32, %arg1: i32, %arg2: i32) -> (i32, i32, i32) {
    %c0_i32 = arith.constant 0 : i32
    %c0_i32_0 = arith.constant 0 : i32
    return %arg0, %arg2, %c0_i32 : i32, i32, i32
  }
  func.func @transform_3(%arg0: i32, %arg1: i32, %arg2: i32) -> (i32, i32, i32) {
    %c0_i32 = arith.constant 0 : i32
    return %arg0, %arg1, %arg2 : i32, i32, i32
  }
  func.func @transform_4(%arg0: i32, %arg1: i32, %arg2: i32) -> (i32, i32) {
    %c0_i32 = arith.constant 0 : i32
    %c0_i32_0 = arith.constant 0 : i32
    %c0_i32_1 = arith.constant 0 : i32
    return %c0_i32, %c0_i32_0 : i32, i32
  }
  func.func @transform_5(%arg0: i32, %arg1: i32, %arg2: i32) -> (i32, i32) {
    %c0_i32 = arith.constant 0 : i32
    %c0_i32_0 = arith.constant 0 : i32
    %c0_i32_1 = arith.constant 0 : i32
    return %c0_i32, %c0_i32_0 : i32, i32
  }
  func.func @transform_6(%arg0: i32, %arg1: i32, %arg2: i32) -> (i32, i32) {
    %c0_i32 = arith.constant 0 : i32
    %c0_i32_0 = arith.constant 0 : i32
    %c0_i32_1 = arith.constant 0 : i32
    return %c0_i32, %c0_i32_0 : i32, i32
  }
  func.func @transform_7(%arg0: i32, %arg1: i32, %arg2: i32) -> (i32, i32) {
    %c0_i32 = arith.constant 0 : i32
    %c0_i32_0 = arith.constant 0 : i32
    %c0_i32_1 = arith.constant 0 : i32
    return %c0_i32, %c0_i32_0 : i32, i32
  }
  func.func @transform_8(%arg0: i32, %arg1: i32, %arg2: i32) -> (i32, i32) {
    %c0_i32 = arith.constant 0 : i32
    %c0_i32_0 = arith.constant 0 : i32
    %c0_i32_1 = arith.constant 0 : i32
    return %c0_i32, %c0_i32_0 : i32, i32
  }
  func.func @transform_9(%arg0: i32, %arg1: i32, %arg2: i32) -> (i32, i32) {
    %c0_i32 = arith.constant 0 : i32
    %c0_i32_0 = arith.constant 0 : i32
    %c0_i32_1 = arith.constant 0 : i32
    return %c0_i32, %c0_i32_0 : i32, i32
  }
  func.func @transform_10(%arg0: i32, %arg1: i32, %arg2: i32) -> (i32, i32) {
    %c0_i32 = arith.constant 0 : i32
    %c0_i32_0 = arith.constant 0 : i32
    %c0_i32_1 = arith.constant 0 : i32
    return %c0_i32, %c0_i32_0 : i32, i32
  }
  func.func @transform_11(%arg0: i32, %arg1: i32, %arg2: i32) -> (i32, i32) {
    %c0_i32 = arith.constant 0 : i32
    %c0_i32_0 = arith.constant 0 : i32
    %c0_i32_1 = arith.constant 0 : i32
    return %c0_i32, %c0_i32_0 : i32, i32
  }
  func.func @transform_12(%arg0: i32, %arg1: i32, %arg2: i32) -> (i32, i32) {
    %c0_i32 = arith.constant 0 : i32
    %c0_i32_0 = arith.constant 0 : i32
    %c0_i32_1 = arith.constant 0 : i32
    return %c0_i32, %c0_i32_0 : i32, i32
  }
  func.func @transform_13(%arg0: i32, %arg1: i32, %arg2: i32) -> (i32, i32) {
    %c0_i32 = arith.constant 0 : i32
    %c0_i32_0 = arith.constant 0 : i32
    %c0_i32_1 = arith.constant 0 : i32
    return %c0_i32, %c0_i32_0 : i32, i32
  }
  func.func @transform_14(%arg0: i32, %arg1: i32, %arg2: i32) -> (i32, i32) {
    %c0_i32 = arith.constant 0 : i32
    %c0_i32_0 = arith.constant 0 : i32
    %c0_i32_1 = arith.constant 0 : i32
    return %c0_i32, %c0_i32_0 : i32, i32
  }
  func.func @transform_15(%arg0: i32, %arg1: i32, %arg2: i32) -> (i32, i32) {
    %c0_i32 = arith.constant 0 : i32
    %c0_i32_0 = arith.constant 0 : i32
    %c0_i32_1 = arith.constant 0 : i32
    return %c0_i32, %c0_i32_0 : i32, i32
  }
  func.func @transform_16(%arg0: i32, %arg1: i32, %arg2: i32) -> (i32, i32) {
    %c0_i32 = arith.constant 0 : i32
    %c0_i32_0 = arith.constant 0 : i32
    %c0_i32_1 = arith.constant 0 : i32
    return %c0_i32, %c0_i32_0 : i32, i32
  }
  func.func @transform_17(%arg0: i32, %arg1: i32, %arg2: i32) -> (i32, i32) {
    %c0_i32 = arith.constant 0 : i32
    %c0_i32_0 = arith.constant 0 : i32
    %c0_i32_1 = arith.constant 0 : i32
    return %c0_i32, %c0_i32_0 : i32, i32
  }
  func.func @transform_18(%arg0: i32, %arg1: i32, %arg2: i32) -> (i32, i32) {
    %c0_i32 = arith.constant 0 : i32
    %c0_i32_0 = arith.constant 0 : i32
    %c0_i32_1 = arith.constant 0 : i32
    return %c0_i32, %c0_i32_0 : i32, i32
  }
  func.func @transform_19(%arg0: i32, %arg1: i32, %arg2: i32) -> (i32, i32) {
    %c0_i32 = arith.constant 0 : i32
    %c0_i32_0 = arith.constant 0 : i32
    %c0_i32_1 = arith.constant 0 : i32
    return %c0_i32, %c0_i32_0 : i32, i32
  }
  func.func @transform_20(%arg0: i32, %arg1: i32, %arg2: i32) -> (i32, i32, i32) {
    %c0_i32 = arith.constant 0 : i32
    %c0_i32_0 = arith.constant 0 : i32
    return %arg0, %arg1, %c0_i32 : i32, i32, i32
  }
}

module attributes {stable_mosaic.version = 11 : i64} {
  func.func @transformer_block_kernel(%arg0: i32, %arg1: i32, %arg2: i32, %arg3: memref<1x8x32xf32, #tpu.memory_space<vmem>>, %arg4: memref<1x8x32xf32, #tpu.memory_space<vmem>>, %arg5: memref<1x8x32xf32, #tpu.memory_space<vmem>>, %arg6: memref<1x8x8xbf16, #tpu.memory_space<vmem>>, %arg7: memref<32x32xbf16, #tpu.memory_space<vmem>>, %arg8: memref<1x32xf32, #tpu.memory_space<vmem>>, %arg9: memref<32x32xbf16, #tpu.memory_space<vmem>>, %arg10: memref<1x32xf32, #tpu.memory_space<vmem>>, %arg11: memref<32x32xbf16, #tpu.memory_space<vmem>>, %arg12: memref<1x32xf32, #tpu.memory_space<vmem>>, %arg13: memref<32x32xbf16, #tpu.memory_space<vmem>>, %arg14: memref<1x32xf32, #tpu.memory_space<vmem>>, %arg15: memref<1x32xf32, #tpu.memory_space<vmem>>, %arg16: memref<1x32xf32, #tpu.memory_space<vmem>>, %arg17: memref<32x128xbf16, #tpu.memory_space<vmem>>, %arg18: memref<1x128xf32, #tpu.memory_space<vmem>>, %arg19: memref<128x32xbf16, #tpu.memory_space<vmem>>, %arg20: memref<1x32xf32, #tpu.memory_space<vmem>>, %arg21: memref<1x32xf32, #tpu.memory_space<vmem>>, %arg22: memref<1x32xf32, #tpu.memory_space<vmem>>, %arg23: memref<1x8x32xf32, #tpu.memory_space<vmem>>, %arg24: memref<8x32xbf16, #tpu.memory_space<vmem>>, %arg25: memref<4x8x1xf32, #tpu.memory_space<vmem>>, %arg26: memref<4x8x1xf32, #tpu.memory_space<vmem>>, %arg27: memref<8x32xf32, #tpu.memory_space<vmem>>) attributes {dimension_semantics = [#tpu.dimension_semantics<parallel>, #tpu.dimension_semantics<parallel>, #tpu.dimension_semantics<arbitrary>], iteration_bounds = array<i64: 2, 1, 1>, scalar_prefetch = 0 : i64, scratch_operands = 4 : i64, tpu.core_type = #tpu.core_type<tc>, window_params = [{transform_indices = @transform_0, window_bounds = array<i64: 1, 8, 32>}, {transform_indices = @transform_1, window_bounds = array<i64: 1, 8, 32>}, {transform_indices = @transform_2, window_bounds = array<i64: 1, 8, 32>}, {transform_indices = @transform_3, window_bounds = array<i64: 1, 8, 8>}, {pipeline_mode = #tpu.pipeline_mode<synchronous>, transform_indices = @transform_4, window_bounds = array<i64: 32, 32>}, {pipeline_mode = #tpu.pipeline_mode<synchronous>, transform_indices = @transform_5, window_bounds = array<i64: 1, 32>}, {pipeline_mode = #tpu.pipeline_mode<synchronous>, transform_indices = @transform_6, window_bounds = array<i64: 32, 32>}, {pipeline_mode = #tpu.pipeline_mode<synchronous>, transform_indices = @transform_7, window_bounds = array<i64: 1, 32>}, {pipeline_mode = #tpu.pipeline_mode<synchronous>, transform_indices = @transform_8, window_bounds = array<i64: 32, 32>}, {pipeline_mode = #tpu.pipeline_mode<synchronous>, transform_indices = @transform_9, window_bounds = array<i64: 1, 32>}, {pipeline_mode = #tpu.pipeline_mode<synchronous>, transform_indices = @transform_10, window_bounds = array<i64: 32, 32>}, {pipeline_mode = #tpu.pipeline_mode<synchronous>, transform_indices = @transform_11, window_bounds = array<i64: 1, 32>}, {pipeline_mode = #tpu.pipeline_mode<synchronous>, transform_indices = @transform_12, window_bounds = array<i64: 1, 32>}, {pipeline_mode = #tpu.pipeline_mode<synchronous>, transform_indices = @transform_13, window_bounds = array<i64: 1, 32>}, {pipeline_mode = #tpu.pipeline_mode<synchronous>, transform_indices = @transform_14, window_bounds = array<i64: 32, 128>}, {pipeline_mode = #tpu.pipeline_mode<synchronous>, transform_indices = @transform_15, window_bounds = array<i64: 1, 128>}, {pipeline_mode = #tpu.pipeline_mode<synchronous>, transform_indices = @transform_16, window_bounds = array<i64: 128, 32>}, {pipeline_mode = #tpu.pipeline_mode<synchronous>, transform_indices = @transform_17, window_bounds = array<i64: 1, 32>}, {pipeline_mode = #tpu.pipeline_mode<synchronous>, transform_indices = @transform_18, window_bounds = array<i64: 1, 32>}, {pipeline_mode = #tpu.pipeline_mode<synchronous>, transform_indices = @transform_19, window_bounds = array<i64: 1, 32>}, {transform_indices = @transform_20, window_bounds = array<i64: 1, 8, 32>}]} {
    %c0_i32 = arith.constant 0 : i32
    %0 = arith.cmpi eq, %arg2, %c0_i32 : i32
    %1 = arith.extui %0 : i1 to i32
    %cst = arith.constant 0.353553385 : f32
    %c0_i32_0 = arith.constant 0 : i32
    %2 = arith.cmpi ne, %1, %c0_i32_0 : i32
    scf.if %2 {
      %c0_103 = arith.constant 0 : index
      %c0_104 = arith.constant 0 : index
      %c0_105 = arith.constant 0 : index
      %163 = vector.load %arg3[%c0_103, %c0_104, %c0_105] : memref<1x8x32xf32, #tpu.memory_space<vmem>>, vector<1x8x32xf32>
      %164 = vector.shape_cast %163 : vector<1x8x32xf32> to vector<8x32xf32>
      %165 = arith.truncf %164 : vector<8x32xf32> to vector<8x32xbf16>
      %c0_106 = arith.constant 0 : index
      %c0_107 = arith.constant 0 : index
      %166 = vector.load %arg7[%c0_106, %c0_107] : memref<32x32xbf16, #tpu.memory_space<vmem>>, vector<32x32xbf16>
      %cst_108 = arith.constant dense<0.000000e+00> : vector<8x32xf32>
      %167 = tpu.matmul %165, %166, %cst_108 {dimension_numbers = #tpu.dot_dimension_numbers<[1], [0], [0], [1], [0, 0, 1, 1], [], []>} : vector<8x32xbf16>, vector<32x32xbf16>, vector<8x32xf32> -> vector<8x32xf32>
      %c0_109 = arith.constant 0 : index
      %c0_110 = arith.constant 0 : index
      %168 = vector.load %arg8[%c0_109, %c0_110] : memref<1x32xf32, #tpu.memory_space<vmem>>, vector<1x32xf32>
      %169 = vector.broadcast %168 : vector<1x32xf32> to vector<8x32xf32>
      %170 = arith.addf %167, %169 : vector<8x32xf32>
      %171 = vector.broadcast %cst : f32 to vector<8x32xf32>
      %172 = arith.mulf %170, %171 : vector<8x32xf32>
      %173 = arith.truncf %172 : vector<8x32xf32> to vector<8x32xbf16>
      %c0_111 = arith.constant 0 : index
      %c0_112 = arith.constant 0 : index
      %174 = vector.load %arg24[%c0_111, %c0_112] : memref<8x32xbf16, #tpu.memory_space<vmem>>, vector<8x32xbf16>
      tpu.vector_store %arg24[%c0_111, %c0_112], %173 {strides = array<i32>} : memref<8x32xbf16, #tpu.memory_space<vmem>>, vector<8x32xbf16>,
      %cst_113 = arith.constant -1.000000e+30 : f32
      %175 = vector.broadcast %cst_113 : f32 to vector<4x8x1xf32>
      %c0_114 = arith.constant 0 : index
      %c0_115 = arith.constant 0 : index
      %c0_116 = arith.constant 0 : index
      %176 = vector.load %arg25[%c0_114, %c0_115, %c0_116] : memref<4x8x1xf32, #tpu.memory_space<vmem>>, vector<4x8x1xf32>
      tpu.vector_store %arg25[%c0_114, %c0_115, %c0_116], %175 {strides = array<i32>} : memref<4x8x1xf32, #tpu.memory_space<vmem>>, vector<4x8x1xf32>,
      %cst_117 = arith.constant 0.000000e+00 : f32
      %177 = vector.broadcast %cst_117 : f32 to vector<4x8x1xf32>
      %c0_118 = arith.constant 0 : index
      %c0_119 = arith.constant 0 : index
      %c0_120 = arith.constant 0 : index
      %178 = vector.load %arg26[%c0_118, %c0_119, %c0_120] : memref<4x8x1xf32, #tpu.memory_space<vmem>>, vector<4x8x1xf32>
      tpu.vector_store %arg26[%c0_118, %c0_119, %c0_120], %177 {strides = array<i32>} : memref<4x8x1xf32, #tpu.memory_space<vmem>>, vector<4x8x1xf32>,
      %cst_121 = arith.constant 0.000000e+00 : f32
      %179 = vector.broadcast %cst_121 : f32 to vector<8x32xf32>
      %c0_122 = arith.constant 0 : index
      %c0_123 = arith.constant 0 : index
      %180 = vector.load %arg27[%c0_122, %c0_123] : memref<8x32xf32, #tpu.memory_space<vmem>>, vector<8x32xf32>
      tpu.vector_store %arg27[%c0_122, %c0_123], %179 {strides = array<i32>} : memref<8x32xf32, #tpu.memory_space<vmem>>, vector<8x32xf32>,
    } else {
    }
    %c0 = arith.constant 0 : index
    %c0_1 = arith.constant 0 : index
    %c0_2 = arith.constant 0 : index
    %3 = vector.load %arg4[%c0, %c0_1, %c0_2] : memref<1x8x32xf32, #tpu.memory_space<vmem>>, vector<1x8x32xf32>
    %4 = vector.shape_cast %3 : vector<1x8x32xf32> to vector<8x32xf32>
    %5 = arith.truncf %4 : vector<8x32xf32> to vector<8x32xbf16>
    %c0_3 = arith.constant 0 : index
    %c0_4 = arith.constant 0 : index
    %c0_5 = arith.constant 0 : index
    %6 = vector.load %arg5[%c0_3, %c0_4, %c0_5] : memref<1x8x32xf32, #tpu.memory_space<vmem>>, vector<1x8x32xf32>
    %7 = vector.shape_cast %6 : vector<1x8x32xf32> to vector<8x32xf32>
    %8 = arith.truncf %7 : vector<8x32xf32> to vector<8x32xbf16>
    %c0_6 = arith.constant 0 : index
    %c0_7 = arith.constant 0 : index
    %9 = vector.load %arg9[%c0_6, %c0_7] : memref<32x32xbf16, #tpu.memory_space<vmem>>, vector<32x32xbf16>
    %cst_8 = arith.constant dense<0.000000e+00> : vector<8x32xf32>
    %10 = tpu.matmul %5, %9, %cst_8 {dimension_numbers = #tpu.dot_dimension_numbers<[1], [0], [0], [1], [0, 0, 1, 1], [], []>} : vector<8x32xbf16>, vector<32x32xbf16>, vector<8x32xf32> -> vector<8x32xf32>
    %c0_9 = arith.constant 0 : index
    %c0_10 = arith.constant 0 : index
    %11 = vector.load %arg10[%c0_9, %c0_10] : memref<1x32xf32, #tpu.memory_space<vmem>>, vector<1x32xf32>
    %12 = vector.broadcast %11 : vector<1x32xf32> to vector<8x32xf32>
    %13 = arith.addf %10, %12 : vector<8x32xf32>
    %14 = arith.truncf %13 : vector<8x32xf32> to vector<8x32xbf16>
    %c0_11 = arith.constant 0 : index
    %c0_12 = arith.constant 0 : index
    %15 = vector.load %arg11[%c0_11, %c0_12] : memref<32x32xbf16, #tpu.memory_space<vmem>>, vector<32x32xbf16>
    %cst_13 = arith.constant dense<0.000000e+00> : vector<8x32xf32>
    %16 = tpu.matmul %8, %15, %cst_13 {dimension_numbers = #tpu.dot_dimension_numbers<[1], [0], [0], [1], [0, 0, 1, 1], [], []>} : vector<8x32xbf16>, vector<32x32xbf16>, vector<8x32xf32> -> vector<8x32xf32>
    %c0_14 = arith.constant 0 : index
    %c0_15 = arith.constant 0 : index
    %17 = vector.load %arg12[%c0_14, %c0_15] : memref<1x32xf32, #tpu.memory_space<vmem>>, vector<1x32xf32>
    %18 = vector.broadcast %17 : vector<1x32xf32> to vector<8x32xf32>
    %19 = arith.addf %16, %18 : vector<8x32xf32>
    %20 = arith.truncf %19 : vector<8x32xf32> to vector<8x32xbf16>
    %c0_16 = arith.constant 0 : index
    %c0_17 = arith.constant 0 : index
    %c0_18 = arith.constant 0 : index
    %21 = vector.load %arg6[%c0_16, %c0_17, %c0_18] : memref<1x8x8xbf16, #tpu.memory_space<vmem>>, vector<1x8x8xbf16>
    %22 = vector.shape_cast %21 : vector<1x8x8xbf16> to vector<8x8xbf16>
    %23 = arith.extf %22 : vector<8x8xbf16> to vector<8x8xf32>
    %c0_19 = arith.constant 0 : index
    %c0_20 = arith.constant 0 : index
    %24 = vector.load %arg24[%c0_19, %c0_20] : memref<8x32xbf16, #tpu.memory_space<vmem>>, vector<8x8xbf16>
    %25 = vector.extract_strided_slice %14 {offsets = [0, 0], sizes = [8, 8], strides = [1, 1]} : vector<8x32xbf16> to vector<8x8xbf16>
    %26 = vector.extract_strided_slice %20 {offsets = [0, 0], sizes = [8, 8], strides = [1, 1]} : vector<8x32xbf16> to vector<8x8xbf16>
    %cst_21 = arith.constant dense<0.000000e+00> : vector<8x8xf32>
    %27 = tpu.matmul %24, %25, %cst_21 {dimension_numbers = #tpu.dot_dimension_numbers<[1], [1], [0], [0], [0, 0, 1, 0], [], []>} : vector<8x8xbf16>, vector<8x8xbf16>, vector<8x8xf32> -> vector<8x8xf32>
    %28 = arith.addf %27, %23 : vector<8x8xf32>
    %c0_22 = arith.constant 0 : index
    %c0_23 = arith.constant 0 : index
    %c0_24 = arith.constant 0 : index
    %29 = vector.load %arg25[%c0_22, %c0_23, %c0_24] : memref<4x8x1xf32, #tpu.memory_space<vmem>>, vector<1x8x1xf32>
    %30 = vector.shape_cast %29 : vector<1x8x1xf32> to vector<8x1xf32>
    %cst_25 = arith.constant dense<0xFF800000> : vector<8xf32>
    %31 = vector.multi_reduction <maximumf>, %28, %cst_25 [1] : vector<8x8xf32> to vector<8xf32>
    %32 = vector.shape_cast %31 : vector<8xf32> to vector<8x1xf32>
    %33 = arith.maximumf %30, %32 : vector<8x1xf32>
    %34 = arith.subf %30, %33 : vector<8x1xf32>
    %35 = math.exp %34 : vector<8x1xf32>
    %36 = vector.broadcast %33 : vector<8x1xf32> to vector<8x8xf32>
    %37 = arith.subf %28, %36 : vector<8x8xf32>
    %38 = math.exp %37 : vector<8x8xf32>
    %c0_26 = arith.constant 0 : index
    %c0_27 = arith.constant 0 : index
    %c0_28 = arith.constant 0 : index
    %39 = vector.load %arg26[%c0_26, %c0_27, %c0_28] : memref<4x8x1xf32, #tpu.memory_space<vmem>>, vector<1x8x1xf32>
    %40 = vector.shape_cast %39 : vector<1x8x1xf32> to vector<8x1xf32>
    %41 = arith.mulf %35, %40 : vector<8x1xf32>
    %cst_29 = arith.constant dense<0.000000e+00> : vector<8xf32>
    %42 = vector.multi_reduction <add>, %38, %cst_29 [1] : vector<8x8xf32> to vector<8xf32>
    %43 = vector.shape_cast %42 : vector<8xf32> to vector<8x1xf32>
    %44 = arith.addf %41, %43 : vector<8x1xf32>
    %c0_30 = arith.constant 0 : index
    %c0_31 = arith.constant 0 : index
    %c0_32 = arith.constant 0 : index
    %45 = vector.load %arg26[%c0_30, %c0_31, %c0_32] : memref<4x8x1xf32, #tpu.memory_space<vmem>>, vector<1x8x1xf32>
    %46 = vector.shape_cast %45 : vector<1x8x1xf32> to vector<8x1xf32>
    %47 = vector.shape_cast %44 : vector<8x1xf32> to vector<1x8x1xf32>
    tpu.vector_store %arg26[%c0_30, %c0_31, %c0_32], %47 {strides = array<i32>} : memref<4x8x1xf32, #tpu.memory_space<vmem>>, vector<1x8x1xf32>,
    %c0_33 = arith.constant 0 : index
    %c0_34 = arith.constant 0 : index
    %48 = vector.load %arg27[%c0_33, %c0_34] : memref<8x32xf32, #tpu.memory_space<vmem>>, vector<8x8xf32>
    %49 = vector.broadcast %35 : vector<8x1xf32> to vector<8x8xf32>
    %50 = arith.mulf %49, %48 : vector<8x8xf32>
    %51 = arith.truncf %38 : vector<8x8xf32> to vector<8x8xbf16>
    %cst_35 = arith.constant dense<0.000000e+00> : vector<8x8xf32>
    %52 = tpu.matmul %51, %26, %cst_35 {dimension_numbers = #tpu.dot_dimension_numbers<[1], [0], [0], [1], [0, 0, 1, 1], [], []>} : vector<8x8xbf16>, vector<8x8xbf16>, vector<8x8xf32> -> vector<8x8xf32>
    %53 = arith.addf %50, %52 : vector<8x8xf32>
    %c0_36 = arith.constant 0 : index
    %c0_37 = arith.constant 0 : index
    %54 = vector.load %arg27[%c0_36, %c0_37] : memref<8x32xf32, #tpu.memory_space<vmem>>, vector<8x8xf32>
    tpu.vector_store %arg27[%c0_36, %c0_37], %53 {strides = array<i32>} : memref<8x32xf32, #tpu.memory_space<vmem>>, vector<8x8xf32>,
    %c0_38 = arith.constant 0 : index
    %c0_39 = arith.constant 0 : index
    %c0_40 = arith.constant 0 : index
    %55 = vector.load %arg25[%c0_38, %c0_39, %c0_40] : memref<4x8x1xf32, #tpu.memory_space<vmem>>, vector<1x8x1xf32>
    %56 = vector.shape_cast %55 : vector<1x8x1xf32> to vector<8x1xf32>
    %57 = vector.shape_cast %33 : vector<8x1xf32> to vector<1x8x1xf32>
    tpu.vector_store %arg25[%c0_38, %c0_39, %c0_40], %57 {strides = array<i32>} : memref<4x8x1xf32, #tpu.memory_space<vmem>>, vector<1x8x1xf32>,
    %c0_41 = arith.constant 0 : index
    %c8 = arith.constant 8 : index
    %58 = vector.load %arg24[%c0_41, %c8] : memref<8x32xbf16, #tpu.memory_space<vmem>>, vector<8x8xbf16>
    %59 = vector.extract_strided_slice %14 {offsets = [0, 8], sizes = [8, 8], strides = [1, 1]} : vector<8x32xbf16> to vector<8x8xbf16>
    %60 = vector.extract_strided_slice %20 {offsets = [0, 8], sizes = [8, 8], strides = [1, 1]} : vector<8x32xbf16> to vector<8x8xbf16>
    %cst_42 = arith.constant dense<0.000000e+00> : vector<8x8xf32>
    %61 = tpu.matmul %58, %59, %cst_42 {dimension_numbers = #tpu.dot_dimension_numbers<[1], [1], [0], [0], [0, 0, 1, 0], [], []>} : vector<8x8xbf16>, vector<8x8xbf16>, vector<8x8xf32> -> vector<8x8xf32>
    %62 = arith.addf %61, %23 : vector<8x8xf32>
    %c1 = arith.constant 1 : index
    %c0_43 = arith.constant 0 : index
    %c0_44 = arith.constant 0 : index
    %63 = vector.load %arg25[%c1, %c0_43, %c0_44] : memref<4x8x1xf32, #tpu.memory_space<vmem>>, vector<1x8x1xf32>
    %64 = vector.shape_cast %63 : vector<1x8x1xf32> to vector<8x1xf32>
    %cst_45 = arith.constant dense<0xFF800000> : vector<8xf32>
    %65 = vector.multi_reduction <maximumf>, %62, %cst_45 [1] : vector<8x8xf32> to vector<8xf32>
    %66 = vector.shape_cast %65 : vector<8xf32> to vector<8x1xf32>
    %67 = arith.maximumf %64, %66 : vector<8x1xf32>
    %68 = arith.subf %64, %67 : vector<8x1xf32>
    %69 = math.exp %68 : vector<8x1xf32>
    %70 = vector.broadcast %67 : vector<8x1xf32> to vector<8x8xf32>
    %71 = arith.subf %62, %70 : vector<8x8xf32>
    %72 = math.exp %71 : vector<8x8xf32>
    %c1_46 = arith.constant 1 : index
    %c0_47 = arith.constant 0 : index
    %c0_48 = arith.constant 0 : index
    %73 = vector.load %arg26[%c1_46, %c0_47, %c0_48] : memref<4x8x1xf32, #tpu.memory_space<vmem>>, vector<1x8x1xf32>
    %74 = vector.shape_cast %73 : vector<1x8x1xf32> to vector<8x1xf32>
    %75 = arith.mulf %69, %74 : vector<8x1xf32>
    %cst_49 = arith.constant dense<0.000000e+00> : vector<8xf32>
    %76 = vector.multi_reduction <add>, %72, %cst_49 [1] : vector<8x8xf32> to vector<8xf32>
    %77 = vector.shape_cast %76 : vector<8xf32> to vector<8x1xf32>
    %78 = arith.addf %75, %77 : vector<8x1xf32>
    %c1_50 = arith.constant 1 : index
    %c0_51 = arith.constant 0 : index
    %c0_52 = arith.constant 0 : index
    %79 = vector.load %arg26[%c1_50, %c0_51, %c0_52] : memref<4x8x1xf32, #tpu.memory_space<vmem>>, vector<1x8x1xf32>
    %80 = vector.shape_cast %79 : vector<1x8x1xf32> to vector<8x1xf32>
    %81 = vector.shape_cast %78 : vector<8x1xf32> to vector<1x8x1xf32>
    tpu.vector_store %arg26[%c1_50, %c0_51, %c0_52], %81 {strides = array<i32>} : memref<4x8x1xf32, #tpu.memory_space<vmem>>, vector<1x8x1xf32>,
    %c0_53 = arith.constant 0 : index
    %c8_54 = arith.constant 8 : index
    %82 = vector.load %arg27[%c0_53, %c8_54] : memref<8x32xf32, #tpu.memory_space<vmem>>, vector<8x8xf32>
    %83 = vector.broadcast %69 : vector<8x1xf32> to vector<8x8xf32>
    %84 = arith.mulf %83, %82 : vector<8x8xf32>
    %85 = arith.truncf %72 : vector<8x8xf32> to vector<8x8xbf16>
    %cst_55 = arith.constant dense<0.000000e+00> : vector<8x8xf32>
    %86 = tpu.matmul %85, %60, %cst_55 {dimension_numbers = #tpu.dot_dimension_numbers<[1], [0], [0], [1], [0, 0, 1, 1], [], []>} : vector<8x8xbf16>, vector<8x8xbf16>, vector<8x8xf32> -> vector<8x8xf32>
    %87 = arith.addf %84, %86 : vector<8x8xf32>
    %c0_56 = arith.constant 0 : index
    %c8_57 = arith.constant 8 : index
    %88 = vector.load %arg27[%c0_56, %c8_57] : memref<8x32xf32, #tpu.memory_space<vmem>>, vector<8x8xf32>
    tpu.vector_store %arg27[%c0_56, %c8_57], %87 {strides = array<i32>} : memref<8x32xf32, #tpu.memory_space<vmem>>, vector<8x8xf32>,
    %c1_58 = arith.constant 1 : index
    %c0_59 = arith.constant 0 : index
    %c0_60 = arith.constant 0 : index
    %89 = vector.load %arg25[%c1_58, %c0_59, %c0_60] : memref<4x8x1xf32, #tpu.memory_space<vmem>>, vector<1x8x1xf32>
    %90 = vector.shape_cast %89 : vector<1x8x1xf32> to vector<8x1xf32>
    %91 = vector.shape_cast %67 : vector<8x1xf32> to vector<1x8x1xf32>
    tpu.vector_store %arg25[%c1_58, %c0_59, %c0_60], %91 {strides = array<i32>} : memref<4x8x1xf32, #tpu.memory_space<vmem>>, vector<1x8x1xf32>,
    %c0_61 = arith.constant 0 : index
    %c16 = arith.constant 16 : index
    %92 = vector.load %arg24[%c0_61, %c16] : memref<8x32xbf16, #tpu.memory_space<vmem>>, vector<8x8xbf16>
    %93 = vector.extract_strided_slice %14 {offsets = [0, 16], sizes = [8, 8], strides = [1, 1]} : vector<8x32xbf16> to vector<8x8xbf16>
    %94 = vector.extract_strided_slice %20 {offsets = [0, 16], sizes = [8, 8], strides = [1, 1]} : vector<8x32xbf16> to vector<8x8xbf16>
    %cst_62 = arith.constant dense<0.000000e+00> : vector<8x8xf32>
    %95 = tpu.matmul %92, %93, %cst_62 {dimension_numbers = #tpu.dot_dimension_numbers<[1], [1], [0], [0], [0, 0, 1, 0], [], []>} : vector<8x8xbf16>, vector<8x8xbf16>, vector<8x8xf32> -> vector<8x8xf32>
    %96 = arith.addf %95, %23 : vector<8x8xf32>
    %c2 = arith.constant 2 : index
    %c0_63 = arith.constant 0 : index
    %c0_64 = arith.constant 0 : index
    %97 = vector.load %arg25[%c2, %c0_63, %c0_64] : memref<4x8x1xf32, #tpu.memory_space<vmem>>, vector<1x8x1xf32>
    %98 = vector.shape_cast %97 : vector<1x8x1xf32> to vector<8x1xf32>
    %cst_65 = arith.constant dense<0xFF800000> : vector<8xf32>
    %99 = vector.multi_reduction <maximumf>, %96, %cst_65 [1] : vector<8x8xf32> to vector<8xf32>
    %100 = vector.shape_cast %99 : vector<8xf32> to vector<8x1xf32>
    %101 = arith.maximumf %98, %100 : vector<8x1xf32>
    %102 = arith.subf %98, %101 : vector<8x1xf32>
    %103 = math.exp %102 : vector<8x1xf32>
    %104 = vector.broadcast %101 : vector<8x1xf32> to vector<8x8xf32>
    %105 = arith.subf %96, %104 : vector<8x8xf32>
    %106 = math.exp %105 : vector<8x8xf32>
    %c2_66 = arith.constant 2 : index
    %c0_67 = arith.constant 0 : index
    %c0_68 = arith.constant 0 : index
    %107 = vector.load %arg26[%c2_66, %c0_67, %c0_68] : memref<4x8x1xf32, #tpu.memory_space<vmem>>, vector<1x8x1xf32>
    %108 = vector.shape_cast %107 : vector<1x8x1xf32> to vector<8x1xf32>
    %109 = arith.mulf %103, %108 : vector<8x1xf32>
    %cst_69 = arith.constant dense<0.000000e+00> : vector<8xf32>
    %110 = vector.multi_reduction <add>, %106, %cst_69 [1] : vector<8x8xf32> to vector<8xf32>
    %111 = vector.shape_cast %110 : vector<8xf32> to vector<8x1xf32>
    %112 = arith.addf %109, %111 : vector<8x1xf32>
    %c2_70 = arith.constant 2 : index
    %c0_71 = arith.constant 0 : index
    %c0_72 = arith.constant 0 : index
    %113 = vector.load %arg26[%c2_70, %c0_71, %c0_72] : memref<4x8x1xf32, #tpu.memory_space<vmem>>, vector<1x8x1xf32>
    %114 = vector.shape_cast %113 : vector<1x8x1xf32> to vector<8x1xf32>
    %115 = vector.shape_cast %112 : vector<8x1xf32> to vector<1x8x1xf32>
    tpu.vector_store %arg26[%c2_70, %c0_71, %c0_72], %115 {strides = array<i32>} : memref<4x8x1xf32, #tpu.memory_space<vmem>>, vector<1x8x1xf32>,
    %c0_73 = arith.constant 0 : index
    %c16_74 = arith.constant 16 : index
    %116 = vector.load %arg27[%c0_73, %c16_74] : memref<8x32xf32, #tpu.memory_space<vmem>>, vector<8x8xf32>
    %117 = vector.broadcast %103 : vector<8x1xf32> to vector<8x8xf32>
    %118 = arith.mulf %117, %116 : vector<8x8xf32>
    %119 = arith.truncf %106 : vector<8x8xf32> to vector<8x8xbf16>
    %cst_75 = arith.constant dense<0.000000e+00> : vector<8x8xf32>
    %120 = tpu.matmul %119, %94, %cst_75 {dimension_numbers = #tpu.dot_dimension_numbers<[1], [0], [0], [1], [0, 0, 1, 1], [], []>} : vector<8x8xbf16>, vector<8x8xbf16>, vector<8x8xf32> -> vector<8x8xf32>
    %121 = arith.addf %118, %120 : vector<8x8xf32>
    %c0_76 = arith.constant 0 : index
    %c16_77 = arith.constant 16 : index
    %122 = vector.load %arg27[%c0_76, %c16_77] : memref<8x32xf32, #tpu.memory_space<vmem>>, vector<8x8xf32>
    tpu.vector_store %arg27[%c0_76, %c16_77], %121 {strides = array<i32>} : memref<8x32xf32, #tpu.memory_space<vmem>>, vector<8x8xf32>,
    %c2_78 = arith.constant 2 : index
    %c0_79 = arith.constant 0 : index
    %c0_80 = arith.constant 0 : index
    %123 = vector.load %arg25[%c2_78, %c0_79, %c0_80] : memref<4x8x1xf32, #tpu.memory_space<vmem>>, vector<1x8x1xf32>
    %124 = vector.shape_cast %123 : vector<1x8x1xf32> to vector<8x1xf32>
    %125 = vector.shape_cast %101 : vector<8x1xf32> to vector<1x8x1xf32>
    tpu.vector_store %arg25[%c2_78, %c0_79, %c0_80], %125 {strides = array<i32>} : memref<4x8x1xf32, #tpu.memory_space<vmem>>, vector<1x8x1xf32>,
    %c0_81 = arith.constant 0 : index
    %c24 = arith.constant 24 : index
    %126 = vector.load %arg24[%c0_81, %c24] : memref<8x32xbf16, #tpu.memory_space<vmem>>, vector<8x8xbf16>
    %127 = vector.extract_strided_slice %14 {offsets = [0, 24], sizes = [8, 8], strides = [1, 1]} : vector<8x32xbf16> to vector<8x8xbf16>
    %128 = vector.extract_strided_slice %20 {offsets = [0, 24], sizes = [8, 8], strides = [1, 1]} : vector<8x32xbf16> to vector<8x8xbf16>
    %cst_82 = arith.constant dense<0.000000e+00> : vector<8x8xf32>
    %129 = tpu.matmul %126, %127, %cst_82 {dimension_numbers = #tpu.dot_dimension_numbers<[1], [1], [0], [0], [0, 0, 1, 0], [], []>} : vector<8x8xbf16>, vector<8x8xbf16>, vector<8x8xf32> -> vector<8x8xf32>
    %130 = arith.addf %129, %23 : vector<8x8xf32>
    %c3 = arith.constant 3 : index
    %c0_83 = arith.constant 0 : index
    %c0_84 = arith.constant 0 : index
    %131 = vector.load %arg25[%c3, %c0_83, %c0_84] : memref<4x8x1xf32, #tpu.memory_space<vmem>>, vector<1x8x1xf32>
    %132 = vector.shape_cast %131 : vector<1x8x1xf32> to vector<8x1xf32>
    %cst_85 = arith.constant dense<0xFF800000> : vector<8xf32>
    %133 = vector.multi_reduction <maximumf>, %130, %cst_85 [1] : vector<8x8xf32> to vector<8xf32>
    %134 = vector.shape_cast %133 : vector<8xf32> to vector<8x1xf32>
    %135 = arith.maximumf %132, %134 : vector<8x1xf32>
    %136 = arith.subf %132, %135 : vector<8x1xf32>
    %137 = math.exp %136 : vector<8x1xf32>
    %138 = vector.broadcast %135 : vector<8x1xf32> to vector<8x8xf32>
    %139 = arith.subf %130, %138 : vector<8x8xf32>
    %140 = math.exp %139 : vector<8x8xf32>
    %c3_86 = arith.constant 3 : index
    %c0_87 = arith.constant 0 : index
    %c0_88 = arith.constant 0 : index
    %141 = vector.load %arg26[%c3_86, %c0_87, %c0_88] : memref<4x8x1xf32, #tpu.memory_space<vmem>>, vector<1x8x1xf32>
    %142 = vector.shape_cast %141 : vector<1x8x1xf32> to vector<8x1xf32>
    %143 = arith.mulf %137, %142 : vector<8x1xf32>
    %cst_89 = arith.constant dense<0.000000e+00> : vector<8xf32>
    %144 = vector.multi_reduction <add>, %140, %cst_89 [1] : vector<8x8xf32> to vector<8xf32>
    %145 = vector.shape_cast %144 : vector<8xf32> to vector<8x1xf32>
    %146 = arith.addf %143, %145 : vector<8x1xf32>
    %c3_90 = arith.constant 3 : index
    %c0_91 = arith.constant 0 : index
    %c0_92 = arith.constant 0 : index
    %147 = vector.load %arg26[%c3_90, %c0_91, %c0_92] : memref<4x8x1xf32, #tpu.memory_space<vmem>>, vector<1x8x1xf32>
    %148 = vector.shape_cast %147 : vector<1x8x1xf32> to vector<8x1xf32>
    %149 = vector.shape_cast %146 : vector<8x1xf32> to vector<1x8x1xf32>
    tpu.vector_store %arg26[%c3_90, %c0_91, %c0_92], %149 {strides = array<i32>} : memref<4x8x1xf32, #tpu.memory_space<vmem>>, vector<1x8x1xf32>,
    %c0_93 = arith.constant 0 : index
    %c24_94 = arith.constant 24 : index
    %150 = vector.load %arg27[%c0_93, %c24_94] : memref<8x32xf32, #tpu.memory_space<vmem>>, vector<8x8xf32>
    %151 = vector.broadcast %137 : vector<8x1xf32> to vector<8x8xf32>
    %152 = arith.mulf %151, %150 : vector<8x8xf32>
    %153 = arith.truncf %140 : vector<8x8xf32> to vector<8x8xbf16>
    %cst_95 = arith.constant dense<0.000000e+00> : vector<8x8xf32>
    %154 = tpu.matmul %153, %128, %cst_95 {dimension_numbers = #tpu.dot_dimension_numbers<[1], [0], [0], [1], [0, 0, 1, 1], [], []>} : vector<8x8xbf16>, vector<8x8xbf16>, vector<8x8xf32> -> vector<8x8xf32>
    %155 = arith.addf %152, %154 : vector<8x8xf32>
    %c0_96 = arith.constant 0 : index
    %c24_97 = arith.constant 24 : index
    %156 = vector.load %arg27[%c0_96, %c24_97] : memref<8x32xf32, #tpu.memory_space<vmem>>, vector<8x8xf32>
    tpu.vector_store %arg27[%c0_96, %c24_97], %155 {strides = array<i32>} : memref<8x32xf32, #tpu.memory_space<vmem>>, vector<8x8xf32>,
    %c3_98 = arith.constant 3 : index
    %c0_99 = arith.constant 0 : index
    %c0_100 = arith.constant 0 : index
    %157 = vector.load %arg25[%c3_98, %c0_99, %c0_100] : memref<4x8x1xf32, #tpu.memory_space<vmem>>, vector<1x8x1xf32>
    %158 = vector.shape_cast %157 : vector<1x8x1xf32> to vector<8x1xf32>
    %159 = vector.shape_cast %135 : vector<8x1xf32> to vector<1x8x1xf32>
    tpu.vector_store %arg25[%c3_98, %c0_99, %c0_100], %159 {strides = array<i32>} : memref<4x8x1xf32, #tpu.memory_space<vmem>>, vector<1x8x1xf32>,
    %c0_i32_101 = arith.constant 0 : i32
    %160 = arith.cmpi eq, %arg2, %c0_i32_101 : i32
    %161 = arith.extui %160 : i1 to i32
    %c0_i32_102 = arith.constant 0 : i32
    %162 = arith.cmpi ne, %161, %c0_i32_102 : i32
    scf.if %162 {
      %c0_103 = arith.constant 0 : index
      %c0_104 = arith.constant 0 : index
      %163 = vector.load %arg27[%c0_103, %c0_104] : memref<8x32xf32, #tpu.memory_space<vmem>>, vector<8x8xf32>
      %c0_105 = arith.constant 0 : index
      %c0_106 = arith.constant 0 : index
      %c0_107 = arith.constant 0 : index
      %164 = vector.load %arg26[%c0_105, %c0_106, %c0_107] : memref<4x8x1xf32, #tpu.memory_space<vmem>>, vector<1x8x1xf32>
      %165 = vector.shape_cast %164 : vector<1x8x1xf32> to vector<8x1xf32>
      %166 = tpu.reciprocal %165 {approx = true} : vector<8x1xf32> -> vector<8x1xf32>
      %167 = vector.broadcast %166 : vector<8x1xf32> to vector<8x8xf32>
      %168 = arith.mulf %163, %167 : vector<8x8xf32>
      %c0_108 = arith.constant 0 : index
      %c0_109 = arith.constant 0 : index
      %169 = vector.load %arg27[%c0_108, %c0_109] : memref<8x32xf32, #tpu.memory_space<vmem>>, vector<8x8xf32>
      tpu.vector_store %arg27[%c0_108, %c0_109], %168 {strides = array<i32>} : memref<8x32xf32, #tpu.memory_space<vmem>>, vector<8x8xf32>,
      %c0_110 = arith.constant 0 : index
      %c8_111 = arith.constant 8 : index
      %170 = vector.load %arg27[%c0_110, %c8_111] : memref<8x32xf32, #tpu.memory_space<vmem>>, vector<8x8xf32>
      %c1_112 = arith.constant 1 : index
      %c0_113 = arith.constant 0 : index
      %c0_114 = arith.constant 0 : index
      %171 = vector.load %arg26[%c1_112, %c0_113, %c0_114] : memref<4x8x1xf32, #tpu.memory_space<vmem>>, vector<1x8x1xf32>
      %172 = vector.shape_cast %171 : vector<1x8x1xf32> to vector<8x1xf32>
      %173 = tpu.reciprocal %172 {approx = true} : vector<8x1xf32> -> vector<8x1xf32>
      %174 = vector.broadcast %173 : vector<8x1xf32> to vector<8x8xf32>
      %175 = arith.mulf %170, %174 : vector<8x8xf32>
      %c0_115 = arith.constant 0 : index
      %c8_116 = arith.constant 8 : index
      %176 = vector.load %arg27[%c0_115, %c8_116] : memref<8x32xf32, #tpu.memory_space<vmem>>, vector<8x8xf32>
      tpu.vector_store %arg27[%c0_115, %c8_116], %175 {strides = array<i32>} : memref<8x32xf32, #tpu.memory_space<vmem>>, vector<8x8xf32>,
      %c0_117 = arith.constant 0 : index
      %c16_118 = arith.constant 16 : index
      %177 = vector.load %arg27[%c0_117, %c16_118] : memref<8x32xf32, #tpu.memory_space<vmem>>, vector<8x8xf32>
      %c2_119 = arith.constant 2 : index
      %c0_120 = arith.constant 0 : index
      %c0_121 = arith.constant 0 : index
      %178 = vector.load %arg26[%c2_119, %c0_120, %c0_121] : memref<4x8x1xf32, #tpu.memory_space<vmem>>, vector<1x8x1xf32>
      %179 = vector.shape_cast %178 : vector<1x8x1xf32> to vector<8x1xf32>
      %180 = tpu.reciprocal %179 {approx = true} : vector<8x1xf32> -> vector<8x1xf32>
      %181 = vector.broadcast %180 : vector<8x1xf32> to vector<8x8xf32>
      %182 = arith.mulf %177, %181 : vector<8x8xf32>
      %c0_122 = arith.constant 0 : index
      %c16_123 = arith.constant 16 : index
      %183 = vector.load %arg27[%c0_122, %c16_123] : memref<8x32xf32, #tpu.memory_space<vmem>>, vector<8x8xf32>
      tpu.vector_store %arg27[%c0_122, %c16_123], %182 {strides = array<i32>} : memref<8x32xf32, #tpu.memory_space<vmem>>, vector<8x8xf32>,
      %c0_124 = arith.constant 0 : index
      %c24_125 = arith.constant 24 : index
      %184 = vector.load %arg27[%c0_124, %c24_125] : memref<8x32xf32, #tpu.memory_space<vmem>>, vector<8x8xf32>
      %c3_126 = arith.constant 3 : index
      %c0_127 = arith.constant 0 : index
      %c0_128 = arith.constant 0 : index
      %185 = vector.load %arg26[%c3_126, %c0_127, %c0_128] : memref<4x8x1xf32, #tpu.memory_space<vmem>>, vector<1x8x1xf32>
      %186 = vector.shape_cast %185 : vector<1x8x1xf32> to vector<8x1xf32>
      %187 = tpu.reciprocal %186 {approx = true} : vector<8x1xf32> -> vector<8x1xf32>
      %188 = vector.broadcast %187 : vector<8x1xf32> to vector<8x8xf32>
      %189 = arith.mulf %184, %188 : vector<8x8xf32>
      %c0_129 = arith.constant 0 : index
      %c24_130 = arith.constant 24 : index
      %190 = vector.load %arg27[%c0_129, %c24_130] : memref<8x32xf32, #tpu.memory_space<vmem>>, vector<8x8xf32>
      tpu.vector_store %arg27[%c0_129, %c24_130], %189 {strides = array<i32>} : memref<8x32xf32, #tpu.memory_space<vmem>>, vector<8x8xf32>,
      %c0_131 = arith.constant 0 : index
      %c0_132 = arith.constant 0 : index
      %191 = vector.load %arg27[%c0_131, %c0_132] : memref<8x32xf32, #tpu.memory_space<vmem>>, vector<8x32xf32>
      %192 = arith.truncf %191 : vector<8x32xf32> to vector<8x32xbf16>
      %c0_133 = arith.constant 0 : index
      %c0_134 = arith.constant 0 : index
      %193 = vector.load %arg13[%c0_133, %c0_134] : memref<32x32xbf16, #tpu.memory_space<vmem>>, vector<32x32xbf16>
      %cst_135 = arith.constant dense<0.000000e+00> : vector<8x32xf32>
      %194 = tpu.matmul %192, %193, %cst_135 {dimension_numbers = #tpu.dot_dimension_numbers<[1], [0], [0], [1], [0, 0, 1, 1], [], []>} : vector<8x32xbf16>, vector<32x32xbf16>, vector<8x32xf32> -> vector<8x32xf32>
      %c0_136 = arith.constant 0 : index
      %c0_137 = arith.constant 0 : index
      %195 = vector.load %arg14[%c0_136, %c0_137] : memref<1x32xf32, #tpu.memory_space<vmem>>, vector<1x32xf32>
      %196 = vector.broadcast %195 : vector<1x32xf32> to vector<8x32xf32>
      %197 = arith.addf %194, %196 : vector<8x32xf32>
      %c0_138 = arith.constant 0 : index
      %c0_139 = arith.constant 0 : index
      %c0_140 = arith.constant 0 : index
      %198 = vector.load %arg3[%c0_138, %c0_139, %c0_140] : memref<1x8x32xf32, #tpu.memory_space<vmem>>, vector<1x8x32xf32>
      %199 = vector.shape_cast %198 : vector<1x8x32xf32> to vector<8x32xf32>
      %200 = arith.addf %197, %199 : vector<8x32xf32>
      %c0_141 = arith.constant 0 : index
      %c0_142 = arith.constant 0 : index
      %201 = vector.load %arg15[%c0_141, %c0_142] : memref<1x32xf32, #tpu.memory_space<vmem>>, vector<1x32xf32>
      %c0_143 = arith.constant 0 : index
      %c0_144 = arith.constant 0 : index
      %202 = vector.load %arg16[%c0_143, %c0_144] : memref<1x32xf32, #tpu.memory_space<vmem>>, vector<1x32xf32>
      %cst_145 = arith.constant dense<0.000000e+00> : vector<8xf32>
      %203 = vector.multi_reduction <add>, %200, %cst_145 [1] : vector<8x32xf32> to vector<8xf32>
      %204 = vector.shape_cast %203 : vector<8xf32> to vector<8x1xf32>
      %cst_146 = arith.constant 3.200000e+01 : f32
      %205 = vector.broadcast %cst_146 : f32 to vector<8x1xf32>
      %206 = arith.divf %204, %205 : vector<8x1xf32>
      %207 = vector.broadcast %206 : vector<8x1xf32> to vector<8x32xf32>
      %208 = arith.subf %200, %207 : vector<8x32xf32>
      %209 = arith.mulf %208, %208 : vector<8x32xf32>
      %cst_147 = arith.constant dense<0.000000e+00> : vector<8xf32>
      %210 = vector.multi_reduction <add>, %209, %cst_147 [1] : vector<8x32xf32> to vector<8xf32>
      %211 = vector.shape_cast %210 : vector<8xf32> to vector<8x1xf32>
      %cst_148 = arith.constant 3.200000e+01 : f32
      %212 = vector.broadcast %cst_148 : f32 to vector<8x1xf32>
      %213 = arith.divf %211, %212 : vector<8x1xf32>
      %cst_149 = arith.constant 9.99999974E-6 : f32
      %214 = vector.broadcast %cst_149 : f32 to vector<8x1xf32>
      %215 = arith.addf %213, %214 : vector<8x1xf32>
      %216 = math.rsqrt %215 : vector<8x1xf32>
      %217 = vector.broadcast %216 : vector<8x1xf32> to vector<8x32xf32>
      %218 = arith.mulf %208, %217 : vector<8x32xf32>
      %219 = vector.broadcast %201 : vector<1x32xf32> to vector<8x32xf32>
      %220 = arith.mulf %218, %219 : vector<8x32xf32>
      %221 = vector.broadcast %202 : vector<1x32xf32> to vector<8x32xf32>
      %222 = arith.addf %220, %221 : vector<8x32xf32>
      %223 = arith.truncf %222 : vector<8x32xf32> to vector<8x32xbf16>
      %c0_150 = arith.constant 0 : index
      %c0_151 = arith.constant 0 : index
      %224 = vector.load %arg17[%c0_150, %c0_151] : memref<32x128xbf16, #tpu.memory_space<vmem>>, vector<32x128xbf16>
      %cst_152 = arith.constant dense<0.000000e+00> : vector<8x128xf32>
      %225 = tpu.matmul %223, %224, %cst_152 {dimension_numbers = #tpu.dot_dimension_numbers<[1], [0], [0], [1], [0, 0, 1, 1], [], []>} : vector<8x32xbf16>, vector<32x128xbf16>, vector<8x128xf32> -> vector<8x128xf32>
      %c0_153 = arith.constant 0 : index
      %c0_154 = arith.constant 0 : index
      %226 = vector.load %arg18[%c0_153, %c0_154] : memref<1x128xf32, #tpu.memory_space<vmem>>, vector<1x128xf32>
      %227 = vector.broadcast %226 : vector<1x128xf32> to vector<8x128xf32>
      %228 = arith.addf %225, %227 : vector<8x128xf32>
      %cst_155 = arith.constant 0.000000e+00 : f32
      %229 = vector.broadcast %cst_155 : f32 to vector<8x128xf32>
      %230 = arith.maximumf %228, %229 : vector<8x128xf32>
      %231 = arith.truncf %230 : vector<8x128xf32> to vector<8x128xbf16>
      %c0_156 = arith.constant 0 : index
      %c0_157 = arith.constant 0 : index
      %232 = vector.load %arg19[%c0_156, %c0_157] : memref<128x32xbf16, #tpu.memory_space<vmem>>, vector<128x32xbf16>
      %cst_158 = arith.constant dense<0.000000e+00> : vector<8x32xf32>
      %233 = tpu.matmul %231, %232, %cst_158 {dimension_numbers = #tpu.dot_dimension_numbers<[1], [0], [0], [1], [0, 0, 1, 1], [], []>} : vector<8x128xbf16>, vector<128x32xbf16>, vector<8x32xf32> -> vector<8x32xf32>
      %c0_159 = arith.constant 0 : index
      %c0_160 = arith.constant 0 : index
      %234 = vector.load %arg20[%c0_159, %c0_160] : memref<1x32xf32, #tpu.memory_space<vmem>>, vector<1x32xf32>
      %235 = vector.broadcast %234 : vector<1x32xf32> to vector<8x32xf32>
      %236 = arith.addf %233, %235 : vector<8x32xf32>
      %237 = arith.addf %222, %236 : vector<8x32xf32>
      %c0_161 = arith.constant 0 : index
      %c0_162 = arith.constant 0 : index
      %238 = vector.load %arg21[%c0_161, %c0_162] : memref<1x32xf32, #tpu.memory_space<vmem>>, vector<1x32xf32>
      %c0_163 = arith.constant 0 : index
      %c0_164 = arith.constant 0 : index
      %239 = vector.load %arg22[%c0_163, %c0_164] : memref<1x32xf32, #tpu.memory_space<vmem>>, vector<1x32xf32>
      %cst_165 = arith.constant dense<0.000000e+00> : vector<8xf32>
      %240 = vector.multi_reduction <add>, %237, %cst_165 [1] : vector<8x32xf32> to vector<8xf32>
      %241 = vector.shape_cast %240 : vector<8xf32> to vector<8x1xf32>
      %cst_166 = arith.constant 3.200000e+01 : f32
      %242 = vector.broadcast %cst_166 : f32 to vector<8x1xf32>
      %243 = arith.divf %241, %242 : vector<8x1xf32>
      %244 = vector.broadcast %243 : vector<8x1xf32> to vector<8x32xf32>
      %245 = arith.subf %237, %244 : vector<8x32xf32>
      %246 = arith.mulf %245, %245 : vector<8x32xf32>
      %cst_167 = arith.constant dense<0.000000e+00> : vector<8xf32>
      %247 = vector.multi_reduction <add>, %246, %cst_167 [1] : vector<8x32xf32> to vector<8xf32>
      %248 = vector.shape_cast %247 : vector<8xf32> to vector<8x1xf32>
      %cst_168 = arith.constant 3.200000e+01 : f32
      %249 = vector.broadcast %cst_168 : f32 to vector<8x1xf32>
      %250 = arith.divf %248, %249 : vector<8x1xf32>
      %cst_169 = arith.constant 9.99999974E-6 : f32
      %251 = vector.broadcast %cst_169 : f32 to vector<8x1xf32>
      %252 = arith.addf %250, %251 : vector<8x1xf32>
      %253 = math.rsqrt %252 : vector<8x1xf32>
      %254 = vector.broadcast %253 : vector<8x1xf32> to vector<8x32xf32>
      %255 = arith.mulf %245, %254 : vector<8x32xf32>
      %256 = vector.broadcast %238 : vector<1x32xf32> to vector<8x32xf32>
      %257 = arith.mulf %255, %256 : vector<8x32xf32>
      %258 = vector.broadcast %239 : vector<1x32xf32> to vector<8x32xf32>
      %259 = arith.addf %257, %258 : vector<8x32xf32>
      %c0_170 = arith.constant 0 : index
      %c0_171 = arith.constant 0 : index
      %c0_172 = arith.constant 0 : index
      %260 = vector.load %arg23[%c0_170, %c0_171, %c0_172] : memref<1x8x32xf32, #tpu.memory_space<vmem>>, vector<1x8x32xf32>
      %261 = vector.shape_cast %260 : vector<1x8x32xf32> to vector<8x32xf32>
      %262 = vector.shape_cast %259 : vector<8x32xf32> to vector<1x8x32xf32>
      tpu.vector_store %arg23[%c0_170, %c0_171, %c0_172], %262 {strides = array<i32>} : memref<1x8x32xf32, #tpu.memory_space<vmem>>, vector<1x8x32xf32>,
    } else {
    }
    return
  }
  func.func @transform_0(%arg0: i32, %arg1: i32, %arg2: i32) -> (i32, i32, i32) {
    %c0_i32 = arith.constant 0 : i32
    %c0_i32_0 = arith.constant 0 : i32
    return %arg0, %arg1, %c0_i32 : i32, i32, i32
  }
  func.func @transform_1(%arg0: i32, %arg1: i32, %arg2: i32) -> (i32, i32, i32) {
    %c0_i32 = arith.constant 0 : i32
    %c0_i32_0 = arith.constant 0 : i32
    return %arg0, %arg2, %c0_i32 : i32, i32, i32
  }
  func.func @transform_2(%arg0: i32, %arg1: i32, %arg2: i32) -> (i32, i32, i32) {
    %c0_i32 = arith.constant 0 : i32
    %c0_i32_0 = arith.constant 0 : i32
    return %arg0, %arg2, %c0_i32 : i32, i32, i32
  }
  func.func @transform_3(%arg0: i32, %arg1: i32, %arg2: i32) -> (i32, i32, i32) {
    %c0_i32 = arith.constant 0 : i32
    return %arg0, %arg1, %arg2 : i32, i32, i32
  }
  func.func @transform_4(%arg0: i32, %arg1: i32, %arg2: i32) -> (i32, i32) {
    %c0_i32 = arith.constant 0 : i32
    %c0_i32_0 = arith.constant 0 : i32
    %c0_i32_1 = arith.constant 0 : i32
    return %c0_i32, %c0_i32_0 : i32, i32
  }
  func.func @transform_5(%arg0: i32, %arg1: i32, %arg2: i32) -> (i32, i32) {
    %c0_i32 = arith.constant 0 : i32
    %c0_i32_0 = arith.constant 0 : i32
    %c0_i32_1 = arith.constant 0 : i32
    return %c0_i32, %c0_i32_0 : i32, i32
  }
  func.func @transform_6(%arg0: i32, %arg1: i32, %arg2: i32) -> (i32, i32) {
    %c0_i32 = arith.constant 0 : i32
    %c0_i32_0 = arith.constant 0 : i32
    %c0_i32_1 = arith.constant 0 : i32
    return %c0_i32, %c0_i32_0 : i32, i32
  }
  func.func @transform_7(%arg0: i32, %arg1: i32, %arg2: i32) -> (i32, i32) {
    %c0_i32 = arith.constant 0 : i32
    %c0_i32_0 = arith.constant 0 : i32
    %c0_i32_1 = arith.constant 0 : i32
    return %c0_i32, %c0_i32_0 : i32, i32
  }
  func.func @transform_8(%arg0: i32, %arg1: i32, %arg2: i32) -> (i32, i32) {
    %c0_i32 = arith.constant 0 : i32
    %c0_i32_0 = arith.constant 0 : i32
    %c0_i32_1 = arith.constant 0 : i32
    return %c0_i32, %c0_i32_0 : i32, i32
  }
  func.func @transform_9(%arg0: i32, %arg1: i32, %arg2: i32) -> (i32, i32) {
    %c0_i32 = arith.constant 0 : i32
    %c0_i32_0 = arith.constant 0 : i32
    %c0_i32_1 = arith.constant 0 : i32
    return %c0_i32, %c0_i32_0 : i32, i32
  }
  func.func @transform_10(%arg0: i32, %arg1: i32, %arg2: i32) -> (i32, i32) {
    %c0_i32 = arith.constant 0 : i32
    %c0_i32_0 = arith.constant 0 : i32
    %c0_i32_1 = arith.constant 0 : i32
    return %c0_i32, %c0_i32_0 : i32, i32
  }
  func.func @transform_11(%arg0: i32, %arg1: i32, %arg2: i32) -> (i32, i32) {
    %c0_i32 = arith.constant 0 : i32
    %c0_i32_0 = arith.constant 0 : i32
    %c0_i32_1 = arith.constant 0 : i32
    return %c0_i32, %c0_i32_0 : i32, i32
  }
  func.func @transform_12(%arg0: i32, %arg1: i32, %arg2: i32) -> (i32, i32) {
    %c0_i32 = arith.constant 0 : i32
    %c0_i32_0 = arith.constant 0 : i32
    %c0_i32_1 = arith.constant 0 : i32
    return %c0_i32, %c0_i32_0 : i32, i32
  }
  func.func @transform_13(%arg0: i32, %arg1: i32, %arg2: i32) -> (i32, i32) {
    %c0_i32 = arith.constant 0 : i32
    %c0_i32_0 = arith.constant 0 : i32
    %c0_i32_1 = arith.constant 0 : i32
    return %c0_i32, %c0_i32_0 : i32, i32
  }
  func.func @transform_14(%arg0: i32, %arg1: i32, %arg2: i32) -> (i32, i32) {
    %c0_i32 = arith.constant 0 : i32
    %c0_i32_0 = arith.constant 0 : i32
    %c0_i32_1 = arith.constant 0 : i32
    return %c0_i32, %c0_i32_0 : i32, i32
  }
  func.func @transform_15(%arg0: i32, %arg1: i32, %arg2: i32) -> (i32, i32) {
    %c0_i32 = arith.constant 0 : i32
    %c0_i32_0 = arith.constant 0 : i32
    %c0_i32_1 = arith.constant 0 : i32
    return %c0_i32, %c0_i32_0 : i32, i32
  }
  func.func @transform_16(%arg0: i32, %arg1: i32, %arg2: i32) -> (i32, i32) {
    %c0_i32 = arith.constant 0 : i32
    %c0_i32_0 = arith.constant 0 : i32
    %c0_i32_1 = arith.constant 0 : i32
    return %c0_i32, %c0_i32_0 : i32, i32
  }
  func.func @transform_17(%arg0: i32, %arg1: i32, %arg2: i32) -> (i32, i32) {
    %c0_i32 = arith.constant 0 : i32
    %c0_i32_0 = arith.constant 0 : i32
    %c0_i32_1 = arith.constant 0 : i32
    return %c0_i32, %c0_i32_0 : i32, i32
  }
  func.func @transform_18(%arg0: i32, %arg1: i32, %arg2: i32) -> (i32, i32) {
    %c0_i32 = arith.constant 0 : i32
    %c0_i32_0 = arith.constant 0 : i32
    %c0_i32_1 = arith.constant 0 : i32
    return %c0_i32, %c0_i32_0 : i32, i32
  }
  func.func @transform_19(%arg0: i32, %arg1: i32, %arg2: i32) -> (i32, i32) {
    %c0_i32 = arith.constant 0 : i32
    %c0_i32_0 = arith.constant 0 : i32
    %c0_i32_1 = arith.constant 0 : i32
    return %c0_i32, %c0_i32_0 : i32, i32
  }
  func.func @transform_20(%arg0: i32, %arg1: i32, %arg2: i32) -> (i32, i32, i32) {
    %c0_i32 = arith.constant 0 : i32
    %c0_i32_0 = arith.constant 0 : i32
    return %arg0, %arg1, %c0_i32 : i32, i32, i32
  }
}

</mosaic_0001>

<llo_original>
// kernel: tpu_custom_call.1
$region0: #{tpu_custom_call.1}
  #allocation0 [shape = 'u32[]', space=smem, size = 0x4, offset = 0x4, fixed_abs, tag = 'smem constant byte address 0x4 - core index']
  #allocation1 [shape = 'u32[144,128]{1,0:T(1,128)}', space=vmem, size = 0x12000, scoped, tag = 'internal scratch']
  #allocation2 [shape = 'bf16[8,32]{1,0:T(8,128)(2,1)}', space=vmem, size = 0x800, scoped, tag = 'scratch operand']
  #allocation3 [shape = 'f32[4,8,1]{2,1,0:T(8,128)}', space=vmem, size = 0x4000, scoped, tag = 'scratch operand']
  #allocation4 [shape = 'f32[4,8,1]{2,1,0:T(8,128)}', space=vmem, size = 0x4000, scoped, tag = 'scratch operand']
  #allocation5 [shape = 'f32[8,32]{1,0:T(8,128)}', space=vmem, size = 0x1000, scoped, tag = 'scratch operand']
  %s0 = inlined_call_operand.vmem [shape: f32[2,8,32], index: 0, kind: input, shape index: {}]
  %s1 = inlined_call_operand.vmem [shape: f32[2,8,32], index: 1, kind: input, shape index: {}]
  %s2 = inlined_call_operand.vmem [shape: f32[2,8,32], index: 2, kind: input, shape index: {}]
  %s3 = inlined_call_operand.hbm [shape: bf16[2,8,8], index: 3, kind: input, shape index: {}]
  %s4 = inlined_call_operand.vmem [shape: bf16[32,32], index: 4, kind: input, shape index: {}]
  %s5 = inlined_call_operand.vmem [shape: f32[1,32], index: 5, kind: input, shape index: {}]
  %s6 = inlined_call_operand.vmem [shape: bf16[32,32], index: 6, kind: input, shape index: {}]
  %s7 = inlined_call_operand.hbm [shape: f32[1,32], index: 7, kind: input, shape index: {}]
  %s8 = inlined_call_operand.vmem [shape: bf16[32,32], index: 8, kind: input, shape index: {}]
  %s9 = inlined_call_operand.hbm [shape: f32[1,32], index: 9, kind: input, shape index: {}]
  %s10 = inlined_call_operand.vmem [shape: bf16[32,32], index: 10, kind: input, shape index: {}]
  %s11 = inlined_call_operand.hbm [shape: f32[1,32], index: 11, kind: input, shape index: {}]
  %s12 = inlined_call_operand.hbm [shape: f32[1,32], index: 12, kind: input, shape index: {}]
  %s13 = inlined_call_operand.hbm [shape: f32[1,32], index: 13, kind: input, shape index: {}]
  %s14 = inlined_call_operand.vmem [shape: bf16[32,128], index: 14, kind: input, shape index: {}]
  %s15 = inlined_call_operand.vmem [shape: f32[1,128], index: 15, kind: input, shape index: {}]
  %s16 = inlined_call_operand.vmem [shape: bf16[128,32], index: 16, kind: input, shape index: {}]
  %s17 = inlined_call_operand.vmem [shape: f32[1,32], index: 17, kind: input, shape index: {}]
  %s18 = inlined_call_operand.vmem [shape: f32[1,32], index: 18, kind: input, shape index: {}]
  %s19 = inlined_call_operand.vmem [shape: f32[1,32], index: 19, kind: input, shape index: {}]
  %s20 = inlined_call_operand.hbm [shape: f32[2,8,32], index: 20, kind: output, shape index: {}]
  %s21 = sld [smem:[#allocation0]]
  $region145: #{tpu_custom_call.1} parent=0
    _
  %s23 = ssub.s32 1, %s21
  %s24 = scalar_select 0, %s23, %s21
  $region1: #{tpu_custom_call.1} parent=0
    #allocation6 [shape = 'u8[4096]{0}', space=vmem, size = 0x1000, scoped, tag = 'input window, operand 3']
    #allocation7 [shape = 's32[2]{0}', space=sflag, size = 0x8, scoped, tag = 'scoped memory for tpu_custom_call.1']
    #allocation8 [shape = 's32[2]{0}', space=sflag, size = 0x8, scoped, tag = 'scoped memory for tpu_custom_call.1']
    #allocation9 [shape = 'u8[512]{0}', space=vmem, size = 0x400, scoped, tag = 'input window, operand 7, single buffered']
    #allocation10 [shape = 's32[1]{0}', space=sflag, size = 0x4, scoped, tag = 'scoped memory for tpu_custom_call.1']
    #allocation11 [shape = 'u8[512]{0}', space=vmem, size = 0x400, scoped, tag = 'input window, operand 9, single buffered']
    #allocation12 [shape = 'u8[512]{0}', space=vmem, size = 0x400, scoped, tag = 'input window, operand 11, single buffered']
    #allocation13 [shape = 's32[1]{0}', space=sflag, size = 0x4, scoped, tag = 'scoped memory for tpu_custom_call.1']
    #allocation14 [shape = 'u8[512]{0}', space=vmem, size = 0x400, scoped, tag = 'input window, operand 12, single buffered']
    #allocation15 [shape = 'u8[512]{0}', space=vmem, size = 0x400, scoped, tag = 'input window, operand 13, single buffered']
    #allocation16 [shape = 's32[1]{0}', space=sflag, size = 0x4, scoped, tag = 'scoped memory for tpu_custom_call.1']
    #allocation17 [shape = 'u8[8192]{0}', space=vmem, size = 0x2000, scoped, tag = 'output window, operand 0']
    %25 = vsyncpa [#allocation7], 0
    %s26 = scalar_lea.sflag [#allocation7], 1
    %27 = vsyncpa %s26, 0
    %28 = vsyncpa [#allocation10], 0
    %29 = vsyncpa [#allocation13], 0
    %30 = vsyncpa [#allocation16], 0
    %31 = vsyncpa [#allocation8], 0
    %s32 = scalar_lea.sflag [#allocation8], 1
    %33 = vsyncpa %s32, 0
    loop: start=0, step=1, limit=4
    $region2: #{tpu_custom_call.1} parent=1 // loop_pre_header
      _
    $region3: #{tpu_custom_call.1} parent=1 // loop_header
      %s35 = sphi 0, %s39
      %p36 = scmp.ge.s32.totalorder %s35, 4
      %s42 = sphi 0, %s61
      %s43 = sphi 0, %s57
      %s44 = sphi 0, %s53
      %s45 = sphi 0, %s42
      %s46 = sphi 0, %s43
      %s47 = sphi 0, %s44
      %s48 = sphi 0, %s45
      %s49 = sphi 0, %s46
      %s50 = sphi 0, %s47
      %s66 = sphi 0, %s68
      %s69 = sphi 0, %s66
      %s70 = sphi 0, %s69
      %s86 = sphi 0, %s70
      %s94 = sphi 0, %s96
      %s97 = sphi 0, %s94
      %s98 = sphi 0, %s97
      %s114 = sphi 0, %s98
      %s122 = sphi 0, %s124
      %s125 = sphi 0, %s122
      %s126 = sphi 0, %s125
      %s142 = sphi 0, %s126
      %s152 = sphi 0, %s154
      %s155 = sphi 0, %s152
      %s156 = sphi 0, %s155
      %s172 = sphi 0, %s156
      %s176 = sphi 0, %s176
      %s178 = sphi 0, %s176
      %s179 = sphi 0, %s178
      %s193 = sphi 0, %s179
      %s197 = sphi 0, %s197
      %s199 = sphi 0, %s197
      %s200 = sphi 0, %s199
      %s214 = sphi 0, %s200
      %s218 = sphi 0, %s218
      %s220 = sphi 0, %s218
      %s221 = sphi 0, %s220
      %s235 = sphi 0, %s221
      %s239 = sphi 0, %s239
      %s241 = sphi 0, %s239
      %s242 = sphi 0, %s241
      %s256 = sphi 0, %s242
      %s260 = sphi 0, %s260
      %s262 = sphi 0, %s260
      %s263 = sphi 0, %s262
      %s277 = sphi 0, %s263
      %s281 = sphi 0, %s281
      %s283 = sphi 0, %s281
      %s284 = sphi 0, %s283
      %s298 = sphi 0, %s284
      %s302 = sphi 0, %s302
      %s304 = sphi 0, %s302
      %s305 = sphi 0, %s304
      %s319 = sphi 0, %s305
      %s323 = sphi 0, %s323
      %s325 = sphi 0, %s323
      %s326 = sphi 0, %s325
      %s340 = sphi 0, %s326
      %s344 = sphi 0, %s344
      %s346 = sphi 0, %s344
      %s347 = sphi 0, %s346
      %s361 = sphi 0, %s347
      %s365 = sphi 0, %s365
      %s367 = sphi 0, %s365
      %s368 = sphi 0, %s367
      %s382 = sphi 0, %s368
      %s386 = sphi 0, %s386
      %s388 = sphi 0, %s386
      %s389 = sphi 0, %s388
      %s403 = sphi 0, %s389
      %s407 = sphi 0, %s407
      %s409 = sphi 0, %s407
      %s410 = sphi 0, %s409
      %s424 = sphi 0, %s410
      %s428 = sphi 0, %s428
      %s430 = sphi 0, %s428
      %s431 = sphi 0, %s430
      %s445 = sphi 0, %s431
      %s449 = sphi 0, %s449
      %s451 = sphi 0, %s449
      %s452 = sphi 0, %s451
      %s466 = sphi 0, %s452
      %s470 = sphi 0, %s470
      %s472 = sphi 0, %s470
      %s473 = sphi 0, %s472
      %s487 = sphi 0, %s473
      %s491 = sphi 0, %s491
      %s493 = sphi 0, %s491
      %s494 = sphi 0, %s493
      %s508 = sphi 0, %s494
      %s516 = sphi 0, %s518
      %s519 = sphi 0, %s516
      %s520 = sphi 0, %s519
      %s536 = sphi 0, %s520
    $region4: #{tpu_custom_call.1} parent=1 // loop_header_branch
      %38 = sbr.rel (%p36) target = $region8
    $region5: #{tpu_custom_call.1} parent=1 // loop_body
      %s40 = ssub.s32 %s35, 1
      %s41 = ssub.s32 %s35, 2
      %s51 = sadd.s32 1, %s44
      %p52 = scmp.ge.s32.totalorder %s51, 1
      %s53 = scalar_select %p52, 0, %s51
      %s54 = sadd.s32 1, %s43
      %s55 = scalar_select %p52, %s54, %s43
      %p56 = scmp.ge.s32.totalorder %s55, 1
      %s57 = scalar_select %p56, 0, %s55
      %s58 = sadd.s32 1, %s42
      %s59 = scalar_select %p56, %s58, %s42
      %p60 = scmp.ge.s32.totalorder %s59, 2
      %s61 = scalar_select %p60, 0, %s59
      %s62 = ssub.s32 %s42, %s61
      %s63 = ssub.s32 %s43, %s57
      %s64 = sor.u32 %s62, %s63
      %p65 = scmp.eq.s32.totalorder %s64, 0
      %s67 = sadd.s32 %s66, 1
      %s68 = scalar_select %p65, %s66, %s67
      %p71 = pneg %p65
      %p72 = scmp.eq.s32.totalorder %s35, 1
      %p73 = por %p71, %p72
      %p74 = scmp.ne.s32.totalorder %s66, %s69
      %p75 = scmp.eq.s32.totalorder %s35, 0
      %p76 = por %p74, %p75
      %p77 = scmp.ne.s32.totalorder %s66, %s69
      %p78 = scmp.eq.s32.totalorder %s40, 1
      %p79 = por %p77, %p78
      %p80 = scmp.ne.s32.totalorder %s69, %s70
      %p81 = scmp.eq.s32.totalorder %s40, 0
      %p82 = por %p80, %p81
      %p83 = scmp.ne.s32.totalorder %s69, %s70
      %p84 = scmp.eq.s32.totalorder %s41, 1
      %p85 = por %p83, %p84
      %p87 = scmp.ne.s32.totalorder %s70, %s86
      %p88 = scmp.eq.s32.totalorder %s41, 0
      %p89 = por %p87, %p88
      %s90 = ssub.s32 %s42, %s61
      %s91 = ssub.s32 %s44, %s53
      %s92 = sor.u32 %s90, %s91
      %p93 = scmp.eq.s32.totalorder %s92, 0
      %s95 = sadd.s32 %s94, 1
      %s96 = scalar_select %p93, %s94, %s95
      %p99 = pneg %p93
      %p100 = scmp.eq.s32.totalorder %s35, 1
      %p101 = por %p99, %p100
      %p102 = scmp.ne.s32.totalorder %s94, %s97
      %p103 = scmp.eq.s32.totalorder %s35, 0
      %p104 = por %p102, %p103
      %p105 = scmp.ne.s32.totalorder %s94, %s97
      %p106 = scmp.eq.s32.totalorder %s40, 1
      %p107 = por %p105, %p106
      %p108 = scmp.ne.s32.totalorder %s97, %s98
      %p109 = scmp.eq.s32.totalorder %s40, 0
      %p110 = por %p108, %p109
      %p111 = scmp.ne.s32.totalorder %s97, %s98
      %p112 = scmp.eq.s32.totalorder %s41, 1
      %p113 = por %p111, %p112
      %p115 = scmp.ne.s32.totalorder %s98, %s114
      %p116 = scmp.eq.s32.totalorder %s41, 0
      %p117 = por %p115, %p116
      %s118 = ssub.s32 %s42, %s61
      %s119 = ssub.s32 %s44, %s53
      %s120 = sor.u32 %s118, %s119
      %p121 = scmp.eq.s32.totalorder %s120, 0
      %s123 = sadd.s32 %s122, 1
      %s124 = scalar_select %p121, %s122, %s123
      %p127 = pneg %p121
      %p128 = scmp.eq.s32.totalorder %s35, 1
      %p129 = por %p127, %p128
      %p130 = scmp.ne.s32.totalorder %s122, %s125
      %p131 = scmp.eq.s32.totalorder %s35, 0
      %p132 = por %p130, %p131
      %p133 = scmp.ne.s32.totalorder %s122, %s125
      %p134 = scmp.eq.s32.totalorder %s40, 1
      %p135 = por %p133, %p134
      %p136 = scmp.ne.s32.totalorder %s125, %s126
      %p137 = scmp.eq.s32.totalorder %s40, 0
      %p138 = por %p136, %p137
      %p139 = scmp.ne.s32.totalorder %s125, %s126
      %p140 = scmp.eq.s32.totalorder %s41, 1
      %p141 = por %p139, %p140
      %p143 = scmp.ne.s32.totalorder %s126, %s142
      %p144 = scmp.eq.s32.totalorder %s41, 0
      %p145 = por %p143, %p144
      %s146 = ssub.s32 %s42, %s61
      %s147 = ssub.s32 %s43, %s57
      %s148 = sor.u32 %s146, %s147
      %s149 = ssub.s32 %s44, %s53
      %s150 = sor.u32 %s148, %s149
      %p151 = scmp.eq.s32.totalorder %s150, 0
      %s153 = sadd.s32 %s152, 1
      %s154 = scalar_select %p151, %s152, %s153
      %p157 = pneg %p151
      %p158 = scmp.eq.s32.totalorder %s35, 1
      %p159 = por %p157, %p158
      %p160 = scmp.ne.s32.totalorder %s152, %s155
      %p161 = scmp.eq.s32.totalorder %s35, 0
      %p162 = por %p160, %p161
      %p163 = scmp.ne.s32.totalorder %s152, %s155
      %p164 = scmp.eq.s32.totalorder %s40, 1
      %p165 = por %p163, %p164
      %p166 = scmp.ne.s32.totalorder %s155, %s156
      %p167 = scmp.eq.s32.totalorder %s40, 0
      %p168 = por %p166, %p167
      %p169 = scmp.ne.s32.totalorder %s155, %s156
      %p170 = scmp.eq.s32.totalorder %s41, 1
      %p171 = por %p169, %p170
      %p173 = scmp.ne.s32.totalorder %s156, %s172
      %p174 = scmp.eq.s32.totalorder %s41, 0
      %p175 = por %p173, %p174
      %s177 = sadd.s32 %s176, 1
      %p180 = scmp.eq.s32.totalorder %s35, 1
      %p181 = scmp.ne.s32.totalorder %s176, %s178
      %p182 = scmp.eq.s32.totalorder %s35, 0
      %p183 = por %p181, %p182
      %p184 = scmp.ne.s32.totalorder %s176, %s178
      %p185 = scmp.eq.s32.totalorder %s40, 1
      %p186 = por %p184, %p185
      %p187 = scmp.ne.s32.totalorder %s178, %s179
      %p188 = scmp.eq.s32.totalorder %s40, 0
      %p189 = por %p187, %p188
      %p190 = scmp.ne.s32.totalorder %s178, %s179
      %p191 = scmp.eq.s32.totalorder %s41, 1
      %p192 = por %p190, %p191
      %p194 = scmp.ne.s32.totalorder %s179, %s193
      %p195 = scmp.eq.s32.totalorder %s41, 0
      %p196 = por %p194, %p195
      %s198 = sadd.s32 %s197, 1
      %p201 = scmp.eq.s32.totalorder %s35, 1
      %p202 = scmp.ne.s32.totalorder %s197, %s199
      %p203 = scmp.eq.s32.totalorder %s35, 0
      %p204 = por %p202, %p203
      %p205 = scmp.ne.s32.totalorder %s197, %s199
      %p206 = scmp.eq.s32.totalorder %s40, 1
      %p207 = por %p205, %p206
      %p208 = scmp.ne.s32.totalorder %s199, %s200
      %p209 = scmp.eq.s32.totalorder %s40, 0
      %p210 = por %p208, %p209
      %p211 = scmp.ne.s32.totalorder %s199, %s200
      %p212 = scmp.eq.s32.totalorder %s41, 1
      %p213 = por %p211, %p212
      %p215 = scmp.ne.s32.totalorder %s200, %s214
      %p216 = scmp.eq.s32.totalorder %s41, 0
      %p217 = por %p215, %p216
      %s219 = sadd.s32 %s218, 1
      %p222 = scmp.eq.s32.totalorder %s35, 1
      %p223 = scmp.ne.s32.totalorder %s218, %s220
      %p224 = scmp.eq.s32.totalorder %s35, 0
      %p225 = por %p223, %p224
      %p226 = scmp.ne.s32.totalorder %s218, %s220
      %p227 = scmp.eq.s32.totalorder %s40, 1
      %p228 = por %p226, %p227
      %p229 = scmp.ne.s32.totalorder %s220, %s221
      %p230 = scmp.eq.s32.totalorder %s40, 0
      %p231 = por %p229, %p230
      %p232 = scmp.ne.s32.totalorder %s220, %s221
      %p233 = scmp.eq.s32.totalorder %s41, 1
      %p234 = por %p232, %p233
      %p236 = scmp.ne.s32.totalorder %s221, %s235
      %p237 = scmp.eq.s32.totalorder %s41, 0
      %p238 = por %p236, %p237
      %s240 = sadd.s32 %s239, 1
      %p243 = scmp.eq.s32.totalorder %s35, 1
      %p244 = scmp.ne.s32.totalorder %s239, %s241
      %p245 = scmp.eq.s32.totalorder %s35, 0
      %p246 = por %p244, %p245
      %p247 = scmp.ne.s32.totalorder %s239, %s241
      %p248 = scmp.eq.s32.totalorder %s40, 1
      %p249 = por %p247, %p248
      %p250 = scmp.ne.s32.totalorder %s241, %s242
      %p251 = scmp.eq.s32.totalorder %s40, 0
      %p252 = por %p250, %p251
      %p253 = scmp.ne.s32.totalorder %s241, %s242
      %p254 = scmp.eq.s32.totalorder %s41, 1
      %p255 = por %p253, %p254
      %p257 = scmp.ne.s32.totalorder %s242, %s256
      %p258 = scmp.eq.s32.totalorder %s41, 0
      %p259 = por %p257, %p258
      %s261 = sadd.s32 %s260, 1
      %p264 = scmp.eq.s32.totalorder %s35, 1
      %p265 = scmp.ne.s32.totalorder %s260, %s262
      %p266 = scmp.eq.s32.totalorder %s35, 0
      %p267 = por %p265, %p266
      %p268 = scmp.ne.s32.totalorder %s260, %s262
      %p269 = scmp.eq.s32.totalorder %s40, 1
      %p270 = por %p268, %p269
      %p271 = scmp.ne.s32.totalorder %s262, %s263
      %p272 = scmp.eq.s32.totalorder %s40, 0
      %p273 = por %p271, %p272
      %p274 = scmp.ne.s32.totalorder %s262, %s263
      %p275 = scmp.eq.s32.totalorder %s41, 1
      %p276 = por %p274, %p275
      %p278 = scmp.ne.s32.totalorder %s263, %s277
      %p279 = scmp.eq.s32.totalorder %s41, 0
      %p280 = por %p278, %p279
      %s282 = sadd.s32 %s281, 1
      %p285 = scmp.eq.s32.totalorder %s35, 1
      %p286 = scmp.ne.s32.totalorder %s281, %s283
      %p287 = scmp.eq.s32.totalorder %s35, 0
      %p288 = por %p286, %p287
      %p289 = scmp.ne.s32.totalorder %s281, %s283
      %p290 = scmp.eq.s32.totalorder %s40, 1
      %p291 = por %p289, %p290
      %p292 = scmp.ne.s32.totalorder %s283, %s284
      %p293 = scmp.eq.s32.totalorder %s40, 0
      %p294 = por %p292, %p293
      %p295 = scmp.ne.s32.totalorder %s283, %s284
      %p296 = scmp.eq.s32.totalorder %s41, 1
      %p297 = por %p295, %p296
      %p299 = scmp.ne.s32.totalorder %s284, %s298
      %p300 = scmp.eq.s32.totalorder %s41, 0
      %p301 = por %p299, %p300
      %s303 = sadd.s32 %s302, 1
      %p306 = scmp.eq.s32.totalorder %s35, 1
      %p307 = scmp.ne.s32.totalorder %s302, %s304
      %p308 = scmp.eq.s32.totalorder %s35, 0
      %p309 = por %p307, %p308
      %p310 = scmp.ne.s32.totalorder %s302, %s304
      %p311 = scmp.eq.s32.totalorder %s40, 1
      %p312 = por %p310, %p311
      %p313 = scmp.ne.s32.totalorder %s304, %s305
      %p314 = scmp.eq.s32.totalorder %s40, 0
      %p315 = por %p313, %p314
      %p316 = scmp.ne.s32.totalorder %s304, %s305
      %p317 = scmp.eq.s32.totalorder %s41, 1
      %p318 = por %p316, %p317
      %p320 = scmp.ne.s32.totalorder %s305, %s319
      %p321 = scmp.eq.s32.totalorder %s41, 0
      %p322 = por %p320, %p321
      %s324 = sadd.s32 %s323, 1
      %p327 = scmp.eq.s32.totalorder %s35, 1
      %p328 = scmp.ne.s32.totalorder %s323, %s325
      %p329 = scmp.eq.s32.totalorder %s35, 0
      %p330 = por %p328, %p329
      %p331 = scmp.ne.s32.totalorder %s323, %s325
      %p332 = scmp.eq.s32.totalorder %s40, 1
      %p333 = por %p331, %p332
      %p334 = scmp.ne.s32.totalorder %s325, %s326
      %p335 = scmp.eq.s32.totalorder %s40, 0
      %p336 = por %p334, %p335
      %p337 = scmp.ne.s32.totalorder %s325, %s326
      %p338 = scmp.eq.s32.totalorder %s41, 1
      %p339 = por %p337, %p338
      %p341 = scmp.ne.s32.totalorder %s326, %s340
      %p342 = scmp.eq.s32.totalorder %s41, 0
      %p343 = por %p341, %p342
      %s345 = sadd.s32 %s344, 1
      %p348 = scmp.eq.s32.totalorder %s35, 1
      %p349 = scmp.ne.s32.totalorder %s344, %s346
      %p350 = scmp.eq.s32.totalorder %s35, 0
      %p351 = por %p349, %p350
      %p352 = scmp.ne.s32.totalorder %s344, %s346
      %p353 = scmp.eq.s32.totalorder %s40, 1
      %p354 = por %p352, %p353
      %p355 = scmp.ne.s32.totalorder %s346, %s347
      %p356 = scmp.eq.s32.totalorder %s40, 0
      %p357 = por %p355, %p356
      %p358 = scmp.ne.s32.totalorder %s346, %s347
      %p359 = scmp.eq.s32.totalorder %s41, 1
      %p360 = por %p358, %p359
      %p362 = scmp.ne.s32.totalorder %s347, %s361
      %p363 = scmp.eq.s32.totalorder %s41, 0
      %p364 = por %p362, %p363
      %s366 = sadd.s32 %s365, 1
      %p369 = scmp.eq.s32.totalorder %s35, 1
      %p370 = scmp.ne.s32.totalorder %s365, %s367
      %p371 = scmp.eq.s32.totalorder %s35, 0
      %p372 = por %p370, %p371
      %p373 = scmp.ne.s32.totalorder %s365, %s367
      %p374 = scmp.eq.s32.totalorder %s40, 1
      %p375 = por %p373, %p374
      %p376 = scmp.ne.s32.totalorder %s367, %s368
      %p377 = scmp.eq.s32.totalorder %s40, 0
      %p378 = por %p376, %p377
      %p379 = scmp.ne.s32.totalorder %s367, %s368
      %p380 = scmp.eq.s32.totalorder %s41, 1
      %p381 = por %p379, %p380
      %p383 = scmp.ne.s32.totalorder %s368, %s382
      %p384 = scmp.eq.s32.totalorder %s41, 0
      %p385 = por %p383, %p384
      %s387 = sadd.s32 %s386, 1
      %p390 = scmp.eq.s32.totalorder %s35, 1
      %p391 = scmp.ne.s32.totalorder %s386, %s388
      %p392 = scmp.eq.s32.totalorder %s35, 0
      %p393 = por %p391, %p392
      %p394 = scmp.ne.s32.totalorder %s386, %s388
      %p395 = scmp.eq.s32.totalorder %s40, 1
      %p396 = por %p394, %p395
      %p397 = scmp.ne.s32.totalorder %s388, %s389
      %p398 = scmp.eq.s32.totalorder %s40, 0
      %p399 = por %p397, %p398
      %p400 = scmp.ne.s32.totalorder %s388, %s389
      %p401 = scmp.eq.s32.totalorder %s41, 1
      %p402 = por %p400, %p401
      %p404 = scmp.ne.s32.totalorder %s389, %s403
      %p405 = scmp.eq.s32.totalorder %s41, 0
      %p406 = por %p404, %p405
      %s408 = sadd.s32 %s407, 1
      %p411 = scmp.eq.s32.totalorder %s35, 1
      %p412 = scmp.ne.s32.totalorder %s407, %s409
      %p413 = scmp.eq.s32.totalorder %s35, 0
      %p414 = por %p412, %p413
      %p415 = scmp.ne.s32.totalorder %s407, %s409
      %p416 = scmp.eq.s32.totalorder %s40, 1
      %p417 = por %p415, %p416
      %p418 = scmp.ne.s32.totalorder %s409, %s410
      %p419 = scmp.eq.s32.totalorder %s40, 0
      %p420 = por %p418, %p419
      %p421 = scmp.ne.s32.totalorder %s409, %s410
      %p422 = scmp.eq.s32.totalorder %s41, 1
      %p423 = por %p421, %p422
      %p425 = scmp.ne.s32.totalorder %s410, %s424
      %p426 = scmp.eq.s32.totalorder %s41, 0
      %p427 = por %p425, %p426
      %s429 = sadd.s32 %s428, 1
      %p432 = scmp.eq.s32.totalorder %s35, 1
      %p433 = scmp.ne.s32.totalorder %s428, %s430
      %p434 = scmp.eq.s32.totalorder %s35, 0
      %p435 = por %p433, %p434
      %p436 = scmp.ne.s32.totalorder %s428, %s430
      %p437 = scmp.eq.s32.totalorder %s40, 1
      %p438 = por %p436, %p437
      %p439 = scmp.ne.s32.totalorder %s430, %s431
      %p440 = scmp.eq.s32.totalorder %s40, 0
      %p441 = por %p439, %p440
      %p442 = scmp.ne.s32.totalorder %s430, %s431
      %p443 = scmp.eq.s32.totalorder %s41, 1
      %p444 = por %p442, %p443
      %p446 = scmp.ne.s32.totalorder %s431, %s445
      %p447 = scmp.eq.s32.totalorder %s41, 0
      %p448 = por %p446, %p447
      %s450 = sadd.s32 %s449, 1
      %p453 = scmp.eq.s32.totalorder %s35, 1
      %p454 = scmp.ne.s32.totalorder %s449, %s451
      %p455 = scmp.eq.s32.totalorder %s35, 0
      %p456 = por %p454, %p455
      %p457 = scmp.ne.s32.totalorder %s449, %s451
      %p458 = scmp.eq.s32.totalorder %s40, 1
      %p459 = por %p457, %p458
      %p460 = scmp.ne.s32.totalorder %s451, %s452
      %p461 = scmp.eq.s32.totalorder %s40, 0
      %p462 = por %p460, %p461
      %p463 = scmp.ne.s32.totalorder %s451, %s452
      %p464 = scmp.eq.s32.totalorder %s41, 1
      %p465 = por %p463, %p464
      %p467 = scmp.ne.s32.totalorder %s452, %s466
      %p468 = scmp.eq.s32.totalorder %s41, 0
      %p469 = por %p467, %p468
      %s471 = sadd.s32 %s470, 1
      %p474 = scmp.eq.s32.totalorder %s35, 1
      %p475 = scmp.ne.s32.totalorder %s470, %s472
      %p476 = scmp.eq.s32.totalorder %s35, 0
      %p477 = por %p475, %p476
      %p478 = scmp.ne.s32.totalorder %s470, %s472
      %p479 = scmp.eq.s32.totalorder %s40, 1
      %p480 = por %p478, %p479
      %p481 = scmp.ne.s32.totalorder %s472, %s473
      %p482 = scmp.eq.s32.totalorder %s40, 0
      %p483 = por %p481, %p482
      %p484 = scmp.ne.s32.totalorder %s472, %s473
      %p485 = scmp.eq.s32.totalorder %s41, 1
      %p486 = por %p484, %p485
      %p488 = scmp.ne.s32.totalorder %s473, %s487
      %p489 = scmp.eq.s32.totalorder %s41, 0
      %p490 = por %p488, %p489
      %s492 = sadd.s32 %s491, 1
      %p495 = scmp.eq.s32.totalorder %s35, 1
      %p496 = scmp.ne.s32.totalorder %s491, %s493
      %p497 = scmp.eq.s32.totalorder %s35, 0
      %p498 = por %p496, %p497
      %p499 = scmp.ne.s32.totalorder %s491, %s493
      %p500 = scmp.eq.s32.totalorder %s40, 1
      %p501 = por %p499, %p500
      %p502 = scmp.ne.s32.totalorder %s493, %s494
      %p503 = scmp.eq.s32.totalorder %s40, 0
      %p504 = por %p502, %p503
      %p505 = scmp.ne.s32.totalorder %s493, %s494
      %p506 = scmp.eq.s32.totalorder %s41, 1
      %p507 = por %p505, %p506
      %p509 = scmp.ne.s32.totalorder %s494, %s508
      %p510 = scmp.eq.s32.totalorder %s41, 0
      %p511 = por %p509, %p510
      %s512 = ssub.s32 %s42, %s61
      %s513 = ssub.s32 %s43, %s57
      %s514 = sor.u32 %s512, %s513
      %p515 = scmp.eq.s32.totalorder %s514, 0
      %s517 = sadd.s32 %s516, 1
      %s518 = scalar_select %p515, %s516, %s517
      %p521 = pneg %p515
      %p522 = scmp.eq.s32.totalorder %s35, 1
      %p523 = por %p521, %p522
      %p524 = scmp.ne.s32.totalorder %s516, %s519
      %p525 = scmp.eq.s32.totalorder %s35, 0
      %p526 = por %p524, %p525
      %p527 = scmp.ne.s32.totalorder %s516, %s519
      %p528 = scmp.eq.s32.totalorder %s40, 1
      %p529 = por %p527, %p528
      %p530 = scmp.ne.s32.totalorder %s519, %s520
      %p531 = scmp.eq.s32.totalorder %s40, 0
      %p532 = por %p530, %p531
      %p533 = scmp.ne.s32.totalorder %s519, %s520
      %p534 = scmp.eq.s32.totalorder %s41, 1
      %p535 = por %p533, %p534
      %p537 = scmp.ne.s32.totalorder %s520, %s536
      %p538 = scmp.eq.s32.totalorder %s41, 0
      %p539 = por %p537, %p538
      %p540 = scmp.le.s32.totalorder 1, %s35
      %p541 = scmp.lt.s32.totalorder %s35, 3
      %p542 = pnand %p540, %p541
      %p543 = pneg %p542
      // Predicated region
      $region9: #{tpu_custom_call.1} parent=5 // pred_check
        _
      $region10: #{tpu_custom_call.1} parent=5 // pred_check_branch
        %545 = sbr.rel (%p542) target = $region12
      $region11: #{tpu_custom_call.1} parent=5 // pred_region
        %s546 = ssub.s32 %s35, 1
        // Predicated region
        $region13: #{tpu_custom_call.1} parent=11 // pred_check
          %p547 = pneg %p189
        $region14: #{tpu_custom_call.1} parent=11 // pred_check_branch
          %549 = sbr.rel (%p547) target = $region16
        $region15: #{tpu_custom_call.1} parent=11 // pred_region
          _
        $region16: #{tpu_custom_call.1} parent=11 // pred_fallthru
          _
        // Predicated region
        $region17: #{tpu_custom_call.1} parent=11 // pred_check
          %p550 = pneg %p210
        $region18: #{tpu_custom_call.1} parent=11 // pred_check_branch
          %552 = sbr.rel (%p550) target = $region20
        $region19: #{tpu_custom_call.1} parent=11 // pred_region
          _
        $region20: #{tpu_custom_call.1} parent=11 // pred_fallthru
          _
        // Predicated region
        $region21: #{tpu_custom_call.1} parent=11 // pred_check
          %p553 = pneg %p231
        $region22: #{tpu_custom_call.1} parent=11 // pred_check_branch
          %555 = sbr.rel (%p553) target = $region24
        $region23: #{tpu_custom_call.1} parent=11 // pred_region
          _
        $region24: #{tpu_custom_call.1} parent=11 // pred_fallthru
          _
        // Predicated region
        $region25: #{tpu_custom_call.1} parent=11 // pred_check
          %p556 = pneg %p252
        $region26: #{tpu_custom_call.1} parent=11 // pred_check_branch
          %558 = sbr.rel (%p556) target = $region28
        $region27: #{tpu_custom_call.1} parent=11 // pred_region
          %s560 = ssub.s32 16, 16
          %561 = vsyncadd [#allocation10], %s560
          %s563 = sshll.u32 [#allocation9], 4
          %s564 = int_to_ptr.vmem [resolvable:$true] %s563
          %566 = dma.hbm_to_vmem [thread:$0]  %s7, 16, %s564, [#allocation10]
        $region28: #{tpu_custom_call.1} parent=11 // pred_fallthru
          _
        // Predicated region
        $region29: #{tpu_custom_call.1} parent=11 // pred_check
          %p567 = pneg %p273
        $region30: #{tpu_custom_call.1} parent=11 // pred_check_branch
          %569 = sbr.rel (%p567) target = $region32
        $region31: #{tpu_custom_call.1} parent=11 // pred_region
          _
        $region32: #{tpu_custom_call.1} parent=11 // pred_fallthru
          _
        // Predicated region
        $region33: #{tpu_custom_call.1} parent=11 // pred_check
          %p570 = pneg %p294
        $region34: #{tpu_custom_call.1} parent=11 // pred_check_branch
          %572 = sbr.rel (%p570) target = $region36
        $region35: #{tpu_custom_call.1} parent=11 // pred_region
          %s574 = ssub.s32 16, 16
          %575 = vsyncadd [#allocation10], %s574
          %s577 = sshll.u32 [#allocation11], 4
          %s578 = int_to_ptr.vmem [resolvable:$true] %s577
          %580 = dma.hbm_to_vmem [thread:$0]  %s9, 16, %s578, [#allocation10]
        $region36: #{tpu_custom_call.1} parent=11 // pred_fallthru
          _
        // Predicated region
        $region37: #{tpu_custom_call.1} parent=11 // pred_check
          %p581 = pneg %p315
        $region38: #{tpu_custom_call.1} parent=11 // pred_check_branch
          %583 = sbr.rel (%p581) target = $region40
        $region39: #{tpu_custom_call.1} parent=11 // pred_region
          _
        $region40: #{tpu_custom_call.1} parent=11 // pred_fallthru
          _
        // Predicated region
        $region41: #{tpu_custom_call.1} parent=11 // pred_check
          %p584 = pneg %p336
        $region42: #{tpu_custom_call.1} parent=11 // pred_check_branch
          %586 = sbr.rel (%p584) target = $region44
        $region43: #{tpu_custom_call.1} parent=11 // pred_region
          %s588 = ssub.s32 16, 16
          %589 = vsyncadd [#allocation13], %s588
          %s591 = sshll.u32 [#allocation12], 4
          %s592 = int_to_ptr.vmem [resolvable:$true] %s591
          %594 = dma.hbm_to_vmem [thread:$0]  %s11, 16, %s592, [#allocation13]
        $region44: #{tpu_custom_call.1} parent=11 // pred_fallthru
          _
        // Predicated region
        $region45: #{tpu_custom_call.1} parent=11 // pred_check
          %p595 = pneg %p357
        $region46: #{tpu_custom_call.1} parent=11 // pred_check_branch
          %597 = sbr.rel (%p595) target = $region48
        $region47: #{tpu_custom_call.1} parent=11 // pred_region
          %s599 = ssub.s32 16, 16
          %600 = vsyncadd [#allocation13], %s599
          %s602 = sshll.u32 [#allocation14], 4
          %s603 = int_to_ptr.vmem [resolvable:$true] %s602
          %605 = dma.hbm_to_vmem [thread:$0]  %s12, 16, %s603, [#allocation13]
        $region48: #{tpu_custom_call.1} parent=11 // pred_fallthru
          _
        // Predicated region
        $region49: #{tpu_custom_call.1} parent=11 // pred_check
          %p606 = pneg %p378
        $region50: #{tpu_custom_call.1} parent=11 // pred_check_branch
          %608 = sbr.rel (%p606) target = $region52
        $region51: #{tpu_custom_call.1} parent=11 // pred_region
          %s610 = ssub.s32 16, 16
          %611 = vsyncadd [#allocation16], %s610
          %s613 = sshll.u32 [#allocation15], 4
          %s614 = int_to_ptr.vmem [resolvable:$true] %s613
          %616 = dma.hbm_to_vmem [thread:$0]  %s13, 16, %s614, [#allocation16]
        $region52: #{tpu_custom_call.1} parent=11 // pred_fallthru
          _
        // Predicated region
        $region53: #{tpu_custom_call.1} parent=11 // pred_check
          %p617 = pneg %p399
        $region54: #{tpu_custom_call.1} parent=11 // pred_check_branch
          %619 = sbr.rel (%p617) target = $region56
        $region55: #{tpu_custom_call.1} parent=11 // pred_region
          _
        $region56: #{tpu_custom_call.1} parent=11 // pred_fallthru
          _
        // Predicated region
        $region57: #{tpu_custom_call.1} parent=11 // pred_check
          %p620 = pneg %p420
        $region58: #{tpu_custom_call.1} parent=11 // pred_check_branch
          %622 = sbr.rel (%p620) target = $region60
        $region59: #{tpu_custom_call.1} parent=11 // pred_region
          _
        $region60: #{tpu_custom_call.1} parent=11 // pred_fallthru
          _
        // Predicated region
        $region61: #{tpu_custom_call.1} parent=11 // pred_check
          %p623 = pneg %p441
        $region62: #{tpu_custom_call.1} parent=11 // pred_check_branch
          %625 = sbr.rel (%p623) target = $region64
        $region63: #{tpu_custom_call.1} parent=11 // pred_region
          _
        $region64: #{tpu_custom_call.1} parent=11 // pred_fallthru
          _
        // Predicated region
        $region65: #{tpu_custom_call.1} parent=11 // pred_check
          %p626 = pneg %p462
        $region66: #{tpu_custom_call.1} parent=11 // pred_check_branch
          %628 = sbr.rel (%p626) target = $region68
        $region67: #{tpu_custom_call.1} parent=11 // pred_region
          _
        $region68: #{tpu_custom_call.1} parent=11 // pred_fallthru
          _
        // Predicated region
        $region69: #{tpu_custom_call.1} parent=11 // pred_check
          %p629 = pneg %p483
        $region70: #{tpu_custom_call.1} parent=11 // pred_check_branch
          %631 = sbr.rel (%p629) target = $region72
        $region71: #{tpu_custom_call.1} parent=11 // pred_region
          _
        $region72: #{tpu_custom_call.1} parent=11 // pred_fallthru
          _
        // Predicated region
        $region73: #{tpu_custom_call.1} parent=11 // pred_check
          %p632 = pneg %p504
        $region74: #{tpu_custom_call.1} parent=11 // pred_check_branch
          %634 = sbr.rel (%p632) target = $region76
        $region75: #{tpu_custom_call.1} parent=11 // pred_region
          _
        $region76: #{tpu_custom_call.1} parent=11 // pred_fallthru
          _
      $region12: #{tpu_custom_call.1} parent=5 // pred_fallthru
        _
      %p635 = scmp.lt.s32.totalorder %s35, 2
      // Predicated region
      $region77: #{tpu_custom_call.1} parent=5 // pred_check
        %p636 = pneg %p635
      $region78: #{tpu_custom_call.1} parent=5 // pred_check_branch
        %638 = sbr.rel (%p636) target = $region80
      $region79: #{tpu_custom_call.1} parent=5 // pred_region
        // Predicated region
        $region81: #{tpu_custom_call.1} parent=79 // pred_check
          %p639 = pneg %p76
        $region82: #{tpu_custom_call.1} parent=79 // pred_check_branch
          %641 = sbr.rel (%p639) target = $region84
        $region83: #{tpu_custom_call.1} parent=79 // pred_region
          %p642 = scmp.lt.s32.totalorder %s42, 1
          %s643 = scalar_select %p642, %s42, 1
          %p644 = scmp.lt.s32.totalorder %s43, 0
          %s645 = scalar_select %p644, %s43, 0
          %s646 = sadd.s32 %s645, %s643
          %s647 = smul.addr %s646, 8
          %s648 = scalar_lea.vmem %s0, %s647
        $region84: #{tpu_custom_call.1} parent=79 // pred_fallthru
          _
        // Predicated region
        $region85: #{tpu_custom_call.1} parent=79 // pred_check
          %p649 = pneg %p104
        $region86: #{tpu_custom_call.1} parent=79 // pred_check_branch
          %651 = sbr.rel (%p649) target = $region88
        $region87: #{tpu_custom_call.1} parent=79 // pred_region
          %p652 = scmp.lt.s32.totalorder %s42, 1
          %s653 = scalar_select %p652, %s42, 1
          %p654 = scmp.lt.s32.totalorder %s44, 0
          %s655 = scalar_select %p654, %s44, 0
          %s656 = sadd.s32 %s655, %s653
          %s657 = smul.addr %s656, 8
          %s658 = scalar_lea.vmem %s1, %s657
        $region88: #{tpu_custom_call.1} parent=79 // pred_fallthru
          _
        // Predicated region
        $region89: #{tpu_custom_call.1} parent=79 // pred_check
          %p659 = pneg %p132
        $region90: #{tpu_custom_call.1} parent=79 // pred_check_branch
          %661 = sbr.rel (%p659) target = $region92
        $region91: #{tpu_custom_call.1} parent=79 // pred_region
          %p662 = scmp.lt.s32.totalorder %s42, 1
          %s663 = scalar_select %p662, %s42, 1
          %p664 = scmp.lt.s32.totalorder %s44, 0
          %s665 = scalar_select %p664, %s44, 0
          %s666 = sadd.s32 %s665, %s663
          %s667 = smul.addr %s666, 8
          %s668 = scalar_lea.vmem %s2, %s667
        $region92: #{tpu_custom_call.1} parent=79 // pred_fallthru
          _
        // Predicated region
        $region93: #{tpu_custom_call.1} parent=79 // pred_check
          %p669 = pneg %p162
        $region94: #{tpu_custom_call.1} parent=79 // pred_check_branch
          %671 = sbr.rel (%p669) target = $region96
        $region95: #{tpu_custom_call.1} parent=79 // pred_region
          %s672 = sand.u32 %s152, 1
          %s673 = scalar_lea.sflag [#allocation7], %s672
          %s674 = sand.u32 %s152, 1
          %s675 = smul.addr %s674, 4
          %s676 = scalar_lea.vmem [#allocation6], %s675
          %s678 = ssub.s32 64, 64
          %679 = vsyncadd %s673, %s678
          %s680 = sadd.s32 %s44, %s43
          %s681 = sadd.s32 %s680, %s42
          %s682 = smul.addr %s681, 64
          %s683 = scalar_lea.hbm %s3, %s682
          %s685 = sshll.u32 %s676, 4
          %s686 = int_to_ptr.vmem [resolvable:$true] %s685
          %688 = dma.hbm_to_vmem [thread:$0]  %s683, 64, %s686, %s673
        $region96: #{tpu_custom_call.1} parent=79 // pred_fallthru
          _
      $region80: #{tpu_custom_call.1} parent=5 // pred_fallthru
        _
      %p689 = scmp.le.s32.totalorder 1, %s35
      %p690 = scmp.lt.s32.totalorder %s35, 3
      %p691 = pnand %p689, %p690
      %p692 = pneg %p691
      // Predicated region
      $region97: #{tpu_custom_call.1} parent=5 // pred_check
        _
      $region98: #{tpu_custom_call.1} parent=5 // pred_check_branch
        %694 = sbr.rel (%p691) target = $region100
      $region99: #{tpu_custom_call.1} parent=5 // pred_region
        %s695 = ssub.s32 %s35, 1
        %s696 = sand.u32 %s155, 1
        %s697 = scalar_lea.sflag [#allocation7], %s696
        %s698 = sand.u32 %s155, 1
        %s699 = smul.addr %s698, 4
        %s700 = scalar_lea.vmem [#allocation6], %s699
        // Predicated region
        $region101: #{tpu_custom_call.1} parent=99 // pred_check
          %p701 = pneg %p168
        $region102: #{tpu_custom_call.1} parent=99 // pred_check_branch
          %703 = sbr.rel (%p701) target = $region104
        $region103: #{tpu_custom_call.1} parent=99 // pred_region
          %704 = dma.done %s697, 64
        $region104: #{tpu_custom_call.1} parent=99 // pred_fallthru
          _
        // Predicated region
        $region105: #{tpu_custom_call.1} parent=99 // pred_check
          %p705 = pneg %p252
        $region106: #{tpu_custom_call.1} parent=99 // pred_check_branch
          %707 = sbr.rel (%p705) target = $region108
        $region107: #{tpu_custom_call.1} parent=99 // pred_region
          %708 = dma.done [#allocation10], 16
        $region108: #{tpu_custom_call.1} parent=99 // pred_fallthru
          _
        // Predicated region
        $region109: #{tpu_custom_call.1} parent=99 // pred_check
          %p709 = pneg %p294
        $region110: #{tpu_custom_call.1} parent=99 // pred_check_branch
          %711 = sbr.rel (%p709) target = $region112
        $region111: #{tpu_custom_call.1} parent=99 // pred_region
          %712 = dma.done [#allocation10], 16
        $region112: #{tpu_custom_call.1} parent=99 // pred_fallthru
          _
        // Predicated region
        $region113: #{tpu_custom_call.1} parent=99 // pred_check
          %p713 = pneg %p336
        $region114: #{tpu_custom_call.1} parent=99 // pred_check_branch
          %715 = sbr.rel (%p713) target = $region116
        $region115: #{tpu_custom_call.1} parent=99 // pred_region
          %716 = dma.done [#allocation13], 16
        $region116: #{tpu_custom_call.1} parent=99 // pred_fallthru
          _
        // Predicated region
        $region117: #{tpu_custom_call.1} parent=99 // pred_check
          %p717 = pneg %p357
        $region118: #{tpu_custom_call.1} parent=99 // pred_check_branch
          %719 = sbr.rel (%p717) target = $region120
        $region119: #{tpu_custom_call.1} parent=99 // pred_region
          %720 = dma.done [#allocation13], 16
        $region120: #{tpu_custom_call.1} parent=99 // pred_fallthru
          _
        // Predicated region
        $region121: #{tpu_custom_call.1} parent=99 // pred_check
          %p721 = pneg %p378
        $region122: #{tpu_custom_call.1} parent=99 // pred_check_branch
          %723 = sbr.rel (%p721) target = $region124
        $region123: #{tpu_custom_call.1} parent=99 // pred_region
          %724 = dma.done [#allocation16], 16
        $region124: #{tpu_custom_call.1} parent=99 // pred_fallthru
          _
        %p725 = scmp.lt.s32.totalorder %s45, 1
        %s726 = scalar_select %p725, %s45, 1
        %p727 = scmp.lt.s32.totalorder %s46, 0
        %s728 = scalar_select %p727, %s46, 0
        %s729 = sadd.s32 %s728, %s726
        %s730 = smul.addr %s729, 8
        %s731 = scalar_lea.vmem %s0, %s730
        %p732 = pneg %p82
        %p733 = pneg %p79
        %p734 = scmp.lt.s32.totalorder %s45, 1
        %s735 = scalar_select %p734, %s45, 1
        %p736 = scmp.lt.s32.totalorder %s47, 0
        %s737 = scalar_select %p736, %s47, 0
        %s738 = sadd.s32 %s737, %s735
        %s739 = smul.addr %s738, 8
        %s740 = scalar_lea.vmem %s1, %s739
        %p741 = pneg %p110
        %p742 = pneg %p107
        %p743 = scmp.lt.s32.totalorder %s45, 1
        %s744 = scalar_select %p743, %s45, 1
        %p745 = scmp.lt.s32.totalorder %s47, 0
        %s746 = scalar_select %p745, %s47, 0
        %s747 = sadd.s32 %s746, %s744
        %s748 = smul.addr %s747, 8
        %s749 = scalar_lea.vmem %s2, %s748
        %p750 = pneg %p138
        %p751 = pneg %p135
        %s752 = sand.u32 %s155, 1
        %s753 = scalar_lea.sflag [#allocation7], %s752
        %s754 = sand.u32 %s155, 1
        %s755 = smul.addr %s754, 4
        %s756 = scalar_lea.vmem [#allocation6], %s755
        %p757 = pneg %p168
        %p758 = pneg %p165
        %p759 = pneg %p189
        %p760 = pneg %p186
        %p761 = pneg %p210
        %p762 = pneg %p207
        %p763 = pneg %p231
        %p764 = pneg %p228
        %p765 = pneg %p252
        %p766 = pneg %p249
        %p767 = pneg %p273
        %p768 = pneg %p270
        %p769 = pneg %p294
        %p770 = pneg %p291
        %p771 = pneg %p315
        %p772 = pneg %p312
        %p773 = pneg %p336
        %p774 = pneg %p333
        %p775 = pneg %p357
        %p776 = pneg %p354
        %p777 = pneg %p378
        %p778 = pneg %p375
        %p779 = pneg %p399
        %p780 = pneg %p396
        %p781 = pneg %p420
        %p782 = pneg %p417
        %p783 = pneg %p441
        %p784 = pneg %p438
        %p785 = pneg %p462
        %p786 = pneg %p459
        %p787 = pneg %p483
        %p788 = pneg %p480
        %p789 = pneg %p504
        %p790 = pneg %p501
        %p791 = pneg %p532
        %p792 = pneg %p529
        %s793 = sand.u32 %s519, 1
        %s794 = scalar_lea.sflag [#allocation8], %s793
        %s795 = sand.u32 %s519, 1
        %s796 = smul.addr %s795, 8
        %s797 = scalar_lea.vmem [#allocation17], %s796
        %p798 = scmp.lt.s32.totalorder %s45, 1
        %s799 = scalar_select %p798, %s45, 1
        %p800 = scmp.lt.s32.totalorder %s46, 0
        %s801 = scalar_select %p800, %s46, 0
        %s802 = sadd.s32 %s801, %s799
        %s803 = smul.addr %s802, 8
        %s804 = scalar_lea.vmem %s0, %s803
        %p805 = scmp.lt.s32.totalorder %s45, 1
        %s806 = scalar_select %p805, %s45, 1
        %p807 = scmp.lt.s32.totalorder %s47, 0
        %s808 = scalar_select %p807, %s47, 0
        %s809 = sadd.s32 %s808, %s806
        %s810 = smul.addr %s809, 8
        %s811 = scalar_lea.vmem %s1, %s810
        %p812 = scmp.lt.s32.totalorder %s45, 1
        %s813 = scalar_select %p812, %s45, 1
        %p814 = scmp.lt.s32.totalorder %s47, 0
        %s815 = scalar_select %p814, %s47, 0
        %s816 = sadd.s32 %s815, %s813
        %s817 = smul.addr %s816, 8
        %s818 = scalar_lea.vmem %s2, %s817
        %p820 = scmp.eq.s32.totalorder %s47, 0
        // Predicated region
        $region125: #{tpu_custom_call.1} parent=99 // pred_check
          %p821 = pneg %p820
        $region126: #{tpu_custom_call.1} parent=99 // pred_check_branch
          %823 = sbr.rel (%p821) target = $region128
        $region127: #{tpu_custom_call.1} parent=99 // pred_region
          %v824 = vld [vmem:[%s804] sm:$0xff]
          %v825 = vpack.c.bf16 %v824, %v824
          %v826 = vld [vmem:[%s4] sm:$0xf]
          %v827 = vld [vmem:[%s4 + $0x4] sm:$0xf]
          %v828 = vld [vmem:[%s4 + $0x8] sm:$0xf]
          %v829 = vld [vmem:[%s4 + $0xc] sm:$0xf]
          %v830 = vld [vmem:[%s5] sm:$0x1]
          %v832 = vlaneseq
          %v833 = vshrl.u32 %v832, 7
          %v834 = vsub.s32 0, %v833
          %v835 = vrot.slane %v830, %v834
          %v841 = vunpack.c.l.b16 %v826
          %v842 = vunpack.c.l.b16 %v827
          %v843 = vunpack.c.l.b16 %v828
          %v844 = vunpack.c.l.b16 %v829
          %v845 = vpack.c.b16 %v842, %v841
          %v846 = vpack.c.b16 %v844, %v843
          %vm849 = vcmask 261120
          %v851 = vsel %vm849, %v825, 0
          %853 = vmatprep.subr.bf16.mxu0 0
          %854 = vmatpush1.bf16.msra.mxu0 %v845
          %855 = vmatprep.subr.bf16.mxu0 0
          %856 = vmatpush1.bf16.msra.mxu0 %v846
          %857 = vmatprep.subr.bf16.mxu0 0
          %858 = vmatpush1.bf16.msra.mxu0 0
          %859 = vmatprep.subr.bf16.mxu0 0
          %860 = vmatpush1.bf16.msra.mxu0 0
          %861 = vmatprep.subr.bf16.mxu0 0
          %862 = vmatpush1.bf16.msra.mxu0 0
          %863 = vmatprep.subr.bf16.mxu0 0
          %864 = vmatpush1.bf16.msra.mxu0 0
          %865 = vmatprep.subr.bf16.mxu0 0
          %866 = vmatpush1.bf16.msra.mxu0 0
          %867 = vmatprep.subr.bf16.mxu0 0
          %868 = vmatpush1.bf16.msra.mxu0 0
          %869 = vmatprep.subr.bf16.mxu0 0
          %870 = vmatpush1.bf16.msra.mxu0 0
          %871 = vmatprep.subr.bf16.mxu0 0
          %872 = vmatpush1.bf16.msra.mxu0 0
          %873 = vmatprep.subr.bf16.mxu0 0
          %874 = vmatpush1.bf16.msra.mxu0 0
          %875 = vmatprep.subr.bf16.mxu0 0
          %876 = vmatpush1.bf16.msra.mxu0 0
          %877 = vmatprep.subr.bf16.mxu0 0
          %878 = vmatpush1.bf16.msra.mxu0 0
          %879 = vmatprep.subr.bf16.mxu0 0
          %880 = vmatpush1.bf16.msra.mxu0 0
          %881 = vmatprep.subr.bf16.mxu0 0
          %882 = vmatpush1.bf16.msra.mxu0 0
          %883 = vmatprep.subr.bf16.mxu0 0
          %884 = vmatpush1.bf16.msra.mxu0 0
          %885 = vmatprep.mubr.bf16.mxu0 0
          %886 = vmatmul.mubr.bf16.gmra.mrb[0].mxu0 %v851
          %v887 = vpop.f32.mrb[0].mxu0
          %v888 = vadd.f32 %v835, %v887
          %v889 = vpop.f32.mrb[0].mxu0
          %v890 = vpop.f32.mrb[0].mxu0
          %v891 = vpop.f32.mrb[0].mxu0
          %892 = vdwg.mxu0
          %v893 = vmul.f32 %v888, 0.35355338
          %v894 = vpack.c.bf16 %v893, %v893
          %vm895 = vcmask 257024
          %896 = vst.msk [vmem:[#allocation2] sm:$0xf] %vm895, %v894
          %vm897 = vcmask 7168
          %898 = vst.msk [vmem:[#allocation3] sm:$0xff] %vm897, -1e+30
          %899 = vst.msk [vmem:[#allocation3 + $0x8] sm:$0xff] %vm897, -1e+30
          %900 = vst.msk [vmem:[#allocation3 + $0x10] sm:$0xff] %vm897, -1e+30
          %901 = vst.msk [vmem:[#allocation3 + $0x18] sm:$0xff] %vm897, -1e+30
          %902 = vst.msk [vmem:[#allocation4] sm:$0xff] %vm897, 0.0
          %903 = vst.msk [vmem:[#allocation4 + $0x8] sm:$0xff] %vm897, 0.0
          %904 = vst.msk [vmem:[#allocation4 + $0x10] sm:$0xff] %vm897, 0.0
          %905 = vst.msk [vmem:[#allocation4 + $0x18] sm:$0xff] %vm897, 0.0
          %906 = vst.msk [vmem:[#allocation5] sm:$0xff] %vm849, 0.0
        $region128: #{tpu_custom_call.1} parent=99 // pred_fallthru
          _
        %v907 = vld [vmem:[%s811] sm:$0xff]
        %v908 = vpack.c.bf16 %v907, %v907
        %v909 = vld [vmem:[%s818] sm:$0xff]
        %v910 = vpack.c.bf16 %v909, %v909
        %v911 = vld [vmem:[%s6] sm:$0xf]
        %v912 = vld [vmem:[%s6 + $0x4] sm:$0xf]
        %v913 = vld [vmem:[%s6 + $0x8] sm:$0xf]
        %v914 = vld [vmem:[%s6 + $0xc] sm:$0xf]
        %v915 = vld [vmem:[#allocation9] sm:$0x1]
        %v917 = vlaneseq
        %v918 = vshrl.u32 %v917, 7
        %v919 = vsub.s32 0, %v918
        %v920 = vrot.slane %v915, %v919
        %v926 = vunpack.c.l.b16 %v911
        %v927 = vunpack.c.l.b16 %v912
        %v928 = vunpack.c.l.b16 %v913
        %v929 = vunpack.c.l.b16 %v914
        %v930 = vpack.c.b16 %v927, %v926
        %v931 = vpack.c.b16 %v929, %v928
        %vm934 = vcmask 261120
        %v936 = vsel %vm934, %v908, 0
        %938 = vmatprep.subr.bf16.mxu0 0
        %939 = vmatpush1.bf16.msra.mxu0 %v930
        %940 = vmatprep.subr.bf16.mxu0 0
        %941 = vmatpush1.bf16.msra.mxu0 %v931
        %942 = vmatprep.subr.bf16.mxu0 0
        %943 = vmatpush1.bf16.msra.mxu0 0
        %944 = vmatprep.subr.bf16.mxu0 0
        %945 = vmatpush1.bf16.msra.mxu0 0
        %946 = vmatprep.subr.bf16.mxu0 0
        %947 = vmatpush1.bf16.msra.mxu0 0
        %948 = vmatprep.subr.bf16.mxu0 0
        %949 = vmatpush1.bf16.msra.mxu0 0
        %950 = vmatprep.subr.bf16.mxu0 0
        %951 = vmatpush1.bf16.msra.mxu0 0
        %952 = vmatprep.subr.bf16.mxu0 0
        %953 = vmatpush1.bf16.msra.mxu0 0
        %954 = vmatprep.subr.bf16.mxu0 0
        %955 = vmatpush1.bf16.msra.mxu0 0
        %956 = vmatprep.subr.bf16.mxu0 0
        %957 = vmatpush1.bf16.msra.mxu0 0
        %958 = vmatprep.subr.bf16.mxu0 0
        %959 = vmatpush1.bf16.msra.mxu0 0
        %960 = vmatprep.subr.bf16.mxu0 0
        %961 = vmatpush1.bf16.msra.mxu0 0
        %962 = vmatprep.subr.bf16.mxu0 0
        %963 = vmatpush1.bf16.msra.mxu0 0
        %964 = vmatprep.subr.bf16.mxu0 0
        %965 = vmatpush1.bf16.msra.mxu0 0
        %966 = vmatprep.subr.bf16.mxu0 0
        %967 = vmatpush1.bf16.msra.mxu0 0
        %968 = vmatprep.subr.bf16.mxu0 0
        %969 = vmatpush1.bf16.msra.mxu0 0
        %970 = vmatprep.mubr.bf16.mxu0 0
        %971 = vmatmul.mubr.bf16.gmra.mrb[0].mxu0 %v936
        %v972 = vpop.f32.mrb[0].mxu0
        %v973 = vadd.f32 %v920, %v972
        %v974 = vpop.f32.mrb[0].mxu0
        %v975 = vpop.f32.mrb[0].mxu0
        %v976 = vpop.f32.mrb[0].mxu0
        %977 = vdwg.mxu0
        %v978 = vpack.c.bf16 %v973, %v973
        %v979 = vld [vmem:[%s8] sm:$0xf]
        %v980 = vld [vmem:[%s8 + $0x4] sm:$0xf]
        %v981 = vld [vmem:[%s8 + $0x8] sm:$0xf]
        %v982 = vld [vmem:[%s8 + $0xc] sm:$0xf]
        %v983 = vld [vmem:[#allocation11] sm:$0x1]
        %v985 = vlaneseq
        %v986 = vshrl.u32 %v985, 7
        %v987 = vsub.s32 0, %v986
        %v988 = vrot.slane %v983, %v987
        %v994 = vunpack.c.l.b16 %v979
        %v995 = vunpack.c.l.b16 %v980
        %v996 = vunpack.c.l.b16 %v981
        %v997 = vunpack.c.l.b16 %v982
        %v998 = vpack.c.b16 %v995, %v994
        %v999 = vpack.c.b16 %v997, %v996
        %v1003 = vsel %vm934, %v910, 0
        %1005 = vmatprep.subr.bf16.mxu0 0
        %1006 = vmatpush1.bf16.msra.mxu0 %v998
        %1007 = vmatprep.subr.bf16.mxu0 0
        %1008 = vmatpush1.bf16.msra.mxu0 %v999
        %1009 = vmatprep.subr.bf16.mxu0 0
        %1010 = vmatpush1.bf16.msra.mxu0 0
        %1011 = vmatprep.subr.bf16.mxu0 0
        %1012 = vmatpush1.bf16.msra.mxu0 0
        %1013 = vmatprep.subr.bf16.mxu0 0
        %1014 = vmatpush1.bf16.msra.mxu0 0
        %1015 = vmatprep.subr.bf16.mxu0 0
        %1016 = vmatpush1.bf16.msra.mxu0 0
        %1017 = vmatprep.subr.bf16.mxu0 0
        %1018 = vmatpush1.bf16.msra.mxu0 0
        %1019 = vmatprep.subr.bf16.mxu0 0
        %1020 = vmatpush1.bf16.msra.mxu0 0
        %1021 = vmatprep.subr.bf16.mxu0 0
        %1022 = vmatpush1.bf16.msra.mxu0 0
        %1023 = vmatprep.subr.bf16.mxu0 0
        %1024 = vmatpush1.bf16.msra.mxu0 0
        %1025 = vmatprep.subr.bf16.mxu0 0
        %1026 = vmatpush1.bf16.msra.mxu0 0
        %1027 = vmatprep.subr.bf16.mxu0 0
        %1028 = vmatpush1.bf16.msra.mxu0 0
        %1029 = vmatprep.subr.bf16.mxu0 0
        %1030 = vmatpush1.bf16.msra.mxu0 0
        %1031 = vmatprep.subr.bf16.mxu0 0
        %1032 = vmatpush1.bf16.msra.mxu0 0
        %1033 = vmatprep.subr.bf16.mxu0 0
        %1034 = vmatpush1.bf16.msra.mxu0 0
        %1035 = vmatprep.subr.bf16.mxu0 0
        %1036 = vmatpush1.bf16.msra.mxu0 0
        %1037 = vmatprep.mubr.bf16.mxu0 0
        %1038 = vmatmul.mubr.bf16.gmra.mrb[0].mxu0 %v1003
        %v1039 = vpop.f32.mrb[0].mxu0
        %v1040 = vadd.f32 %v988, %v1039
        %v1041 = vpop.f32.mrb[0].mxu0
        %v1042 = vpop.f32.mrb[0].mxu0
        %v1043 = vpop.f32.mrb[0].mxu0
        %1044 = vdwg.mxu0
        %v1045 = vpack.c.bf16 %v1040, %v1040
        %v1046 = vld [vmem:[%s700] sm:$0xf]
        %v1047 = vunpack.c.l.bf16 %v1046
        %v1048 = vld [vmem:[#allocation2] sm:$0xf]
        %vm1049 = vcmask 64512
        %v1051 = vsel %vm1049, %v1048, 0
        %v1054 = vsel %vm1049, %v978, 0
        %1056 = vmatprep.subr.bf16.mxu0 0
        %1057 = vmatpush1.bf16.xpose.msra.mxu0 %v1054
        %1058 = vmatprep.subr.bf16.mxu0 0
        %1059 = vmatpush1.bf16.xpose.msra.mxu0 0
        %1060 = vmatprep.subr.bf16.mxu0 0
        %1061 = vmatpush1.bf16.xpose.msra.mxu0 0
        %1062 = vmatprep.subr.bf16.mxu0 0
        %1063 = vmatpush1.bf16.xpose.msra.mxu0 0
        %1064 = vmatprep.subr.bf16.mxu0 0
        %1065 = vmatpush1.bf16.xpose.msra.mxu0 0
        %1066 = vmatprep.subr.bf16.mxu0 0
        %1067 = vmatpush1.bf16.xpose.msra.mxu0 0
        %1068 = vmatprep.subr.bf16.mxu0 0
        %1069 = vmatpush1.bf16.xpose.msra.mxu0 0
        %1070 = vmatprep.subr.bf16.mxu0 0
        %1071 = vmatpush1.bf16.xpose.msra.mxu0 0
        %1072 = vmatprep.subr.bf16.mxu0 0
        %1073 = vmatpush1.bf16.xpose.msra.mxu0 0
        %1074 = vmatprep.subr.bf16.mxu0 0
        %1075 = vmatpush1.bf16.xpose.msra.mxu0 0
        %1076 = vmatprep.subr.bf16.mxu0 0
        %1077 = vmatpush1.bf16.xpose.msra.mxu0 0
        %1078 = vmatprep.subr.bf16.mxu0 0
        %1079 = vmatpush1.bf16.xpose.msra.mxu0 0
        %1080 = vmatprep.subr.bf16.mxu0 0
        %1081 = vmatpush1.bf16.xpose.msra.mxu0 0
        %1082 = vmatprep.subr.bf16.mxu0 0
        %1083 = vmatpush1.bf16.xpose.msra.mxu0 0
        %1084 = vmatprep.subr.bf16.mxu0 0
        %1085 = vmatpush1.bf16.xpose.msra.mxu0 0
        %1086 = vmatprep.subr.bf16.mxu0 0
        %1087 = vmatpush1.bf16.xpose.msra.mxu0 0
        %1088 = vmatprep.mubr.bf16.mxu0 0
        %1089 = vmatmul.mubr.bf16.gmra.mrb[0].mxu0 %v1051
        %v1090 = vpop.f32.mrb[0].mxu0
        %v1091 = vadd.f32 %v1047, %v1090
        %v1092 = vpop.f32.mrb[0].mxu0
        %v1093 = vpop.f32.mrb[0].mxu0
        %v1094 = vpop.f32.mrb[0].mxu0
        %1095 = vdwg.mxu0
        %v1096 = vld [vmem:[#allocation3] sm:$0xff]
        %v1097 = vsel %vm1049, %v1091, -inf
        %1098 = vmax.xlane.f32.xlu0 %v1097
        %v1099 = vpop.xlane.xlu0 %1098
        %v1100 = vmax.f32 %v1096, %v1099
        %v1101 = vsub.f32 %v1096, %v1100
        %v1102 = vmul.f32 %v1101, 1.442695
        %v1103 = vpow.pop %v1102
        %1105 = vset.pattern.permute.xlu0 0
        %1106 = vperm.xlu0 %1105, %v1100
        %v1107 = vpop.permute.xlu0 %1106
        %v1109 = vsub.f32 %v1091, %v1107
        %v1110 = vmul.f32 %v1109, 1.442695
        %v1111 = vpow.pop %v1110
        %v1112 = vld [vmem:[#allocation4] sm:$0xff]
        %v1113 = vmul.f32 %v1103, %v1112
        %v1114 = vsel %vm1049, %v1111, 0.0
        %1115 = vadd.xlane.f32.xlu0 %v1114
        %v1116 = vpop.xlane.xlu0 %1115
        %v1117 = vadd.f32 %v1113, %v1116
        %vm1118 = vcmask 7168
        %1119 = vst.msk [vmem:[#allocation4] sm:$0xff] %vm1118, %v1117
        %v1120 = vld [vmem:[#allocation5] sm:$0xff]
        %1122 = vset.pattern.permute.xlu0 0
        %1123 = vperm.xlu0 %1122, %v1103
        %v1124 = vpop.permute.xlu0 %1123
        %v1126 = vmul.f32 %v1124, %v1120
        %v1127 = vpack.c.bf16 %v1111, %v1111
        %v1129 = vsel %vm1049, %v1127, 0
        %vm1131 = vcmask 1043456
        %v1133 = vsel %vm1131, %v1045, 0
        %1135 = vmatprep.subr.bf16.mxu0 0
        %1136 = vmatpush1.bf16.msra.mxu0 %v1133
        %1137 = vmatprep.subr.bf16.mxu0 0
        %1138 = vmatpush1.bf16.msra.mxu0 0
        %1139 = vmatprep.subr.bf16.mxu0 0
        %1140 = vmatpush1.bf16.msra.mxu0 0
        %1141 = vmatprep.subr.bf16.mxu0 0
        %1142 = vmatpush1.bf16.msra.mxu0 0
        %1143 = vmatprep.subr.bf16.mxu0 0
        %1144 = vmatpush1.bf16.msra.mxu0 0
        %1145 = vmatprep.subr.bf16.mxu0 0
        %1146 = vmatpush1.bf16.msra.mxu0 0
        %1147 = vmatprep.subr.bf16.mxu0 0
        %1148 = vmatpush1.bf16.msra.mxu0 0
        %1149 = vmatprep.subr.bf16.mxu0 0
        %1150 = vmatpush1.bf16.msra.mxu0 0
        %1151 = vmatprep.subr.bf16.mxu0 0
        %1152 = vmatpush1.bf16.msra.mxu0 0
        %1153 = vmatprep.subr.bf16.mxu0 0
        %1154 = vmatpush1.bf16.msra.mxu0 0
        %1155 = vmatprep.subr.bf16.mxu0 0
        %1156 = vmatpush1.bf16.msra.mxu0 0
        %1157 = vmatprep.subr.bf16.mxu0 0
        %1158 = vmatpush1.bf16.msra.mxu0 0
        %1159 = vmatprep.subr.bf16.mxu0 0
        %1160 = vmatpush1.bf16.msra.mxu0 0
        %1161 = vmatprep.subr.bf16.mxu0 0
        %1162 = vmatpush1.bf16.msra.mxu0 0
        %1163 = vmatprep.subr.bf16.mxu0 0
        %1164 = vmatpush1.bf16.msra.mxu0 0
        %1165 = vmatprep.subr.bf16.mxu0 0
        %1166 = vmatpush1.bf16.msra.mxu0 0
        %1167 = vmatprep.mubr.bf16.mxu0 0
        %1168 = vmatmul.mubr.bf16.gmra.mrb[0].mxu0 %v1129
        %v1169 = vpop.f32.mrb[0].mxu0
        %v1170 = vadd.f32 0.0, %v1169
        %v1171 = vpop.f32.mrb[0].mxu0
        %v1172 = vpop.f32.mrb[0].mxu0
        %v1173 = vpop.f32.mrb[0].mxu0
        %1174 = vdwg.mxu0
        %v1175 = vadd.f32 %v1126, %v1170
        %1176 = vst.msk [vmem:[#allocation5] sm:$0xff] %vm1049, %v1175
        %1177 = vst.msk [vmem:[#allocation3] sm:$0xff] %vm1118, %v1100
        %v1178 = vld [vmem:[#allocation2] sm:$0xf]
        %v1180 = vunpack.c.l.b16 %v1178
        %v1181 = vpack.c.b16 %v1180, %v1180
        %1182 = vrot.lane.b32.xlu0 %v1181, 120
        %v1183 = vpop.permute.xlu0 %1182
        %1185 = vrot.lane.b32.xlu0 %v978, 120
        %v1186 = vpop.permute.xlu0 %1185
        %v1188 = vsel %vm1049, %v1183, 0
        %v1191 = vsel %vm1049, %v1186, 0
        %1193 = vmatprep.subr.bf16.mxu0 0
        %1194 = vmatpush1.bf16.xpose.msra.mxu0 %v1191
        %1195 = vmatprep.subr.bf16.mxu0 0
        %1196 = vmatpush1.bf16.xpose.msra.mxu0 0
        %1197 = vmatprep.subr.bf16.mxu0 0
        %1198 = vmatpush1.bf16.xpose.msra.mxu0 0
        %1199 = vmatprep.subr.bf16.mxu0 0
        %1200 = vmatpush1.bf16.xpose.msra.mxu0 0
        %1201 = vmatprep.subr.bf16.mxu0 0
        %1202 = vmatpush1.bf16.xpose.msra.mxu0 0
        %1203 = vmatprep.subr.bf16.mxu0 0
        %1204 = vmatpush1.bf16.xpose.msra.mxu0 0
        %1205 = vmatprep.subr.bf16.mxu0 0
        %1206 = vmatpush1.bf16.xpose.msra.mxu0 0
        %1207 = vmatprep.subr.bf16.mxu0 0
        %1208 = vmatpush1.bf16.xpose.msra.mxu0 0
        %1209 = vmatprep.subr.bf16.mxu0 0
        %1210 = vmatpush1.bf16.xpose.msra.mxu0 0
        %1211 = vmatprep.subr.bf16.mxu0 0
        %1212 = vmatpush1.bf16.xpose.msra.mxu0 0
        %1213 = vmatprep.subr.bf16.mxu0 0
        %1214 = vmatpush1.bf16.xpose.msra.mxu0 0
        %1215 = vmatprep.subr.bf16.mxu0 0
        %1216 = vmatpush1.bf16.xpose.msra.mxu0 0
        %1217 = vmatprep.subr.bf16.mxu0 0
        %1218 = vmatpush1.bf16.xpose.msra.mxu0 0
        %1219 = vmatprep.subr.bf16.mxu0 0
        %1220 = vmatpush1.bf16.xpose.msra.mxu0 0
        %1221 = vmatprep.subr.bf16.mxu0 0
        %1222 = vmatpush1.bf16.xpose.msra.mxu0 0
        %1223 = vmatprep.subr.bf16.mxu0 0
        %1224 = vmatpush1.bf16.xpose.msra.mxu0 0
        %1225 = vmatprep.mubr.bf16.mxu0 0
        %1226 = vmatmul.mubr.bf16.gmra.mrb[0].mxu0 %v1188
        %v1227 = vpop.f32.mrb[0].mxu0
        %v1228 = vadd.f32 %v1047, %v1227
        %v1229 = vpop.f32.mrb[0].mxu0
        %v1230 = vpop.f32.mrb[0].mxu0
        %v1231 = vpop.f32.mrb[0].mxu0
        %1232 = vdwg.mxu0
        %s1233 = scalar_lea.vmem [#allocation3], 8
        %v1234 = vld [vmem:[%s1233] sm:$0xff]
        %v1235 = vsel %vm1049, %v1228, -inf
        %1236 = vmax.xlane.f32.xlu0 %v1235
        %v1237 = vpop.xlane.xlu0 %1236
        %v1238 = vmax.f32 %v1234, %v1237
        %v1239 = vsub.f32 %v1234, %v1238
        %v1240 = vmul.f32 %v1239, 1.442695
        %v1241 = vpow.pop %v1240
        %1243 = vset.pattern.permute.xlu0 0
        %1244 = vperm.xlu0 %1243, %v1238
        %v1245 = vpop.permute.xlu0 %1244
        %v1247 = vsub.f32 %v1228, %v1245
        %v1248 = vmul.f32 %v1247, 1.442695
        %v1249 = vpow.pop %v1248
        %s1250 = scalar_lea.vmem [#allocation4], 8
        %v1251 = vld [vmem:[%s1250] sm:$0xff]
        %v1252 = vmul.f32 %v1241, %v1251
        %v1253 = vsel %vm1049, %v1249, 0.0
        %1254 = vadd.xlane.f32.xlu0 %v1253
        %v1255 = vpop.xlane.xlu0 %1254
        %v1256 = vadd.f32 %v1252, %v1255
        %1257 = vst.msk [vmem:[%s1250] sm:$0xff] %vm1118, %v1256
        %v1258 = vld [vmem:[#allocation5] sm:$0xff]
        %1260 = vset.pattern.permute.xlu0 0
        %1261 = vperm.xlu0 %1260, %v1241
        %v1262 = vpop.permute.xlu0 %1261
        %v1264 = vmul.f32 %v1262, %v1258
        %v1265 = vpack.c.bf16 %v1249, %v1249
        %1267 = vrot.lane.b32.xlu0 %v1045, 120
        %v1268 = vpop.permute.xlu0 %1267
        %v1270 = vsel %vm1049, %v1265, 0
        %v1273 = vsel %vm1131, %v1268, 0
        %1275 = vmatprep.subr.bf16.mxu0 0
        %1276 = vmatpush1.bf16.msra.mxu0 %v1273
        %1277 = vmatprep.subr.bf16.mxu0 0
        %1278 = vmatpush1.bf16.msra.mxu0 0
        %1279 = vmatprep.subr.bf16.mxu0 0
        %1280 = vmatpush1.bf16.msra.mxu0 0
        %1281 = vmatprep.subr.bf16.mxu0 0
        %1282 = vmatpush1.bf16.msra.mxu0 0
        %1283 = vmatprep.subr.bf16.mxu0 0
        %1284 = vmatpush1.bf16.msra.mxu0 0
        %1285 = vmatprep.subr.bf16.mxu0 0
        %1286 = vmatpush1.bf16.msra.mxu0 0
        %1287 = vmatprep.subr.bf16.mxu0 0
        %1288 = vmatpush1.bf16.msra.mxu0 0
        %1289 = vmatprep.subr.bf16.mxu0 0
        %1290 = vmatpush1.bf16.msra.mxu0 0
        %1291 = vmatprep.subr.bf16.mxu0 0
        %1292 = vmatpush1.bf16.msra.mxu0 0
        %1293 = vmatprep.subr.bf16.mxu0 0
        %1294 = vmatpush1.bf16.msra.mxu0 0
        %1295 = vmatprep.subr.bf16.mxu0 0
        %1296 = vmatpush1.bf16.msra.mxu0 0
        %1297 = vmatprep.subr.bf16.mxu0 0
        %1298 = vmatpush1.bf16.msra.mxu0 0
        %1299 = vmatprep.subr.bf16.mxu0 0
        %1300 = vmatpush1.bf16.msra.mxu0 0
        %1301 = vmatprep.subr.bf16.mxu0 0
        %1302 = vmatpush1.bf16.msra.mxu0 0
        %1303 = vmatprep.subr.bf16.mxu0 0
        %1304 = vmatpush1.bf16.msra.mxu0 0
        %1305 = vmatprep.subr.bf16.mxu0 0
        %1306 = vmatpush1.bf16.msra.mxu0 0
        %1307 = vmatprep.mubr.bf16.mxu0 0
        %1308 = vmatmul.mubr.bf16.gmra.mrb[0].mxu0 %v1270
        %v1309 = vpop.f32.mrb[0].mxu0
        %v1310 = vadd.f32 0.0, %v1309
        %v1311 = vpop.f32.mrb[0].mxu0
        %v1312 = vpop.f32.mrb[0].mxu0
        %v1313 = vpop.f32.mrb[0].mxu0
        %1314 = vdwg.mxu0
        %1316 = vrot.lane.b32.xlu0 %v1310, 8
        %v1317 = vpop.permute.xlu0 %1316
        %v1319 = vadd.f32 %v1264, %v1317
        %vm1320 = vcmask 130112
        %1321 = vst.msk [vmem:[#allocation5] sm:$0xff] %vm1320, %v1319
        %1322 = vst.msk [vmem:[%s1233] sm:$0xff] %vm1118, %v1238
        %v1323 = vld [vmem:[#allocation2] sm:$0xf]
        %v1325 = vunpack.c.l.b16 %v1323
        %v1326 = vpack.c.b16 %v1325, %v1325
        %1327 = vrot.lane.b32.xlu0 %v1326, 112
        %v1328 = vpop.permute.xlu0 %1327
        %1329 = vrot.lane.b32.xlu0 %v978, 112
        %v1330 = vpop.permute.xlu0 %1329
        %v1332 = vsel %vm1049, %v1328, 0
        %v1335 = vsel %vm1049, %v1330, 0
        %1337 = vmatprep.subr.bf16.mxu0 0
        %1338 = vmatpush1.bf16.xpose.msra.mxu0 %v1335
        %1339 = vmatprep.subr.bf16.mxu0 0
        %1340 = vmatpush1.bf16.xpose.msra.mxu0 0
        %1341 = vmatprep.subr.bf16.mxu0 0
        %1342 = vmatpush1.bf16.xpose.msra.mxu0 0
        %1343 = vmatprep.subr.bf16.mxu0 0
        %1344 = vmatpush1.bf16.xpose.msra.mxu0 0
        %1345 = vmatprep.subr.bf16.mxu0 0
        %1346 = vmatpush1.bf16.xpose.msra.mxu0 0
        %1347 = vmatprep.subr.bf16.mxu0 0
        %1348 = vmatpush1.bf16.xpose.msra.mxu0 0
        %1349 = vmatprep.subr.bf16.mxu0 0
        %1350 = vmatpush1.bf16.xpose.msra.mxu0 0
        %1351 = vmatprep.subr.bf16.mxu0 0
        %1352 = vmatpush1.bf16.xpose.msra.mxu0 0
        %1353 = vmatprep.subr.bf16.mxu0 0
        %1354 = vmatpush1.bf16.xpose.msra.mxu0 0
        %1355 = vmatprep.subr.bf16.mxu0 0
        %1356 = vmatpush1.bf16.xpose.msra.mxu0 0
        %1357 = vmatprep.subr.bf16.mxu0 0
        %1358 = vmatpush1.bf16.xpose.msra.mxu0 0
        %1359 = vmatprep.subr.bf16.mxu0 0
        %1360 = vmatpush1.bf16.xpose.msra.mxu0 0
        %1361 = vmatprep.subr.bf16.mxu0 0
        %1362 = vmatpush1.bf16.xpose.msra.mxu0 0
        %1363 = vmatprep.subr.bf16.mxu0 0
        %1364 = vmatpush1.bf16.xpose.msra.mxu0 0
        %1365 = vmatprep.subr.bf16.mxu0 0
        %1366 = vmatpush1.bf16.xpose.msra.mxu0 0
        %1367 = vmatprep.subr.bf16.mxu0 0
        %1368 = vmatpush1.bf16.xpose.msra.mxu0 0
        %1369 = vmatprep.mubr.bf16.mxu0 0
        %1370 = vmatmul.mubr.bf16.gmra.mrb[0].mxu0 %v1332
        %v1371 = vpop.f32.mrb[0].mxu0
        %v1372 = vadd.f32 %v1047, %v1371
        %v1373 = vpop.f32.mrb[0].mxu0
        %v1374 = vpop.f32.mrb[0].mxu0
        %v1375 = vpop.f32.mrb[0].mxu0
        %1376 = vdwg.mxu0
        %s1377 = scalar_lea.vmem [#allocation3], 16
        %v1378 = vld [vmem:[%s1377] sm:$0xff]
        %v1379 = vsel %vm1049, %v1372, -inf
        %1380 = vmax.xlane.f32.xlu0 %v1379
        %v1381 = vpop.xlane.xlu0 %1380
        %v1382 = vmax.f32 %v1378, %v1381
        %v1383 = vsub.f32 %v1378, %v1382
        %v1384 = vmul.f32 %v1383, 1.442695
        %v1385 = vpow.pop %v1384
        %1387 = vset.pattern.permute.xlu0 0
        %1388 = vperm.xlu0 %1387, %v1382
        %v1389 = vpop.permute.xlu0 %1388
        %v1391 = vsub.f32 %v1372, %v1389
        %v1392 = vmul.f32 %v1391, 1.442695
        %v1393 = vpow.pop %v1392
        %s1394 = scalar_lea.vmem [#allocation4], 16
        %v1395 = vld [vmem:[%s1394] sm:$0xff]
        %v1396 = vmul.f32 %v1385, %v1395
        %v1397 = vsel %vm1049, %v1393, 0.0
        %1398 = vadd.xlane.f32.xlu0 %v1397
        %v1399 = vpop.xlane.xlu0 %1398
        %v1400 = vadd.f32 %v1396, %v1399
        %1401 = vst.msk [vmem:[%s1394] sm:$0xff] %vm1118, %v1400
        %v1402 = vld [vmem:[#allocation5] sm:$0xff]
        %1404 = vset.pattern.permute.xlu0 0
        %1405 = vperm.xlu0 %1404, %v1385
        %v1406 = vpop.permute.xlu0 %1405
        %v1408 = vmul.f32 %v1406, %v1402
        %v1409 = vpack.c.bf16 %v1393, %v1393
        %1410 = vrot.lane.b32.xlu0 %v1045, 112
        %v1411 = vpop.permute.xlu0 %1410
        %v1413 = vsel %vm1049, %v1409, 0
        %v1416 = vsel %vm1131, %v1411, 0
        %1418 = vmatprep.subr.bf16.mxu0 0
        %1419 = vmatpush1.bf16.msra.mxu0 %v1416
        %1420 = vmatprep.subr.bf16.mxu0 0
        %1421 = vmatpush1.bf16.msra.mxu0 0
        %1422 = vmatprep.subr.bf16.mxu0 0
        %1423 = vmatpush1.bf16.msra.mxu0 0
        %1424 = vmatprep.subr.bf16.mxu0 0
        %1425 = vmatpush1.bf16.msra.mxu0 0
        %1426 = vmatprep.subr.bf16.mxu0 0
        %1427 = vmatpush1.bf16.msra.mxu0 0
        %1428 = vmatprep.subr.bf16.mxu0 0
        %1429 = vmatpush1.bf16.msra.mxu0 0
        %1430 = vmatprep.subr.bf16.mxu0 0
        %1431 = vmatpush1.bf16.msra.mxu0 0
        %1432 = vmatprep.subr.bf16.mxu0 0
        %1433 = vmatpush1.bf16.msra.mxu0 0
        %1434 = vmatprep.subr.bf16.mxu0 0
        %1435 = vmatpush1.bf16.msra.mxu0 0
        %1436 = vmatprep.subr.bf16.mxu0 0
        %1437 = vmatpush1.bf16.msra.mxu0 0
        %1438 = vmatprep.subr.bf16.mxu0 0
        %1439 = vmatpush1.bf16.msra.mxu0 0
        %1440 = vmatprep.subr.bf16.mxu0 0
        %1441 = vmatpush1.bf16.msra.mxu0 0
        %1442 = vmatprep.subr.bf16.mxu0 0
        %1443 = vmatpush1.bf16.msra.mxu0 0
        %1444 = vmatprep.subr.bf16.mxu0 0
        %1445 = vmatpush1.bf16.msra.mxu0 0
        %1446 = vmatprep.subr.bf16.mxu0 0
        %1447 = vmatpush1.bf16.msra.mxu0 0
        %1448 = vmatprep.subr.bf16.mxu0 0
        %1449 = vmatpush1.bf16.msra.mxu0 0
        %1450 = vmatprep.mubr.bf16.mxu0 0
        %1451 = vmatmul.mubr.bf16.gmra.mrb[0].mxu0 %v1413
        %v1452 = vpop.f32.mrb[0].mxu0
        %v1453 = vadd.f32 0.0, %v1452
        %v1454 = vpop.f32.mrb[0].mxu0
        %v1455 = vpop.f32.mrb[0].mxu0
        %v1456 = vpop.f32.mrb[0].mxu0
        %1457 = vdwg.mxu0
        %1459 = vrot.lane.b32.xlu0 %v1453, 16
        %v1460 = vpop.permute.xlu0 %1459
        %v1462 = vadd.f32 %v1408, %v1460
        %vm1463 = vcmask 195712
        %1464 = vst.msk [vmem:[#allocation5] sm:$0xff] %vm1463, %v1462
        %1465 = vst.msk [vmem:[%s1377] sm:$0xff] %vm1118, %v1382
        %v1466 = vld [vmem:[#allocation2] sm:$0xf]
        %v1468 = vunpack.c.l.b16 %v1466
        %v1469 = vpack.c.b16 %v1468, %v1468
        %1470 = vrot.lane.b32.xlu0 %v1469, 104
        %v1471 = vpop.permute.xlu0 %1470
        %1472 = vrot.lane.b32.xlu0 %v978, 104
        %v1473 = vpop.permute.xlu0 %1472
        %v1475 = vsel %vm1049, %v1471, 0
        %v1478 = vsel %vm1049, %v1473, 0
        %1480 = vmatprep.subr.bf16.mxu0 0
        %1481 = vmatpush1.bf16.xpose.msra.mxu0 %v1478
        %1482 = vmatprep.subr.bf16.mxu0 0
        %1483 = vmatpush1.bf16.xpose.msra.mxu0 0
        %1484 = vmatprep.subr.bf16.mxu0 0
        %1485 = vmatpush1.bf16.xpose.msra.mxu0 0
        %1486 = vmatprep.subr.bf16.mxu0 0
        %1487 = vmatpush1.bf16.xpose.msra.mxu0 0
        %1488 = vmatprep.subr.bf16.mxu0 0
        %1489 = vmatpush1.bf16.xpose.msra.mxu0 0
        %1490 = vmatprep.subr.bf16.mxu0 0
        %1491 = vmatpush1.bf16.xpose.msra.mxu0 0
        %1492 = vmatprep.subr.bf16.mxu0 0
        %1493 = vmatpush1.bf16.xpose.msra.mxu0 0
        %1494 = vmatprep.subr.bf16.mxu0 0
        %1495 = vmatpush1.bf16.xpose.msra.mxu0 0
        %1496 = vmatprep.subr.bf16.mxu0 0
        %1497 = vmatpush1.bf16.xpose.msra.mxu0 0
        %1498 = vmatprep.subr.bf16.mxu0 0
        %1499 = vmatpush1.bf16.xpose.msra.mxu0 0
        %1500 = vmatprep.subr.bf16.mxu0 0
        %1501 = vmatpush1.bf16.xpose.msra.mxu0 0
        %1502 = vmatprep.subr.bf16.mxu0 0
        %1503 = vmatpush1.bf16.xpose.msra.mxu0 0
        %1504 = vmatprep.subr.bf16.mxu0 0
        %1505 = vmatpush1.bf16.xpose.msra.mxu0 0
        %1506 = vmatprep.subr.bf16.mxu0 0
        %1507 = vmatpush1.bf16.xpose.msra.mxu0 0
        %1508 = vmatprep.subr.bf16.mxu0 0
        %1509 = vmatpush1.bf16.xpose.msra.mxu0 0
        %1510 = vmatprep.subr.bf16.mxu0 0
        %1511 = vmatpush1.bf16.xpose.msra.mxu0 0
        %1512 = vmatprep.mubr.bf16.mxu0 0
        %1513 = vmatmul.mubr.bf16.gmra.mrb[0].mxu0 %v1475
        %v1514 = vpop.f32.mrb[0].mxu0
        %v1515 = vadd.f32 %v1047, %v1514
        %v1516 = vpop.f32.mrb[0].mxu0
        %v1517 = vpop.f32.mrb[0].mxu0
        %v1518 = vpop.f32.mrb[0].mxu0
        %1519 = vdwg.mxu0
        %s1520 = scalar_lea.vmem [#allocation3], 24
        %v1521 = vld [vmem:[%s1520] sm:$0xff]
        %v1522 = vsel %vm1049, %v1515, -inf
        %1523 = vmax.xlane.f32.xlu0 %v1522
        %v1524 = vpop.xlane.xlu0 %1523
        %v1525 = vmax.f32 %v1521, %v1524
        %v1526 = vsub.f32 %v1521, %v1525
        %v1527 = vmul.f32 %v1526, 1.442695
        %v1528 = vpow.pop %v1527
        %1530 = vset.pattern.permute.xlu0 0
        %1531 = vperm.xlu0 %1530, %v1525
        %v1532 = vpop.permute.xlu0 %1531
        %v1534 = vsub.f32 %v1515, %v1532
        %v1535 = vmul.f32 %v1534, 1.442695
        %v1536 = vpow.pop %v1535
        %s1537 = scalar_lea.vmem [#allocation4], 24
        %v1538 = vld [vmem:[%s1537] sm:$0xff]
        %v1539 = vmul.f32 %v1528, %v1538
        %v1540 = vsel %vm1049, %v1536, 0.0
        %1541 = vadd.xlane.f32.xlu0 %v1540
        %v1542 = vpop.xlane.xlu0 %1541
        %v1543 = vadd.f32 %v1539, %v1542
        %1544 = vst.msk [vmem:[%s1537] sm:$0xff] %vm1118, %v1543
        %v1545 = vld [vmem:[#allocation5] sm:$0xff]
        %1547 = vset.pattern.permute.xlu0 0
        %1548 = vperm.xlu0 %1547, %v1528
        %v1549 = vpop.permute.xlu0 %1548
        %v1551 = vmul.f32 %v1549, %v1545
        %v1552 = vpack.c.bf16 %v1536, %v1536
        %1553 = vrot.lane.b32.xlu0 %v1045, 104
        %v1554 = vpop.permute.xlu0 %1553
        %v1556 = vsel %vm1049, %v1552, 0
        %v1559 = vsel %vm1131, %v1554, 0
        %1561 = vmatprep.subr.bf16.mxu0 0
        %1562 = vmatpush1.bf16.msra.mxu0 %v1559
        %1563 = vmatprep.subr.bf16.mxu0 0
        %1564 = vmatpush1.bf16.msra.mxu0 0
        %1565 = vmatprep.subr.bf16.mxu0 0
        %1566 = vmatpush1.bf16.msra.mxu0 0
        %1567 = vmatprep.subr.bf16.mxu0 0
        %1568 = vmatpush1.bf16.msra.mxu0 0
        %1569 = vmatprep.subr.bf16.mxu0 0
        %1570 = vmatpush1.bf16.msra.mxu0 0
        %1571 = vmatprep.subr.bf16.mxu0 0
        %1572 = vmatpush1.bf16.msra.mxu0 0
        %1573 = vmatprep.subr.bf16.mxu0 0
        %1574 = vmatpush1.bf16.msra.mxu0 0
        %1575 = vmatprep.subr.bf16.mxu0 0
        %1576 = vmatpush1.bf16.msra.mxu0 0
        %1577 = vmatprep.subr.bf16.mxu0 0
        %1578 = vmatpush1.bf16.msra.mxu0 0
        %1579 = vmatprep.subr.bf16.mxu0 0
        %1580 = vmatpush1.bf16.msra.mxu0 0
        %1581 = vmatprep.subr.bf16.mxu0 0
        %1582 = vmatpush1.bf16.msra.mxu0 0
        %1583 = vmatprep.subr.bf16.mxu0 0
        %1584 = vmatpush1.bf16.msra.mxu0 0
        %1585 = vmatprep.subr.bf16.mxu0 0
        %1586 = vmatpush1.bf16.msra.mxu0 0
        %1587 = vmatprep.subr.bf16.mxu0 0
        %1588 = vmatpush1.bf16.msra.mxu0 0
        %1589 = vmatprep.subr.bf16.mxu0 0
        %1590 = vmatpush1.bf16.msra.mxu0 0
        %1591 = vmatprep.subr.bf16.mxu0 0
        %1592 = vmatpush1.bf16.msra.mxu0 0
        %1593 = vmatprep.mubr.bf16.mxu0 0
        %1594 = vmatmul.mubr.bf16.gmra.mrb[0].mxu0 %v1556
        %v1595 = vpop.f32.mrb[0].mxu0
        %v1596 = vadd.f32 0.0, %v1595
        %v1597 = vpop.f32.mrb[0].mxu0
        %v1598 = vpop.f32.mrb[0].mxu0
        %v1599 = vpop.f32.mrb[0].mxu0
        %1600 = vdwg.mxu0
        %1602 = vrot.lane.b32.xlu0 %v1596, 24
        %v1603 = vpop.permute.xlu0 %1602
        %v1605 = vadd.f32 %v1551, %v1603
        %vm1606 = vcmask 261312
        %1607 = vst.msk [vmem:[#allocation5] sm:$0xff] %vm1606, %v1605
        %1608 = vst.msk [vmem:[%s1520] sm:$0xff] %vm1118, %v1525
        // Predicated region
        $region129: #{tpu_custom_call.1} parent=99 // pred_check
          %p1609 = pneg %p820
        $region130: #{tpu_custom_call.1} parent=99 // pred_check_branch
          %1611 = sbr.rel (%p1609) target = $region132
        $region131: #{tpu_custom_call.1} parent=99 // pred_region
          %v1612 = vld [vmem:[#allocation5] sm:$0xff]
          %v1613 = vld [vmem:[#allocation4] sm:$0xff]
          %v1614 = vrcp.pop %v1613
          %1616 = vset.pattern.permute.xlu0 0
          %1617 = vperm.xlu0 %1616, %v1614
          %v1618 = vpop.permute.xlu0 %1617
          %v1620 = vmul.f32 %v1612, %v1618
          %1621 = vst.msk [vmem:[#allocation5] sm:$0xff] %vm1049, %v1620
          %v1622 = vld [vmem:[#allocation5] sm:$0xff]
          %v1623 = vld [vmem:[%s1250] sm:$0xff]
          %v1624 = vrcp.pop %v1623
          %1626 = vset.pattern.permute.xlu0 0
          %1627 = vperm.xlu0 %1626, %v1624
          %v1628 = vpop.permute.xlu0 %1627
          %v1630 = vmul.f32 %v1622, %v1628
          %1631 = vst.msk [vmem:[#allocation5] sm:$0xff] %vm1320, %v1630
          %v1632 = vld [vmem:[#allocation5] sm:$0xff]
          %v1633 = vld [vmem:[%s1394] sm:$0xff]
          %v1634 = vrcp.pop %v1633
          %1636 = vset.pattern.permute.xlu0 0
          %1637 = vperm.xlu0 %1636, %v1634
          %v1638 = vpop.permute.xlu0 %1637
          %v1640 = vmul.f32 %v1632, %v1638
          %1641 = vst.msk [vmem:[#allocation5] sm:$0xff] %vm1463, %v1640
          %v1642 = vld [vmem:[#allocation5] sm:$0xff]
          %v1643 = vld [vmem:[%s1537] sm:$0xff]
          %v1644 = vrcp.pop %v1643
          %1646 = vset.pattern.permute.xlu0 0
          %1647 = vperm.xlu0 %1646, %v1644
          %v1648 = vpop.permute.xlu0 %1647
          %v1650 = vmul.f32 %v1642, %v1648
          %1651 = vst.msk [vmem:[#allocation5] sm:$0xff] %vm1606, %v1650
          %v1652 = vld [vmem:[#allocation5] sm:$0xff]
          %v1653 = vpack.c.bf16 %v1652, %v1652
          %v1654 = vld [vmem:[%s10] sm:$0xf]
          %v1655 = vld [vmem:[%s10 + $0x4] sm:$0xf]
          %v1656 = vld [vmem:[%s10 + $0x8] sm:$0xf]
          %v1657 = vld [vmem:[%s10 + $0xc] sm:$0xf]
          %v1658 = vld [vmem:[#allocation12] sm:$0x1]
          %v1660 = vlaneseq
          %v1661 = vshrl.u32 %v1660, 7
          %v1662 = vsub.s32 0, %v1661
          %v1663 = vrot.slane %v1658, %v1662
          %v1669 = vunpack.c.l.b16 %v1654
          %v1670 = vunpack.c.l.b16 %v1655
          %v1671 = vunpack.c.l.b16 %v1656
          %v1672 = vunpack.c.l.b16 %v1657
          %v1673 = vpack.c.b16 %v1670, %v1669
          %v1674 = vpack.c.b16 %v1672, %v1671
          %v1678 = vsel %vm934, %v1653, 0
          %1680 = vmatprep.subr.bf16.mxu0 0
          %1681 = vmatpush1.bf16.msra.mxu0 %v1673
          %1682 = vmatprep.subr.bf16.mxu0 0
          %1683 = vmatpush1.bf16.msra.mxu0 %v1674
          %1684 = vmatprep.subr.bf16.mxu0 0
          %1685 = vmatpush1.bf16.msra.mxu0 0
          %1686 = vmatprep.subr.bf16.mxu0 0
          %1687 = vmatpush1.bf16.msra.mxu0 0
          %1688 = vmatprep.subr.bf16.mxu0 0
          %1689 = vmatpush1.bf16.msra.mxu0 0
          %1690 = vmatprep.subr.bf16.mxu0 0
          %1691 = vmatpush1.bf16.msra.mxu0 0
          %1692 = vmatprep.subr.bf16.mxu0 0
          %1693 = vmatpush1.bf16.msra.mxu0 0
          %1694 = vmatprep.subr.bf16.mxu0 0
          %1695 = vmatpush1.bf16.msra.mxu0 0
          %1696 = vmatprep.subr.bf16.mxu0 0
          %1697 = vmatpush1.bf16.msra.mxu0 0
          %1698 = vmatprep.subr.bf16.mxu0 0
          %1699 = vmatpush1.bf16.msra.mxu0 0
          %1700 = vmatprep.subr.bf16.mxu0 0
          %1701 = vmatpush1.bf16.msra.mxu0 0
          %1702 = vmatprep.subr.bf16.mxu0 0
          %1703 = vmatpush1.bf16.msra.mxu0 0
          %1704 = vmatprep.subr.bf16.mxu0 0
          %1705 = vmatpush1.bf16.msra.mxu0 0
          %1706 = vmatprep.subr.bf16.mxu0 0
          %1707 = vmatpush1.bf16.msra.mxu0 0
          %1708 = vmatprep.subr.bf16.mxu0 0
          %1709 = vmatpush1.bf16.msra.mxu0 0
          %1710 = vmatprep.subr.bf16.mxu0 0
          %1711 = vmatpush1.bf16.msra.mxu0 0
          %1712 = vmatprep.mubr.bf16.mxu0 0
          %1713 = vmatmul.mubr.bf16.gmra.mrb[0].mxu0 %v1678
          %v1714 = vpop.f32.mrb[0].mxu0
          %v1715 = vadd.f32 %v1663, %v1714
          %v1716 = vpop.f32.mrb[0].mxu0
          %v1717 = vpop.f32.mrb[0].mxu0
          %v1718 = vpop.f32.mrb[0].mxu0
          %1719 = vdwg.mxu0
          %v1720 = vld [vmem:[%s804] sm:$0xff]
          %v1721 = vadd.f32 %v1715, %v1720
          %v1722 = vld [vmem:[#allocation14] sm:$0x1]
          %v1723 = vld [vmem:[#allocation15] sm:$0x1]
          %v1724 = vsel %vm934, %v1721, 0.0
          %1725 = vadd.xlane.f32.xlu0 %v1724
          %v1726 = vpop.xlane.xlu0 %1725
          %v1727 = vrcp.pop 32.0
          %v1728 = vmul.f32 %v1726, %v1727
          %v1729 = vsub.f32 %v1721, %v1728
          %v1730 = vmul.f32 %v1729, %v1729
          %v1731 = vsel %vm934, %v1730, 0.0
          %1732 = vadd.xlane.f32.xlu0 %v1731
          %v1733 = vpop.xlane.xlu0 %1732
          %v1734 = vmul.f32 %v1733, %v1727
          %v1735 = vadd.f32 %v1734, 1e-05
          %v1736 = vrsqrt.pop %v1735
          %v1737 = vmul.f32 %v1729, %v1736
          %v1739 = vlaneseq
          %v1740 = vshrl.u32 %v1739, 7
          %v1741 = vsub.s32 0, %v1740
          %v1742 = vrot.slane %v1722, %v1741
          %v1744 = vmul.f32 %v1737, %v1742
          %v1746 = vlaneseq
          %v1747 = vshrl.u32 %v1746, 7
          %v1748 = vsub.s32 0, %v1747
          %v1749 = vrot.slane %v1723, %v1748
          %v1751 = vadd.f32 %v1744, %v1749
          %v1752 = vpack.c.bf16 %v1751, %v1751
          %v1753 = vld [vmem:[%s14] sm:$0xf]
          %v1754 = vld [vmem:[%s14 + $0x4] sm:$0xf]
          %v1755 = vld [vmem:[%s14 + $0x8] sm:$0xf]
          %v1756 = vld [vmem:[%s14 + $0xc] sm:$0xf]
          %v1757 = vld [vmem:[%s15] sm:$0x1]
          %v1759 = vlaneseq
          %v1760 = vshrl.u32 %v1759, 7
          %v1761 = vsub.s32 0, %v1760
          %v1762 = vrot.slane %v1757, %v1761
          %v1768 = vunpack.c.l.b16 %v1753
          %v1769 = vunpack.c.l.b16 %v1754
          %v1770 = vunpack.c.l.b16 %v1755
          %v1771 = vunpack.c.l.b16 %v1756
          %v1772 = vpack.c.b16 %v1769, %v1768
          %v1773 = vpack.c.b16 %v1771, %v1770
          %v1777 = vsel %vm934, %v1752, 0
          %1779 = vmatprep.subr.bf16.mxu0 0
          %1780 = vmatpush1.bf16.msra.mxu0 %v1772
          %1781 = vmatprep.subr.bf16.mxu0 0
          %1782 = vmatpush1.bf16.msra.mxu0 %v1773
          %1783 = vmatprep.subr.bf16.mxu0 0
          %1784 = vmatpush1.bf16.msra.mxu0 0
          %1785 = vmatprep.subr.bf16.mxu0 0
          %1786 = vmatpush1.bf16.msra.mxu0 0
          %1787 = vmatprep.subr.bf16.mxu0 0
          %1788 = vmatpush1.bf16.msra.mxu0 0
          %1789 = vmatprep.subr.bf16.mxu0 0
          %1790 = vmatpush1.bf16.msra.mxu0 0
          %1791 = vmatprep.subr.bf16.mxu0 0
          %1792 = vmatpush1.bf16.msra.mxu0 0
          %1793 = vmatprep.subr.bf16.mxu0 0
          %1794 = vmatpush1.bf16.msra.mxu0 0
          %1795 = vmatprep.subr.bf16.mxu0 0
          %1796 = vmatpush1.bf16.msra.mxu0 0
          %1797 = vmatprep.subr.bf16.mxu0 0
          %1798 = vmatpush1.bf16.msra.mxu0 0
          %1799 = vmatprep.subr.bf16.mxu0 0
          %1800 = vmatpush1.bf16.msra.mxu0 0
          %1801 = vmatprep.subr.bf16.mxu0 0
          %1802 = vmatpush1.bf16.msra.mxu0 0
          %1803 = vmatprep.subr.bf16.mxu0 0
          %1804 = vmatpush1.bf16.msra.mxu0 0
          %1805 = vmatprep.subr.bf16.mxu0 0
          %1806 = vmatpush1.bf16.msra.mxu0 0
          %1807 = vmatprep.subr.bf16.mxu0 0
          %1808 = vmatpush1.bf16.msra.mxu0 0
          %1809 = vmatprep.subr.bf16.mxu0 0
          %1810 = vmatpush1.bf16.msra.mxu0 0
          %1811 = vmatprep.mubr.bf16.mxu0 0
          %1812 = vmatmul.mubr.bf16.gmra.mrb[0].mxu0 %v1777
          %v1813 = vpop.f32.mrb[0].mxu0
          %v1814 = vadd.f32 %v1762, %v1813
          %v1815 = vpop.f32.mrb[0].mxu0
          %v1816 = vpop.f32.mrb[0].mxu0
          %v1817 = vpop.f32.mrb[0].mxu0
          %1818 = vdwg.mxu0
          %v1819 = vmax.f32 %v1814, 0.0
          %v1820 = vpack.c.bf16 %v1819, %v1819
          %v1821 = vld [vmem:[%s16] sm:$0xf]
          %v1822 = vld [vmem:[%s16 + $0x4] sm:$0xf]
          %v1823 = vld [vmem:[%s16 + $0x8] sm:$0xf]
          %v1824 = vld [vmem:[%s16 + $0xc] sm:$0xf]
          %v1825 = vld [vmem:[%s16 + $0x10] sm:$0xf]
          %v1826 = vld [vmem:[%s16 + $0x14] sm:$0xf]
          %v1827 = vld [vmem:[%s16 + $0x18] sm:$0xf]
          %v1828 = vld [vmem:[%s16 + $0x1c] sm:$0xf]
          %v1829 = vld [vmem:[%s16 + $0x20] sm:$0xf]
          %v1830 = vld [vmem:[%s16 + $0x24] sm:$0xf]
          %v1831 = vld [vmem:[%s16 + $0x28] sm:$0xf]
          %v1832 = vld [vmem:[%s16 + $0x2c] sm:$0xf]
          %v1833 = vld [vmem:[%s16 + $0x30] sm:$0xf]
          %v1834 = vld [vmem:[%s16 + $0x34] sm:$0xf]
          %v1835 = vld [vmem:[%s16 + $0x38] sm:$0xf]
          %v1836 = vld [vmem:[%s16 + $0x3c] sm:$0xf]
          %v1837 = vld [vmem:[%s17] sm:$0x1]
          %v1839 = vlaneseq
          %v1840 = vshrl.u32 %v1839, 7
          %v1841 = vsub.s32 0, %v1840
          %v1842 = vrot.slane %v1837, %v1841
          %v1860 = vunpack.c.l.b16 %v1821
          %v1861 = vunpack.c.l.b16 %v1822
          %v1862 = vunpack.c.l.b16 %v1823
          %v1863 = vunpack.c.l.b16 %v1824
          %v1864 = vunpack.c.l.b16 %v1825
          %v1865 = vunpack.c.l.b16 %v1826
          %v1866 = vunpack.c.l.b16 %v1827
          %v1867 = vunpack.c.l.b16 %v1828
          %v1868 = vunpack.c.l.b16 %v1829
          %v1869 = vunpack.c.l.b16 %v1830
          %v1870 = vunpack.c.l.b16 %v1831
          %v1871 = vunpack.c.l.b16 %v1832
          %v1872 = vunpack.c.l.b16 %v1833
          %v1873 = vunpack.c.l.b16 %v1834
          %v1874 = vunpack.c.l.b16 %v1835
          %v1875 = vunpack.c.l.b16 %v1836
          %v1876 = vpack.c.b16 %v1861, %v1860
          %v1877 = vpack.c.b16 %v1863, %v1862
          %v1878 = vpack.c.b16 %v1865, %v1864
          %v1879 = vpack.c.b16 %v1867, %v1866
          %v1880 = vpack.c.b16 %v1869, %v1868
          %v1881 = vpack.c.b16 %v1871, %v1870
          %v1882 = vpack.c.b16 %v1873, %v1872
          %v1883 = vpack.c.b16 %v1875, %v1874
          %1892 = vmatprep.subr.bf16.mxu0 0
          %1893 = vmatpush1.bf16.msra.mxu0 %v1876
          %1894 = vmatprep.subr.bf16.mxu0 0
          %1895 = vmatpush1.bf16.msra.mxu0 %v1877
          %1896 = vmatprep.subr.bf16.mxu0 0
          %1897 = vmatpush1.bf16.msra.mxu0 %v1878
          %1898 = vmatprep.subr.bf16.mxu0 0
          %1899 = vmatpush1.bf16.msra.mxu0 %v1879
          %1900 = vmatprep.subr.bf16.mxu0 0
          %1901 = vmatpush1.bf16.msra.mxu0 %v1880
          %1902 = vmatprep.subr.bf16.mxu0 0
          %1903 = vmatpush1.bf16.msra.mxu0 %v1881
          %1904 = vmatprep.subr.bf16.mxu0 0
          %1905 = vmatpush1.bf16.msra.mxu0 %v1882
          %1906 = vmatprep.subr.bf16.mxu0 0
          %1907 = vmatpush1.bf16.msra.mxu0 %v1883
          %1908 = vmatprep.subr.bf16.mxu0 0
          %1909 = vmatpush1.bf16.msra.mxu0 0
          %1910 = vmatprep.subr.bf16.mxu0 0
          %1911 = vmatpush1.bf16.msra.mxu0 0
          %1912 = vmatprep.subr.bf16.mxu0 0
          %1913 = vmatpush1.bf16.msra.mxu0 0
          %1914 = vmatprep.subr.bf16.mxu0 0
          %1915 = vmatpush1.bf16.msra.mxu0 0
          %1916 = vmatprep.subr.bf16.mxu0 0
          %1917 = vmatpush1.bf16.msra.mxu0 0
          %1918 = vmatprep.subr.bf16.mxu0 0
          %1919 = vmatpush1.bf16.msra.mxu0 0
          %1920 = vmatprep.subr.bf16.mxu0 0
          %1921 = vmatpush1.bf16.msra.mxu0 0
          %1922 = vmatprep.subr.bf16.mxu0 0
          %1923 = vmatpush1.bf16.msra.mxu0 0
          %1924 = vmatprep.mubr.bf16.mxu0 0
          %1925 = vmatmul.mubr.bf16.gmra.mrb[0].mxu0 %v1820
          %v1926 = vpop.f32.mrb[0].mxu0
          %v1927 = vadd.f32 %v1842, %v1926
          %v1928 = vpop.f32.mrb[0].mxu0
          %v1929 = vpop.f32.mrb[0].mxu0
          %v1930 = vpop.f32.mrb[0].mxu0
          %1931 = vdwg.mxu0
          %v1932 = vadd.f32 %v1751, %v1927
          %v1933 = vld [vmem:[%s18] sm:$0x1]
          %v1934 = vld [vmem:[%s19] sm:$0x1]
          %v1935 = vsel %vm934, %v1932, 0.0
          %1936 = vadd.xlane.f32.xlu0 %v1935
          %v1937 = vpop.xlane.xlu0 %1936
          %v1938 = vmul.f32 %v1937, %v1727
          %v1939 = vsub.f32 %v1932, %v1938
          %v1940 = vmul.f32 %v1939, %v1939
          %v1941 = vsel %vm934, %v1940, 0.0
          %1942 = vadd.xlane.f32.xlu0 %v1941
          %v1943 = vpop.xlane.xlu0 %1942
          %v1944 = vmul.f32 %v1943, %v1727
          %v1945 = vadd.f32 %v1944, 1e-05
          %v1946 = vrsqrt.pop %v1945
          %v1947 = vmul.f32 %v1939, %v1946
          %v1949 = vlaneseq
          %v1950 = vshrl.u32 %v1949, 7
          %v1951 = vsub.s32 0, %v1950
          %v1952 = vrot.slane %v1933, %v1951
          %v1954 = vmul.f32 %v1947, %v1952
          %v1956 = vlaneseq
          %v1957 = vshrl.u32 %v1956, 7
          %v1958 = vsub.s32 0, %v1957
          %v1959 = vrot.slane %v1934, %v1958
          %v1961 = vadd.f32 %v1954, %v1959
          %1962 = vst.msk [vmem:[%s797] sm:$0xff] %vm934, %v1961
        $region132: #{tpu_custom_call.1} parent=99 // pred_fallthru
          _
        %s1963 = sand.u32 %s519, 1
        %s1964 = scalar_lea.sflag [#allocation8], %s1963
        %s1965 = sand.u32 %s519, 1
        %s1966 = smul.addr %s1965, 8
        %s1967 = scalar_lea.vmem [#allocation17], %s1966
        // Predicated region
        $region133: #{tpu_custom_call.1} parent=99 // pred_check
          %p1968 = pneg %p529
        $region134: #{tpu_custom_call.1} parent=99 // pred_check_branch
          %1970 = sbr.rel (%p1968) target = $region136
        $region135: #{tpu_custom_call.1} parent=99 // pred_region
          %s1972 = ssub.s32 128, 128
          %1973 = vsyncadd %s1964, %s1972
          %s1974 = sadd.s32 %s46, %s45
          %s1975 = smul.addr %s1974, 128
          %s1976 = scalar_lea.hbm %s20, %s1975
          %s1978 = sshll.u32 %s1967, 4
          %s1979 = int_to_ptr.vmem [resolvable:$true] %s1978
          %1981 = dma.vmem_to_hbm [thread:$0]  %s1979, 128, %s1976, %s1964
        $region136: #{tpu_custom_call.1} parent=99 // pred_fallthru
          _
      $region100: #{tpu_custom_call.1} parent=5 // pred_fallthru
        _
      %p1982 = scmp.le.s32.totalorder 2, %s35
      // Predicated region
      $region137: #{tpu_custom_call.1} parent=5 // pred_check
        %p1983 = pneg %p1982
      $region138: #{tpu_custom_call.1} parent=5 // pred_check_branch
        %1985 = sbr.rel (%p1983) target = $region140
      $region139: #{tpu_custom_call.1} parent=5 // pred_region
        %s1986 = ssub.s32 %s35, 2
        // Predicated region
        $region141: #{tpu_custom_call.1} parent=139 // pred_check
          %p1987 = pneg %p535
        $region142: #{tpu_custom_call.1} parent=139 // pred_check_branch
          %1989 = sbr.rel (%p1987) target = $region144
        $region143: #{tpu_custom_call.1} parent=139 // pred_region
          %s1990 = sand.u32 %s520, 1
          %s1991 = scalar_lea.sflag [#allocation8], %s1990
          %s1992 = sand.u32 %s520, 1
          %s1993 = smul.addr %s1992, 8
          %s1994 = scalar_lea.vmem [#allocation17], %s1993
          %1995 = dma.done %s1991, 128
        $region144: #{tpu_custom_call.1} parent=139 // pred_fallthru
          _
      $region140: #{tpu_custom_call.1} parent=5 // pred_fallthru
        _
    $region6: #{tpu_custom_call.1} parent=1 // loop_footer
      %s39 = sadd.s32 1, %s35
    $region7: #{tpu_custom_call.1} parent=1 // loop_footer_branch
      %34 = sbr.rel target = $region3
    $region8: #{tpu_custom_call.1} parent=1 // loop_exit
      _
    %1996 = vsyncpa [#allocation7], 1
    %s1997 = scalar_lea.sflag [#allocation7], 1
    %1998 = vsyncpa %s1997, 1
    %1999 = vsyncpa [#allocation10], 1
    %2000 = vsyncpa [#allocation13], 1
    %2001 = vsyncpa [#allocation16], 1
    %2002 = vsyncpa [#allocation8], 1
    %s2003 = scalar_lea.sflag [#allocation8], 1
    %2004 = vsyncpa %s2003, 1

// kernel: tpu_custom_call.1
$region0: #{tpu_custom_call.1}
  #allocation0 [shape = 'u32[]', space=smem, size = 0x4, offset = 0x4, fixed_abs, tag = 'smem constant byte address 0x4 - core index']
  #allocation1 [shape = 'u32[144,128]{1,0:T(1,128)}', space=vmem, size = 0x12000, scoped, tag = 'internal scratch']
  #allocation2 [shape = 'bf16[8,32]{1,0:T(8,128)(2,1)}', space=vmem, size = 0x800, scoped, tag = 'scratch operand']
  #allocation3 [shape = 'f32[4,8,1]{2,1,0:T(8,128)}', space=vmem, size = 0x4000, scoped, tag = 'scratch operand']
  #allocation4 [shape = 'f32[4,8,1]{2,1,0:T(8,128)}', space=vmem, size = 0x4000, scoped, tag = 'scratch operand']
  #allocation5 [shape = 'f32[8,32]{1,0:T(8,128)}', space=vmem, size = 0x1000, scoped, tag = 'scratch operand']
  %s0 = inlined_call_operand.vmem [shape: f32[2,8,32], index: 0, kind: input, shape index: {}]
  %s1 = inlined_call_operand.vmem [shape: f32[2,8,32], index: 1, kind: input, shape index: {}]
  %s2 = inlined_call_operand.vmem [shape: f32[2,8,32], index: 2, kind: input, shape index: {}]
  %s3 = inlined_call_operand.hbm [shape: bf16[2,8,8], index: 3, kind: input, shape index: {}]
  %s4 = inlined_call_operand.vmem [shape: bf16[32,32], index: 4, kind: input, shape index: {}]
  %s5 = inlined_call_operand.vmem [shape: f32[1,32], index: 5, kind: input, shape index: {}]
  %s6 = inlined_call_operand.vmem [shape: bf16[32,32], index: 6, kind: input, shape index: {}]
  %s7 = inlined_call_operand.hbm [shape: f32[1,32], index: 7, kind: input, shape index: {}]
  %s8 = inlined_call_operand.vmem [shape: bf16[32,32], index: 8, kind: input, shape index: {}]
  %s9 = inlined_call_operand.hbm [shape: f32[1,32], index: 9, kind: input, shape index: {}]
  %s10 = inlined_call_operand.vmem [shape: bf16[32,32], index: 10, kind: input, shape index: {}]
  %s11 = inlined_call_operand.hbm [shape: f32[1,32], index: 11, kind: input, shape index: {}]
  %s12 = inlined_call_operand.hbm [shape: f32[1,32], index: 12, kind: input, shape index: {}]
  %s13 = inlined_call_operand.hbm [shape: f32[1,32], index: 13, kind: input, shape index: {}]
  %s14 = inlined_call_operand.vmem [shape: bf16[32,128], index: 14, kind: input, shape index: {}]
  %s15 = inlined_call_operand.vmem [shape: f32[1,128], index: 15, kind: input, shape index: {}]
  %s16 = inlined_call_operand.vmem [shape: bf16[128,32], index: 16, kind: input, shape index: {}]
  %s17 = inlined_call_operand.vmem [shape: f32[1,32], index: 17, kind: input, shape index: {}]
  %s18 = inlined_call_operand.vmem [shape: f32[1,32], index: 18, kind: input, shape index: {}]
  %s19 = inlined_call_operand.vmem [shape: f32[1,32], index: 19, kind: input, shape index: {}]
  %s20 = inlined_call_operand.hbm [shape: f32[2,8,32], index: 20, kind: output, shape index: {}]
  %s21 = sld [smem:[#allocation0]]
  $region145: #{tpu_custom_call.1} parent=0
    _
  %s23 = ssub.s32 1, %s21
  %s24 = scalar_select 0, %s23, %s21
  $region1: #{tpu_custom_call.1} parent=0
    #allocation6 [shape = 'u8[4096]{0}', space=vmem, size = 0x1000, scoped, tag = 'input window, operand 3']
    #allocation7 [shape = 's32[2]{0}', space=sflag, size = 0x8, scoped, tag = 'scoped memory for tpu_custom_call.1']
    #allocation8 [shape = 's32[2]{0}', space=sflag, size = 0x8, scoped, tag = 'scoped memory for tpu_custom_call.1']
    #allocation9 [shape = 'u8[512]{0}', space=vmem, size = 0x400, scoped, tag = 'input window, operand 7, single buffered']
    #allocation10 [shape = 's32[1]{0}', space=sflag, size = 0x4, scoped, tag = 'scoped memory for tpu_custom_call.1']
    #allocation11 [shape = 'u8[512]{0}', space=vmem, size = 0x400, scoped, tag = 'input window, operand 9, single buffered']
    #allocation12 [shape = 'u8[512]{0}', space=vmem, size = 0x400, scoped, tag = 'input window, operand 11, single buffered']
    #allocation13 [shape = 's32[1]{0}', space=sflag, size = 0x4, scoped, tag = 'scoped memory for tpu_custom_call.1']
    #allocation14 [shape = 'u8[512]{0}', space=vmem, size = 0x400, scoped, tag = 'input window, operand 12, single buffered']
    #allocation15 [shape = 'u8[512]{0}', space=vmem, size = 0x400, scoped, tag = 'input window, operand 13, single buffered']
    #allocation16 [shape = 's32[1]{0}', space=sflag, size = 0x4, scoped, tag = 'scoped memory for tpu_custom_call.1']
    #allocation17 [shape = 'u8[8192]{0}', space=vmem, size = 0x2000, scoped, tag = 'output window, operand 0']
    %25 = vsyncpa [#allocation7], 0
    %s26 = scalar_lea.sflag [#allocation7], 1
    %27 = vsyncpa %s26, 0
    %28 = vsyncpa [#allocation10], 0
    %29 = vsyncpa [#allocation13], 0
    %30 = vsyncpa [#allocation16], 0
    %31 = vsyncpa [#allocation8], 0
    %s32 = scalar_lea.sflag [#allocation8], 1
    %33 = vsyncpa %s32, 0
    loop: start=0, step=1, limit=4
    $region2: #{tpu_custom_call.1} parent=1 // loop_pre_header
      _
    $region3: #{tpu_custom_call.1} parent=1 // loop_header
      %s35 = sphi 0, %s39
      %p36 = scmp.ge.s32.totalorder %s35, 4
      %s42 = sphi 0, %s61
      %s43 = sphi 0, %s57
      %s44 = sphi 0, %s53
      %s45 = sphi 0, %s42
      %s46 = sphi 0, %s43
      %s47 = sphi 0, %s44
      %s48 = sphi 0, %s45
      %s49 = sphi 0, %s46
      %s50 = sphi 0, %s47
      %s66 = sphi 0, %s68
      %s69 = sphi 0, %s66
      %s70 = sphi 0, %s69
      %s86 = sphi 0, %s70
      %s94 = sphi 0, %s96
      %s97 = sphi 0, %s94
      %s98 = sphi 0, %s97
      %s114 = sphi 0, %s98
      %s122 = sphi 0, %s124
      %s125 = sphi 0, %s122
      %s126 = sphi 0, %s125
      %s142 = sphi 0, %s126
      %s152 = sphi 0, %s154
      %s155 = sphi 0, %s152
      %s156 = sphi 0, %s155
      %s172 = sphi 0, %s156
      %s176 = sphi 0, %s176
      %s178 = sphi 0, %s176
      %s179 = sphi 0, %s178
      %s193 = sphi 0, %s179
      %s197 = sphi 0, %s197
      %s199 = sphi 0, %s197
      %s200 = sphi 0, %s199
      %s214 = sphi 0, %s200
      %s218 = sphi 0, %s218
      %s220 = sphi 0, %s218
      %s221 = sphi 0, %s220
      %s235 = sphi 0, %s221
      %s239 = sphi 0, %s239
      %s241 = sphi 0, %s239
      %s242 = sphi 0, %s241
      %s256 = sphi 0, %s242
      %s260 = sphi 0, %s260
      %s262 = sphi 0, %s260
      %s263 = sphi 0, %s262
      %s277 = sphi 0, %s263
      %s281 = sphi 0, %s281
      %s283 = sphi 0, %s281
      %s284 = sphi 0, %s283
      %s298 = sphi 0, %s284
      %s302 = sphi 0, %s302
      %s304 = sphi 0, %s302
      %s305 = sphi 0, %s304
      %s319 = sphi 0, %s305
      %s323 = sphi 0, %s323
      %s325 = sphi 0, %s323
      %s326 = sphi 0, %s325
      %s340 = sphi 0, %s326
      %s344 = sphi 0, %s344
      %s346 = sphi 0, %s344
      %s347 = sphi 0, %s346
      %s361 = sphi 0, %s347
      %s365 = sphi 0, %s365
      %s367 = sphi 0, %s365
      %s368 = sphi 0, %s367
      %s382 = sphi 0, %s368
      %s386 = sphi 0, %s386
      %s388 = sphi 0, %s386
      %s389 = sphi 0, %s388
      %s403 = sphi 0, %s389
      %s407 = sphi 0, %s407
      %s409 = sphi 0, %s407
      %s410 = sphi 0, %s409
      %s424 = sphi 0, %s410
      %s428 = sphi 0, %s428
      %s430 = sphi 0, %s428
      %s431 = sphi 0, %s430
      %s445 = sphi 0, %s431
      %s449 = sphi 0, %s449
      %s451 = sphi 0, %s449
      %s452 = sphi 0, %s451
      %s466 = sphi 0, %s452
      %s470 = sphi 0, %s470
      %s472 = sphi 0, %s470
      %s473 = sphi 0, %s472
      %s487 = sphi 0, %s473
      %s491 = sphi 0, %s491
      %s493 = sphi 0, %s491
      %s494 = sphi 0, %s493
      %s508 = sphi 0, %s494
      %s516 = sphi 0, %s518
      %s519 = sphi 0, %s516
      %s520 = sphi 0, %s519
      %s536 = sphi 0, %s520
    $region4: #{tpu_custom_call.1} parent=1 // loop_header_branch
      %38 = sbr.rel (%p36) target = $region8
    $region5: #{tpu_custom_call.1} parent=1 // loop_body
      %s40 = ssub.s32 %s35, 1
      %s41 = ssub.s32 %s35, 2
      %s51 = sadd.s32 1, %s44
      %p52 = scmp.ge.s32.totalorder %s51, 1
      %s53 = scalar_select %p52, 0, %s51
      %s54 = sadd.s32 1, %s43
      %s55 = scalar_select %p52, %s54, %s43
      %p56 = scmp.ge.s32.totalorder %s55, 1
      %s57 = scalar_select %p56, 0, %s55
      %s58 = sadd.s32 1, %s42
      %s59 = scalar_select %p56, %s58, %s42
      %p60 = scmp.ge.s32.totalorder %s59, 2
      %s61 = scalar_select %p60, 0, %s59
      %s62 = ssub.s32 %s42, %s61
      %s63 = ssub.s32 %s43, %s57
      %s64 = sor.u32 %s62, %s63
      %p65 = scmp.eq.s32.totalorder %s64, 0
      %s67 = sadd.s32 %s66, 1
      %s68 = scalar_select %p65, %s66, %s67
      %p71 = pneg %p65
      %p72 = scmp.eq.s32.totalorder %s35, 1
      %p73 = por %p71, %p72
      %p74 = scmp.ne.s32.totalorder %s66, %s69
      %p75 = scmp.eq.s32.totalorder %s35, 0
      %p76 = por %p74, %p75
      %p77 = scmp.ne.s32.totalorder %s66, %s69
      %p78 = scmp.eq.s32.totalorder %s40, 1
      %p79 = por %p77, %p78
      %p80 = scmp.ne.s32.totalorder %s69, %s70
      %p81 = scmp.eq.s32.totalorder %s40, 0
      %p82 = por %p80, %p81
      %p83 = scmp.ne.s32.totalorder %s69, %s70
      %p84 = scmp.eq.s32.totalorder %s41, 1
      %p85 = por %p83, %p84
      %p87 = scmp.ne.s32.totalorder %s70, %s86
      %p88 = scmp.eq.s32.totalorder %s41, 0
      %p89 = por %p87, %p88
      %s90 = ssub.s32 %s42, %s61
      %s91 = ssub.s32 %s44, %s53
      %s92 = sor.u32 %s90, %s91
      %p93 = scmp.eq.s32.totalorder %s92, 0
      %s95 = sadd.s32 %s94, 1
      %s96 = scalar_select %p93, %s94, %s95
      %p99 = pneg %p93
      %p100 = scmp.eq.s32.totalorder %s35, 1
      %p101 = por %p99, %p100
      %p102 = scmp.ne.s32.totalorder %s94, %s97
      %p103 = scmp.eq.s32.totalorder %s35, 0
      %p104 = por %p102, %p103
      %p105 = scmp.ne.s32.totalorder %s94, %s97
      %p106 = scmp.eq.s32.totalorder %s40, 1
      %p107 = por %p105, %p106
      %p108 = scmp.ne.s32.totalorder %s97, %s98
      %p109 = scmp.eq.s32.totalorder %s40, 0
      %p110 = por %p108, %p109
      %p111 = scmp.ne.s32.totalorder %s97, %s98
      %p112 = scmp.eq.s32.totalorder %s41, 1
      %p113 = por %p111, %p112
      %p115 = scmp.ne.s32.totalorder %s98, %s114
      %p116 = scmp.eq.s32.totalorder %s41, 0
      %p117 = por %p115, %p116
      %s118 = ssub.s32 %s42, %s61
      %s119 = ssub.s32 %s44, %s53
      %s120 = sor.u32 %s118, %s119
      %p121 = scmp.eq.s32.totalorder %s120, 0
      %s123 = sadd.s32 %s122, 1
      %s124 = scalar_select %p121, %s122, %s123
      %p127 = pneg %p121
      %p128 = scmp.eq.s32.totalorder %s35, 1
      %p129 = por %p127, %p128
      %p130 = scmp.ne.s32.totalorder %s122, %s125
      %p131 = scmp.eq.s32.totalorder %s35, 0
      %p132 = por %p130, %p131
      %p133 = scmp.ne.s32.totalorder %s122, %s125
      %p134 = scmp.eq.s32.totalorder %s40, 1
      %p135 = por %p133, %p134
      %p136 = scmp.ne.s32.totalorder %s125, %s126
      %p137 = scmp.eq.s32.totalorder %s40, 0
      %p138 = por %p136, %p137
      %p139 = scmp.ne.s32.totalorder %s125, %s126
      %p140 = scmp.eq.s32.totalorder %s41, 1
      %p141 = por %p139, %p140
      %p143 = scmp.ne.s32.totalorder %s126, %s142
      %p144 = scmp.eq.s32.totalorder %s41, 0
      %p145 = por %p143, %p144
      %s146 = ssub.s32 %s42, %s61
      %s147 = ssub.s32 %s43, %s57
      %s148 = sor.u32 %s146, %s147
      %s149 = ssub.s32 %s44, %s53
      %s150 = sor.u32 %s148, %s149
      %p151 = scmp.eq.s32.totalorder %s150, 0
      %s153 = sadd.s32 %s152, 1
      %s154 = scalar_select %p151, %s152, %s153
      %p157 = pneg %p151
      %p158 = scmp.eq.s32.totalorder %s35, 1
      %p159 = por %p157, %p158
      %p160 = scmp.ne.s32.totalorder %s152, %s155
      %p161 = scmp.eq.s32.totalorder %s35, 0
      %p162 = por %p160, %p161
      %p163 = scmp.ne.s32.totalorder %s152, %s155
      %p164 = scmp.eq.s32.totalorder %s40, 1
      %p165 = por %p163, %p164
      %p166 = scmp.ne.s32.totalorder %s155, %s156
      %p167 = scmp.eq.s32.totalorder %s40, 0
      %p168 = por %p166, %p167
      %p169 = scmp.ne.s32.totalorder %s155, %s156
      %p170 = scmp.eq.s32.totalorder %s41, 1
      %p171 = por %p169, %p170
      %p173 = scmp.ne.s32.totalorder %s156, %s172
      %p174 = scmp.eq.s32.totalorder %s41, 0
      %p175 = por %p173, %p174
      %s177 = sadd.s32 %s176, 1
      %p180 = scmp.eq.s32.totalorder %s35, 1
      %p181 = scmp.ne.s32.totalorder %s176, %s178
      %p182 = scmp.eq.s32.totalorder %s35, 0
      %p183 = por %p181, %p182
      %p184 = scmp.ne.s32.totalorder %s176, %s178
      %p185 = scmp.eq.s32.totalorder %s40, 1
      %p186 = por %p184, %p185
      %p187 = scmp.ne.s32.totalorder %s178, %s179
      %p188 = scmp.eq.s32.totalorder %s40, 0
      %p189 = por %p187, %p188
      %p190 = scmp.ne.s32.totalorder %s178, %s179
      %p191 = scmp.eq.s32.totalorder %s41, 1
      %p192 = por %p190, %p191
      %p194 = scmp.ne.s32.totalorder %s179, %s193
      %p195 = scmp.eq.s32.totalorder %s41, 0
      %p196 = por %p194, %p195
      %s198 = sadd.s32 %s197, 1
      %p201 = scmp.eq.s32.totalorder %s35, 1
      %p202 = scmp.ne.s32.totalorder %s197, %s199
      %p203 = scmp.eq.s32.totalorder %s35, 0
      %p204 = por %p202, %p203
      %p205 = scmp.ne.s32.totalorder %s197, %s199
      %p206 = scmp.eq.s32.totalorder %s40, 1
      %p207 = por %p205, %p206
      %p208 = scmp.ne.s32.totalorder %s199, %s200
      %p209 = scmp.eq.s32.totalorder %s40, 0
      %p210 = por %p208, %p209
      %p211 = scmp.ne.s32.totalorder %s199, %s200
      %p212 = scmp.eq.s32.totalorder %s41, 1
      %p213 = por %p211, %p212
      %p215 = scmp.ne.s32.totalorder %s200, %s214
      %p216 = scmp.eq.s32.totalorder %s41, 0
      %p217 = por %p215, %p216
      %s219 = sadd.s32 %s218, 1
      %p222 = scmp.eq.s32.totalorder %s35, 1
      %p223 = scmp.ne.s32.totalorder %s218, %s220
      %p224 = scmp.eq.s32.totalorder %s35, 0
      %p225 = por %p223, %p224
      %p226 = scmp.ne.s32.totalorder %s218, %s220
      %p227 = scmp.eq.s32.totalorder %s40, 1
      %p228 = por %p226, %p227
      %p229 = scmp.ne.s32.totalorder %s220, %s221
      %p230 = scmp.eq.s32.totalorder %s40, 0
      %p231 = por %p229, %p230
      %p232 = scmp.ne.s32.totalorder %s220, %s221
      %p233 = scmp.eq.s32.totalorder %s41, 1
      %p234 = por %p232, %p233
      %p236 = scmp.ne.s32.totalorder %s221, %s235
      %p237 = scmp.eq.s32.totalorder %s41, 0
      %p238 = por %p236, %p237
      %s240 = sadd.s32 %s239, 1
      %p243 = scmp.eq.s32.totalorder %s35, 1
      %p244 = scmp.ne.s32.totalorder %s239, %s241
      %p245 = scmp.eq.s32.totalorder %s35, 0
      %p246 = por %p244, %p245
      %p247 = scmp.ne.s32.totalorder %s239, %s241
      %p248 = scmp.eq.s32.totalorder %s40, 1
      %p249 = por %p247, %p248
      %p250 = scmp.ne.s32.totalorder %s241, %s242
      %p251 = scmp.eq.s32.totalorder %s40, 0
      %p252 = por %p250, %p251
      %p253 = scmp.ne.s32.totalorder %s241, %s242
      %p254 = scmp.eq.s32.totalorder %s41, 1
      %p255 = por %p253, %p254
      %p257 = scmp.ne.s32.totalorder %s242, %s256
      %p258 = scmp.eq.s32.totalorder %s41, 0
      %p259 = por %p257, %p258
      %s261 = sadd.s32 %s260, 1
      %p264 = scmp.eq.s32.totalorder %s35, 1
      %p265 = scmp.ne.s32.totalorder %s260, %s262
      %p266 = scmp.eq.s32.totalorder %s35, 0
      %p267 = por %p265, %p266
      %p268 = scmp.ne.s32.totalorder %s260, %s262
      %p269 = scmp.eq.s32.totalorder %s40, 1
      %p270 = por %p268, %p269
      %p271 = scmp.ne.s32.totalorder %s262, %s263
      %p272 = scmp.eq.s32.totalorder %s40, 0
      %p273 = por %p271, %p272
      %p274 = scmp.ne.s32.totalorder %s262, %s263
      %p275 = scmp.eq.s32.totalorder %s41, 1
      %p276 = por %p274, %p275
      %p278 = scmp.ne.s32.totalorder %s263, %s277
      %p279 = scmp.eq.s32.totalorder %s41, 0
      %p280 = por %p278, %p279
      %s282 = sadd.s32 %s281, 1
      %p285 = scmp.eq.s32.totalorder %s35, 1
      %p286 = scmp.ne.s32.totalorder %s281, %s283
      %p287 = scmp.eq.s32.totalorder %s35, 0
      %p288 = por %p286, %p287
      %p289 = scmp.ne.s32.totalorder %s281, %s283
      %p290 = scmp.eq.s32.totalorder %s40, 1
      %p291 = por %p289, %p290
      %p292 = scmp.ne.s32.totalorder %s283, %s284
      %p293 = scmp.eq.s32.totalorder %s40, 0
      %p294 = por %p292, %p293
      %p295 = scmp.ne.s32.totalorder %s283, %s284
      %p296 = scmp.eq.s32.totalorder %s41, 1
      %p297 = por %p295, %p296
      %p299 = scmp.ne.s32.totalorder %s284, %s298
      %p300 = scmp.eq.s32.totalorder %s41, 0
      %p301 = por %p299, %p300
      %s303 = sadd.s32 %s302, 1
      %p306 = scmp.eq.s32.totalorder %s35, 1
      %p307 = scmp.ne.s32.totalorder %s302, %s304
      %p308 = scmp.eq.s32.totalorder %s35, 0
      %p309 = por %p307, %p308
      %p310 = scmp.ne.s32.totalorder %s302, %s304
      %p311 = scmp.eq.s32.totalorder %s40, 1
      %p312 = por %p310, %p311
      %p313 = scmp.ne.s32.totalorder %s304, %s305
      %p314 = scmp.eq.s32.totalorder %s40, 0
      %p315 = por %p313, %p314
      %p316 = scmp.ne.s32.totalorder %s304, %s305
      %p317 = scmp.eq.s32.totalorder %s41, 1
      %p318 = por %p316, %p317
      %p320 = scmp.ne.s32.totalorder %s305, %s319
      %p321 = scmp.eq.s32.totalorder %s41, 0
      %p322 = por %p320, %p321
      %s324 = sadd.s32 %s323, 1
      %p327 = scmp.eq.s32.totalorder %s35, 1
      %p328 = scmp.ne.s32.totalorder %s323, %s325
      %p329 = scmp.eq.s32.totalorder %s35, 0
      %p330 = por %p328, %p329
      %p331 = scmp.ne.s32.totalorder %s323, %s325
      %p332 = scmp.eq.s32.totalorder %s40, 1
      %p333 = por %p331, %p332
      %p334 = scmp.ne.s32.totalorder %s325, %s326
      %p335 = scmp.eq.s32.totalorder %s40, 0
      %p336 = por %p334, %p335
      %p337 = scmp.ne.s32.totalorder %s325, %s326
      %p338 = scmp.eq.s32.totalorder %s41, 1
      %p339 = por %p337, %p338
      %p341 = scmp.ne.s32.totalorder %s326, %s340
      %p342 = scmp.eq.s32.totalorder %s41, 0
      %p343 = por %p341, %p342
      %s345 = sadd.s32 %s344, 1
      %p348 = scmp.eq.s32.totalorder %s35, 1
      %p349 = scmp.ne.s32.totalorder %s344, %s346
      %p350 = scmp.eq.s32.totalorder %s35, 0
      %p351 = por %p349, %p350
      %p352 = scmp.ne.s32.totalorder %s344, %s346
      %p353 = scmp.eq.s32.totalorder %s40, 1
      %p354 = por %p352, %p353
      %p355 = scmp.ne.s32.totalorder %s346, %s347
      %p356 = scmp.eq.s32.totalorder %s40, 0
      %p357 = por %p355, %p356
      %p358 = scmp.ne.s32.totalorder %s346, %s347
      %p359 = scmp.eq.s32.totalorder %s41, 1
      %p360 = por %p358, %p359
      %p362 = scmp.ne.s32.totalorder %s347, %s361
      %p363 = scmp.eq.s32.totalorder %s41, 0
      %p364 = por %p362, %p363
      %s366 = sadd.s32 %s365, 1
      %p369 = scmp.eq.s32.totalorder %s35, 1
      %p370 = scmp.ne.s32.totalorder %s365, %s367
      %p371 = scmp.eq.s32.totalorder %s35, 0
      %p372 = por %p370, %p371
      %p373 = scmp.ne.s32.totalorder %s365, %s367
      %p374 = scmp.eq.s32.totalorder %s40, 1
      %p375 = por %p373, %p374
      %p376 = scmp.ne.s32.totalorder %s367, %s368
      %p377 = scmp.eq.s32.totalorder %s40, 0
      %p378 = por %p376, %p377
      %p379 = scmp.ne.s32.totalorder %s367, %s368
      %p380 = scmp.eq.s32.totalorder %s41, 1
      %p381 = por %p379, %p380
      %p383 = scmp.ne.s32.totalorder %s368, %s382
      %p384 = scmp.eq.s32.totalorder %s41, 0
      %p385 = por %p383, %p384
      %s387 = sadd.s32 %s386, 1
      %p390 = scmp.eq.s32.totalorder %s35, 1
      %p391 = scmp.ne.s32.totalorder %s386, %s388
      %p392 = scmp.eq.s32.totalorder %s35, 0
      %p393 = por %p391, %p392
      %p394 = scmp.ne.s32.totalorder %s386, %s388
      %p395 = scmp.eq.s32.totalorder %s40, 1
      %p396 = por %p394, %p395
      %p397 = scmp.ne.s32.totalorder %s388, %s389
      %p398 = scmp.eq.s32.totalorder %s40, 0
      %p399 = por %p397, %p398
      %p400 = scmp.ne.s32.totalorder %s388, %s389
      %p401 = scmp.eq.s32.totalorder %s41, 1
      %p402 = por %p400, %p401
      %p404 = scmp.ne.s32.totalorder %s389, %s403
      %p405 = scmp.eq.s32.totalorder %s41, 0
      %p406 = por %p404, %p405
      %s408 = sadd.s32 %s407, 1
      %p411 = scmp.eq.s32.totalorder %s35, 1
      %p412 = scmp.ne.s32.totalorder %s407, %s409
      %p413 = scmp.eq.s32.totalorder %s35, 0
      %p414 = por %p412, %p413
      %p415 = scmp.ne.s32.totalorder %s407, %s409
      %p416 = scmp.eq.s32.totalorder %s40, 1
      %p417 = por %p415, %p416
      %p418 = scmp.ne.s32.totalorder %s409, %s410
      %p419 = scmp.eq.s32.totalorder %s40, 0
      %p420 = por %p418, %p419
      %p421 = scmp.ne.s32.totalorder %s409, %s410
      %p422 = scmp.eq.s32.totalorder %s41, 1
      %p423 = por %p421, %p422
      %p425 = scmp.ne.s32.totalorder %s410, %s424
      %p426 = scmp.eq.s32.totalorder %s41, 0
      %p427 = por %p425, %p426
      %s429 = sadd.s32 %s428, 1
      %p432 = scmp.eq.s32.totalorder %s35, 1
      %p433 = scmp.ne.s32.totalorder %s428, %s430
      %p434 = scmp.eq.s32.totalorder %s35, 0
      %p435 = por %p433, %p434
      %p436 = scmp.ne.s32.totalorder %s428, %s430
      %p437 = scmp.eq.s32.totalorder %s40, 1
      %p438 = por %p436, %p437
      %p439 = scmp.ne.s32.totalorder %s430, %s431
      %p440 = scmp.eq.s32.totalorder %s40, 0
      %p441 = por %p439, %p440
      %p442 = scmp.ne.s32.totalorder %s430, %s431
      %p443 = scmp.eq.s32.totalorder %s41, 1
      %p444 = por %p442, %p443
      %p446 = scmp.ne.s32.totalorder %s431, %s445
      %p447 = scmp.eq.s32.totalorder %s41, 0
      %p448 = por %p446, %p447
      %s450 = sadd.s32 %s449, 1
      %p453 = scmp.eq.s32.totalorder %s35, 1
      %p454 = scmp.ne.s32.totalorder %s449, %s451
      %p455 = scmp.eq.s32.totalorder %s35, 0
      %p456 = por %p454, %p455
      %p457 = scmp.ne.s32.totalorder %s449, %s451
      %p458 = scmp.eq.s32.totalorder %s40, 1
      %p459 = por %p457, %p458
      %p460 = scmp.ne.s32.totalorder %s451, %s452
      %p461 = scmp.eq.s32.totalorder %s40, 0
      %p462 = por %p460, %p461
      %p463 = scmp.ne.s32.totalorder %s451, %s452
      %p464 = scmp.eq.s32.totalorder %s41, 1
      %p465 = por %p463, %p464
      %p467 = scmp.ne.s32.totalorder %s452, %s466
      %p468 = scmp.eq.s32.totalorder %s41, 0
      %p469 = por %p467, %p468
      %s471 = sadd.s32 %s470, 1
      %p474 = scmp.eq.s32.totalorder %s35, 1
      %p475 = scmp.ne.s32.totalorder %s470, %s472
      %p476 = scmp.eq.s32.totalorder %s35, 0
      %p477 = por %p475, %p476
      %p478 = scmp.ne.s32.totalorder %s470, %s472
      %p479 = scmp.eq.s32.totalorder %s40, 1
      %p480 = por %p478, %p479
      %p481 = scmp.ne.s32.totalorder %s472, %s473
      %p482 = scmp.eq.s32.totalorder %s40, 0
      %p483 = por %p481, %p482
      %p484 = scmp.ne.s32.totalorder %s472, %s473
      %p485 = scmp.eq.s32.totalorder %s41, 1
      %p486 = por %p484, %p485
      %p488 = scmp.ne.s32.totalorder %s473, %s487
      %p489 = scmp.eq.s32.totalorder %s41, 0
      %p490 = por %p488, %p489
      %s492 = sadd.s32 %s491, 1
      %p495 = scmp.eq.s32.totalorder %s35, 1
      %p496 = scmp.ne.s32.totalorder %s491, %s493
      %p497 = scmp.eq.s32.totalorder %s35, 0
      %p498 = por %p496, %p497
      %p499 = scmp.ne.s32.totalorder %s491, %s493
      %p500 = scmp.eq.s32.totalorder %s40, 1
      %p501 = por %p499, %p500
      %p502 = scmp.ne.s32.totalorder %s493, %s494
      %p503 = scmp.eq.s32.totalorder %s40, 0
      %p504 = por %p502, %p503
      %p505 = scmp.ne.s32.totalorder %s493, %s494
      %p506 = scmp.eq.s32.totalorder %s41, 1
      %p507 = por %p505, %p506
      %p509 = scmp.ne.s32.totalorder %s494, %s508
      %p510 = scmp.eq.s32.totalorder %s41, 0
      %p511 = por %p509, %p510
      %s512 = ssub.s32 %s42, %s61
      %s513 = ssub.s32 %s43, %s57
      %s514 = sor.u32 %s512, %s513
      %p515 = scmp.eq.s32.totalorder %s514, 0
      %s517 = sadd.s32 %s516, 1
      %s518 = scalar_select %p515, %s516, %s517
      %p521 = pneg %p515
      %p522 = scmp.eq.s32.totalorder %s35, 1
      %p523 = por %p521, %p522
      %p524 = scmp.ne.s32.totalorder %s516, %s519
      %p525 = scmp.eq.s32.totalorder %s35, 0
      %p526 = por %p524, %p525
      %p527 = scmp.ne.s32.totalorder %s516, %s519
      %p528 = scmp.eq.s32.totalorder %s40, 1
      %p529 = por %p527, %p528
      %p530 = scmp.ne.s32.totalorder %s519, %s520
      %p531 = scmp.eq.s32.totalorder %s40, 0
      %p532 = por %p530, %p531
      %p533 = scmp.ne.s32.totalorder %s519, %s520
      %p534 = scmp.eq.s32.totalorder %s41, 1
      %p535 = por %p533, %p534
      %p537 = scmp.ne.s32.totalorder %s520, %s536
      %p538 = scmp.eq.s32.totalorder %s41, 0
      %p539 = por %p537, %p538
      %p540 = scmp.le.s32.totalorder 1, %s35
      %p541 = scmp.lt.s32.totalorder %s35, 3
      %p542 = pnand %p540, %p541
      %p543 = pneg %p542
      // Predicated region
      $region9: #{tpu_custom_call.1} parent=5 // pred_check
        _
      $region10: #{tpu_custom_call.1} parent=5 // pred_check_branch
        %545 = sbr.rel (%p542) target = $region12
      $region11: #{tpu_custom_call.1} parent=5 // pred_region
        %s546 = ssub.s32 %s35, 1
        // Predicated region
        $region13: #{tpu_custom_call.1} parent=11 // pred_check
          %p547 = pneg %p189
        $region14: #{tpu_custom_call.1} parent=11 // pred_check_branch
          %549 = sbr.rel (%p547) target = $region16
        $region15: #{tpu_custom_call.1} parent=11 // pred_region
          _
        $region16: #{tpu_custom_call.1} parent=11 // pred_fallthru
          _
        // Predicated region
        $region17: #{tpu_custom_call.1} parent=11 // pred_check
          %p550 = pneg %p210
        $region18: #{tpu_custom_call.1} parent=11 // pred_check_branch
          %552 = sbr.rel (%p550) target = $region20
        $region19: #{tpu_custom_call.1} parent=11 // pred_region
          _
        $region20: #{tpu_custom_call.1} parent=11 // pred_fallthru
          _
        // Predicated region
        $region21: #{tpu_custom_call.1} parent=11 // pred_check
          %p553 = pneg %p231
        $region22: #{tpu_custom_call.1} parent=11 // pred_check_branch
          %555 = sbr.rel (%p553) target = $region24
        $region23: #{tpu_custom_call.1} parent=11 // pred_region
          _
        $region24: #{tpu_custom_call.1} parent=11 // pred_fallthru
          _
        // Predicated region
        $region25: #{tpu_custom_call.1} parent=11 // pred_check
          %p556 = pneg %p252
        $region26: #{tpu_custom_call.1} parent=11 // pred_check_branch
          %558 = sbr.rel (%p556) target = $region28
        $region27: #{tpu_custom_call.1} parent=11 // pred_region
          %s560 = ssub.s32 16, 16
          %561 = vsyncadd [#allocation10], %s560
          %s563 = sshll.u32 [#allocation9], 4
          %s564 = int_to_ptr.vmem [resolvable:$true] %s563
          %566 = dma.hbm_to_vmem [thread:$0]  %s7, 16, %s564, [#allocation10]
        $region28: #{tpu_custom_call.1} parent=11 // pred_fallthru
          _
        // Predicated region
        $region29: #{tpu_custom_call.1} parent=11 // pred_check
          %p567 = pneg %p273
        $region30: #{tpu_custom_call.1} parent=11 // pred_check_branch
          %569 = sbr.rel (%p567) target = $region32
        $region31: #{tpu_custom_call.1} parent=11 // pred_region
          _
        $region32: #{tpu_custom_call.1} parent=11 // pred_fallthru
          _
        // Predicated region
        $region33: #{tpu_custom_call.1} parent=11 // pred_check
          %p570 = pneg %p294
        $region34: #{tpu_custom_call.1} parent=11 // pred_check_branch
          %572 = sbr.rel (%p570) target = $region36
        $region35: #{tpu_custom_call.1} parent=11 // pred_region
          %s574 = ssub.s32 16, 16
          %575 = vsyncadd [#allocation10], %s574
          %s577 = sshll.u32 [#allocation11], 4
          %s578 = int_to_ptr.vmem [resolvable:$true] %s577
          %580 = dma.hbm_to_vmem [thread:$0]  %s9, 16, %s578, [#allocation10]
        $region36: #{tpu_custom_call.1} parent=11 // pred_fallthru
          _
        // Predicated region
        $region37: #{tpu_custom_call.1} parent=11 // pred_check
          %p581 = pneg %p315
        $region38: #{tpu_custom_call.1} parent=11 // pred_check_branch
          %583 = sbr.rel (%p581) target = $region40
        $region39: #{tpu_custom_call.1} parent=11 // pred_region
          _
        $region40: #{tpu_custom_call.1} parent=11 // pred_fallthru
          _
        // Predicated region
        $region41: #{tpu_custom_call.1} parent=11 // pred_check
          %p584 = pneg %p336
        $region42: #{tpu_custom_call.1} parent=11 // pred_check_branch
          %586 = sbr.rel (%p584) target = $region44
        $region43: #{tpu_custom_call.1} parent=11 // pred_region
          %s588 = ssub.s32 16, 16
          %589 = vsyncadd [#allocation13], %s588
          %s591 = sshll.u32 [#allocation12], 4
          %s592 = int_to_ptr.vmem [resolvable:$true] %s591
          %594 = dma.hbm_to_vmem [thread:$0]  %s11, 16, %s592, [#allocation13]
        $region44: #{tpu_custom_call.1} parent=11 // pred_fallthru
          _
        // Predicated region
        $region45: #{tpu_custom_call.1} parent=11 // pred_check
          %p595 = pneg %p357
        $region46: #{tpu_custom_call.1} parent=11 // pred_check_branch
          %597 = sbr.rel (%p595) target = $region48
        $region47: #{tpu_custom_call.1} parent=11 // pred_region
          %s599 = ssub.s32 16, 16
          %600 = vsyncadd [#allocation13], %s599
          %s602 = sshll.u32 [#allocation14], 4
          %s603 = int_to_ptr.vmem [resolvable:$true] %s602
          %605 = dma.hbm_to_vmem [thread:$0]  %s12, 16, %s603, [#allocation13]
        $region48: #{tpu_custom_call.1} parent=11 // pred_fallthru
          _
        // Predicated region
        $region49: #{tpu_custom_call.1} parent=11 // pred_check
          %p606 = pneg %p378
        $region50: #{tpu_custom_call.1} parent=11 // pred_check_branch
          %608 = sbr.rel (%p606) target = $region52
        $region51: #{tpu_custom_call.1} parent=11 // pred_region
          %s610 = ssub.s32 16, 16
          %611 = vsyncadd [#allocation16], %s610
          %s613 = sshll.u32 [#allocation15], 4
          %s614 = int_to_ptr.vmem [resolvable:$true] %s613
          %616 = dma.hbm_to_vmem [thread:$0]  %s13, 16, %s614, [#allocation16]
        $region52: #{tpu_custom_call.1} parent=11 // pred_fallthru
          _
        // Predicated region
        $region53: #{tpu_custom_call.1} parent=11 // pred_check
          %p617 = pneg %p399
        $region54: #{tpu_custom_call.1} parent=11 // pred_check_branch
          %619 = sbr.rel (%p617) target = $region56
        $region55: #{tpu_custom_call.1} parent=11 // pred_region
          _
        $region56: #{tpu_custom_call.1} parent=11 // pred_fallthru
          _
        // Predicated region
        $region57: #{tpu_custom_call.1} parent=11 // pred_check
          %p620 = pneg %p420
        $region58: #{tpu_custom_call.1} parent=11 // pred_check_branch
          %622 = sbr.rel (%p620) target = $region60
        $region59: #{tpu_custom_call.1} parent=11 // pred_region
          _
        $region60: #{tpu_custom_call.1} parent=11 // pred_fallthru
          _
        // Predicated region
        $region61: #{tpu_custom_call.1} parent=11 // pred_check
          %p623 = pneg %p441
        $region62: #{tpu_custom_call.1} parent=11 // pred_check_branch
          %625 = sbr.rel (%p623) target = $region64
        $region63: #{tpu_custom_call.1} parent=11 // pred_region
          _
        $region64: #{tpu_custom_call.1} parent=11 // pred_fallthru
          _
        // Predicated region
        $region65: #{tpu_custom_call.1} parent=11 // pred_check
          %p626 = pneg %p462
        $region66: #{tpu_custom_call.1} parent=11 // pred_check_branch
          %628 = sbr.rel (%p626) target = $region68
        $region67: #{tpu_custom_call.1} parent=11 // pred_region
          _
        $region68: #{tpu_custom_call.1} parent=11 // pred_fallthru
          _
        // Predicated region
        $region69: #{tpu_custom_call.1} parent=11 // pred_check
          %p629 = pneg %p483
        $region70: #{tpu_custom_call.1} parent=11 // pred_check_branch
          %631 = sbr.rel (%p629) target = $region72
        $region71: #{tpu_custom_call.1} parent=11 // pred_region
          _
        $region72: #{tpu_custom_call.1} parent=11 // pred_fallthru
          _
        // Predicated region
        $region73: #{tpu_custom_call.1} parent=11 // pred_check
          %p632 = pneg %p504
        $region74: #{tpu_custom_call.1} parent=11 // pred_check_branch
          %634 = sbr.rel (%p632) target = $region76
        $region75: #{tpu_custom_call.1} parent=11 // pred_region
          _
        $region76: #{tpu_custom_call.1} parent=11 // pred_fallthru
          _
      $region12: #{tpu_custom_call.1} parent=5 // pred_fallthru
        _
      %p635 = scmp.lt.s32.totalorder %s35, 2
      // Predicated region
      $region77: #{tpu_custom_call.1} parent=5 // pred_check
        %p636 = pneg %p635
      $region78: #{tpu_custom_call.1} parent=5 // pred_check_branch
        %638 = sbr.rel (%p636) target = $region80
      $region79: #{tpu_custom_call.1} parent=5 // pred_region
        // Predicated region
        $region81: #{tpu_custom_call.1} parent=79 // pred_check
          %p639 = pneg %p76
        $region82: #{tpu_custom_call.1} parent=79 // pred_check_branch
          %641 = sbr.rel (%p639) target = $region84
        $region83: #{tpu_custom_call.1} parent=79 // pred_region
          %p642 = scmp.lt.s32.totalorder %s42, 1
          %s643 = scalar_select %p642, %s42, 1
          %p644 = scmp.lt.s32.totalorder %s43, 0
          %s645 = scalar_select %p644, %s43, 0
          %s646 = sadd.s32 %s645, %s643
          %s647 = smul.addr %s646, 8
          %s648 = scalar_lea.vmem %s0, %s647
        $region84: #{tpu_custom_call.1} parent=79 // pred_fallthru
          _
        // Predicated region
        $region85: #{tpu_custom_call.1} parent=79 // pred_check
          %p649 = pneg %p104
        $region86: #{tpu_custom_call.1} parent=79 // pred_check_branch
          %651 = sbr.rel (%p649) target = $region88
        $region87: #{tpu_custom_call.1} parent=79 // pred_region
          %p652 = scmp.lt.s32.totalorder %s42, 1
          %s653 = scalar_select %p652, %s42, 1
          %p654 = scmp.lt.s32.totalorder %s44, 0
          %s655 = scalar_select %p654, %s44, 0
          %s656 = sadd.s32 %s655, %s653
          %s657 = smul.addr %s656, 8
          %s658 = scalar_lea.vmem %s1, %s657
        $region88: #{tpu_custom_call.1} parent=79 // pred_fallthru
          _
        // Predicated region
        $region89: #{tpu_custom_call.1} parent=79 // pred_check
          %p659 = pneg %p132
        $region90: #{tpu_custom_call.1} parent=79 // pred_check_branch
          %661 = sbr.rel (%p659) target = $region92
        $region91: #{tpu_custom_call.1} parent=79 // pred_region
          %p662 = scmp.lt.s32.totalorder %s42, 1
          %s663 = scalar_select %p662, %s42, 1
          %p664 = scmp.lt.s32.totalorder %s44, 0
          %s665 = scalar_select %p664, %s44, 0
          %s666 = sadd.s32 %s665, %s663
          %s667 = smul.addr %s666, 8
          %s668 = scalar_lea.vmem %s2, %s667
        $region92: #{tpu_custom_call.1} parent=79 // pred_fallthru
          _
        // Predicated region
        $region93: #{tpu_custom_call.1} parent=79 // pred_check
          %p669 = pneg %p162
        $region94: #{tpu_custom_call.1} parent=79 // pred_check_branch
          %671 = sbr.rel (%p669) target = $region96
        $region95: #{tpu_custom_call.1} parent=79 // pred_region
          %s672 = sand.u32 %s152, 1
          %s673 = scalar_lea.sflag [#allocation7], %s672
          %s674 = sand.u32 %s152, 1
          %s675 = smul.addr %s674, 4
          %s676 = scalar_lea.vmem [#allocation6], %s675
          %s678 = ssub.s32 64, 64
          %679 = vsyncadd %s673, %s678
          %s680 = sadd.s32 %s44, %s43
          %s681 = sadd.s32 %s680, %s42
          %s682 = smul.addr %s681, 64
          %s683 = scalar_lea.hbm %s3, %s682
          %s685 = sshll.u32 %s676, 4
          %s686 = int_to_ptr.vmem [resolvable:$true] %s685
          %688 = dma.hbm_to_vmem [thread:$0]  %s683, 64, %s686, %s673
        $region96: #{tpu_custom_call.1} parent=79 // pred_fallthru
          _
      $region80: #{tpu_custom_call.1} parent=5 // pred_fallthru
        _
      %p689 = scmp.le.s32.totalorder 1, %s35
      %p690 = scmp.lt.s32.totalorder %s35, 3
      %p691 = pnand %p689, %p690
      %p692 = pneg %p691
      // Predicated region
      $region97: #{tpu_custom_call.1} parent=5 // pred_check
        _
      $region98: #{tpu_custom_call.1} parent=5 // pred_check_branch
        %694 = sbr.rel (%p691) target = $region100
      $region99: #{tpu_custom_call.1} parent=5 // pred_region
        %s695 = ssub.s32 %s35, 1
        %s696 = sand.u32 %s155, 1
        %s697 = scalar_lea.sflag [#allocation7], %s696
        %s698 = sand.u32 %s155, 1
        %s699 = smul.addr %s698, 4
        %s700 = scalar_lea.vmem [#allocation6], %s699
        // Predicated region
        $region101: #{tpu_custom_call.1} parent=99 // pred_check
          %p701 = pneg %p168
        $region102: #{tpu_custom_call.1} parent=99 // pred_check_branch
          %703 = sbr.rel (%p701) target = $region104
        $region103: #{tpu_custom_call.1} parent=99 // pred_region
          %704 = dma.done %s697, 64
        $region104: #{tpu_custom_call.1} parent=99 // pred_fallthru
          _
        // Predicated region
        $region105: #{tpu_custom_call.1} parent=99 // pred_check
          %p705 = pneg %p252
        $region106: #{tpu_custom_call.1} parent=99 // pred_check_branch
          %707 = sbr.rel (%p705) target = $region108
        $region107: #{tpu_custom_call.1} parent=99 // pred_region
          %708 = dma.done [#allocation10], 16
        $region108: #{tpu_custom_call.1} parent=99 // pred_fallthru
          _
        // Predicated region
        $region109: #{tpu_custom_call.1} parent=99 // pred_check
          %p709 = pneg %p294
        $region110: #{tpu_custom_call.1} parent=99 // pred_check_branch
          %711 = sbr.rel (%p709) target = $region112
        $region111: #{tpu_custom_call.1} parent=99 // pred_region
          %712 = dma.done [#allocation10], 16
        $region112: #{tpu_custom_call.1} parent=99 // pred_fallthru
          _
        // Predicated region
        $region113: #{tpu_custom_call.1} parent=99 // pred_check
          %p713 = pneg %p336
        $region114: #{tpu_custom_call.1} parent=99 // pred_check_branch
          %715 = sbr.rel (%p713) target = $region116
        $region115: #{tpu_custom_call.1} parent=99 // pred_region
          %716 = dma.done [#allocation13], 16
        $region116: #{tpu_custom_call.1} parent=99 // pred_fallthru
          _
        // Predicated region
        $region117: #{tpu_custom_call.1} parent=99 // pred_check
          %p717 = pneg %p357
        $region118: #{tpu_custom_call.1} parent=99 // pred_check_branch
          %719 = sbr.rel (%p717) target = $region120
        $region119: #{tpu_custom_call.1} parent=99 // pred_region
          %720 = dma.done [#allocation13], 16
        $region120: #{tpu_custom_call.1} parent=99 // pred_fallthru
          _
        // Predicated region
        $region121: #{tpu_custom_call.1} parent=99 // pred_check
          %p721 = pneg %p378
        $region122: #{tpu_custom_call.1} parent=99 // pred_check_branch
          %723 = sbr.rel (%p721) target = $region124
        $region123: #{tpu_custom_call.1} parent=99 // pred_region
          %724 = dma.done [#allocation16], 16
        $region124: #{tpu_custom_call.1} parent=99 // pred_fallthru
          _
        %p725 = scmp.lt.s32.totalorder %s45, 1
        %s726 = scalar_select %p725, %s45, 1
        %p727 = scmp.lt.s32.totalorder %s46, 0
        %s728 = scalar_select %p727, %s46, 0
        %s729 = sadd.s32 %s728, %s726
        %s730 = smul.addr %s729, 8
        %s731 = scalar_lea.vmem %s0, %s730
        %p732 = pneg %p82
        %p733 = pneg %p79
        %p734 = scmp.lt.s32.totalorder %s45, 1
        %s735 = scalar_select %p734, %s45, 1
        %p736 = scmp.lt.s32.totalorder %s47, 0
        %s737 = scalar_select %p736, %s47, 0
        %s738 = sadd.s32 %s737, %s735
        %s739 = smul.addr %s738, 8
        %s740 = scalar_lea.vmem %s1, %s739
        %p741 = pneg %p110
        %p742 = pneg %p107
        %p743 = scmp.lt.s32.totalorder %s45, 1
        %s744 = scalar_select %p743, %s45, 1
        %p745 = scmp.lt.s32.totalorder %s47, 0
        %s746 = scalar_select %p745, %s47, 0
        %s747 = sadd.s32 %s746, %s744
        %s748 = smul.addr %s747, 8
        %s749 = scalar_lea.vmem %s2, %s748
        %p750 = pneg %p138
        %p751 = pneg %p135
        %s752 = sand.u32 %s155, 1
        %s753 = scalar_lea.sflag [#allocation7], %s752
        %s754 = sand.u32 %s155, 1
        %s755 = smul.addr %s754, 4
        %s756 = scalar_lea.vmem [#allocation6], %s755
        %p757 = pneg %p168
        %p758 = pneg %p165
        %p759 = pneg %p189
        %p760 = pneg %p186
        %p761 = pneg %p210
        %p762 = pneg %p207
        %p763 = pneg %p231
        %p764 = pneg %p228
        %p765 = pneg %p252
        %p766 = pneg %p249
        %p767 = pneg %p273
        %p768 = pneg %p270
        %p769 = pneg %p294
        %p770 = pneg %p291
        %p771 = pneg %p315
        %p772 = pneg %p312
        %p773 = pneg %p336
        %p774 = pneg %p333
        %p775 = pneg %p357
        %p776 = pneg %p354
        %p777 = pneg %p378
        %p778 = pneg %p375
        %p779 = pneg %p399
        %p780 = pneg %p396
        %p781 = pneg %p420
        %p782 = pneg %p417
        %p783 = pneg %p441
        %p784 = pneg %p438
        %p785 = pneg %p462
        %p786 = pneg %p459
        %p787 = pneg %p483
        %p788 = pneg %p480
        %p789 = pneg %p504
        %p790 = pneg %p501
        %p791 = pneg %p532
        %p792 = pneg %p529
        %s793 = sand.u32 %s519, 1
        %s794 = scalar_lea.sflag [#allocation8], %s793
        %s795 = sand.u32 %s519, 1
        %s796 = smul.addr %s795, 8
        %s797 = scalar_lea.vmem [#allocation17], %s796
        %p798 = scmp.lt.s32.totalorder %s45, 1
        %s799 = scalar_select %p798, %s45, 1
        %p800 = scmp.lt.s32.totalorder %s46, 0
        %s801 = scalar_select %p800, %s46, 0
        %s802 = sadd.s32 %s801, %s799
        %s803 = smul.addr %s802, 8
        %s804 = scalar_lea.vmem %s0, %s803
        %p805 = scmp.lt.s32.totalorder %s45, 1
        %s806 = scalar_select %p805, %s45, 1
        %p807 = scmp.lt.s32.totalorder %s47, 0
        %s808 = scalar_select %p807, %s47, 0
        %s809 = sadd.s32 %s808, %s806
        %s810 = smul.addr %s809, 8
        %s811 = scalar_lea.vmem %s1, %s810
        %p812 = scmp.lt.s32.totalorder %s45, 1
        %s813 = scalar_select %p812, %s45, 1
        %p814 = scmp.lt.s32.totalorder %s47, 0
        %s815 = scalar_select %p814, %s47, 0
        %s816 = sadd.s32 %s815, %s813
        %s817 = smul.addr %s816, 8
        %s818 = scalar_lea.vmem %s2, %s817
        %p820 = scmp.eq.s32.totalorder %s47, 0
        // Predicated region
        $region125: #{tpu_custom_call.1} parent=99 // pred_check
          %p821 = pneg %p820
        $region126: #{tpu_custom_call.1} parent=99 // pred_check_branch
          %823 = sbr.rel (%p821) target = $region128
        $region127: #{tpu_custom_call.1} parent=99 // pred_region
          %v824 = vld [vmem:[%s804] sm:$0xff]
          %v825 = vpack.c.bf16 %v824, %v824
          %v826 = vld [vmem:[%s4] sm:$0xf]
          %v827 = vld [vmem:[%s4 + $0x4] sm:$0xf]
          %v828 = vld [vmem:[%s4 + $0x8] sm:$0xf]
          %v829 = vld [vmem:[%s4 + $0xc] sm:$0xf]
          %v830 = vld [vmem:[%s5] sm:$0x1]
          %v832 = vlaneseq
          %v833 = vshrl.u32 %v832, 7
          %v834 = vsub.s32 0, %v833
          %v835 = vrot.slane %v830, %v834
          %v841 = vunpack.c.l.b16 %v826
          %v842 = vunpack.c.l.b16 %v827
          %v843 = vunpack.c.l.b16 %v828
          %v844 = vunpack.c.l.b16 %v829
          %v845 = vpack.c.b16 %v842, %v841
          %v846 = vpack.c.b16 %v844, %v843
          %vm849 = vcmask 261120
          %v851 = vsel %vm849, %v825, 0
          %853 = vmatprep.subr.bf16.mxu0 0
          %854 = vmatpush1.bf16.msra.mxu0 %v845
          %855 = vmatprep.subr.bf16.mxu0 0
          %856 = vmatpush1.bf16.msra.mxu0 %v846
          %857 = vmatprep.subr.bf16.mxu0 0
          %858 = vmatpush1.bf16.msra.mxu0 0
          %859 = vmatprep.subr.bf16.mxu0 0
          %860 = vmatpush1.bf16.msra.mxu0 0
          %861 = vmatprep.subr.bf16.mxu0 0
          %862 = vmatpush1.bf16.msra.mxu0 0
          %863 = vmatprep.subr.bf16.mxu0 0
          %864 = vmatpush1.bf16.msra.mxu0 0
          %865 = vmatprep.subr.bf16.mxu0 0
          %866 = vmatpush1.bf16.msra.mxu0 0
          %867 = vmatprep.subr.bf16.mxu0 0
          %868 = vmatpush1.bf16.msra.mxu0 0
          %869 = vmatprep.subr.bf16.mxu0 0
          %870 = vmatpush1.bf16.msra.mxu0 0
          %871 = vmatprep.subr.bf16.mxu0 0
          %872 = vmatpush1.bf16.msra.mxu0 0
          %873 = vmatprep.subr.bf16.mxu0 0
          %874 = vmatpush1.bf16.msra.mxu0 0
          %875 = vmatprep.subr.bf16.mxu0 0
          %876 = vmatpush1.bf16.msra.mxu0 0
          %877 = vmatprep.subr.bf16.mxu0 0
          %878 = vmatpush1.bf16.msra.mxu0 0
          %879 = vmatprep.subr.bf16.mxu0 0
          %880 = vmatpush1.bf16.msra.mxu0 0
          %881 = vmatprep.subr.bf16.mxu0 0
          %882 = vmatpush1.bf16.msra.mxu0 0
          %883 = vmatprep.subr.bf16.mxu0 0
          %884 = vmatpush1.bf16.msra.mxu0 0
          %885 = vmatprep.mubr.bf16.mxu0 0
          %886 = vmatmul.mubr.bf16.gmra.mrb[0].mxu0 %v851
          %v887 = vpop.f32.mrb[0].mxu0
          %v888 = vadd.f32 %v835, %v887
          %v889 = vpop.f32.mrb[0].mxu0
          %v890 = vpop.f32.mrb[0].mxu0
          %v891 = vpop.f32.mrb[0].mxu0
          %892 = vdwg.mxu0
          %v893 = vmul.f32 %v888, 0.35355338
          %v894 = vpack.c.bf16 %v893, %v893
          %vm895 = vcmask 257024
          %896 = vst.msk [vmem:[#allocation2] sm:$0xf] %vm895, %v894
          %vm897 = vcmask 7168
          %898 = vst.msk [vmem:[#allocation3] sm:$0xff] %vm897, -1e+30
          %899 = vst.msk [vmem:[#allocation3 + $0x8] sm:$0xff] %vm897, -1e+30
          %900 = vst.msk [vmem:[#allocation3 + $0x10] sm:$0xff] %vm897, -1e+30
          %901 = vst.msk [vmem:[#allocation3 + $0x18] sm:$0xff] %vm897, -1e+30
          %902 = vst.msk [vmem:[#allocation4] sm:$0xff] %vm897, 0.0
          %903 = vst.msk [vmem:[#allocation4 + $0x8] sm:$0xff] %vm897, 0.0
          %904 = vst.msk [vmem:[#allocation4 + $0x10] sm:$0xff] %vm897, 0.0
          %905 = vst.msk [vmem:[#allocation4 + $0x18] sm:$0xff] %vm897, 0.0
          %906 = vst.msk [vmem:[#allocation5] sm:$0xff] %vm849, 0.0
        $region128: #{tpu_custom_call.1} parent=99 // pred_fallthru
          _
        %v907 = vld [vmem:[%s811] sm:$0xff]
        %v908 = vpack.c.bf16 %v907, %v907
        %v909 = vld [vmem:[%s818] sm:$0xff]
        %v910 = vpack.c.bf16 %v909, %v909
        %v911 = vld [vmem:[%s6] sm:$0xf]
        %v912 = vld [vmem:[%s6 + $0x4] sm:$0xf]
        %v913 = vld [vmem:[%s6 + $0x8] sm:$0xf]
        %v914 = vld [vmem:[%s6 + $0xc] sm:$0xf]
        %v915 = vld [vmem:[#allocation9] sm:$0x1]
        %v917 = vlaneseq
        %v918 = vshrl.u32 %v917, 7
        %v919 = vsub.s32 0, %v918
        %v920 = vrot.slane %v915, %v919
        %v926 = vunpack.c.l.b16 %v911
        %v927 = vunpack.c.l.b16 %v912
        %v928 = vunpack.c.l.b16 %v913
        %v929 = vunpack.c.l.b16 %v914
        %v930 = vpack.c.b16 %v927, %v926
        %v931 = vpack.c.b16 %v929, %v928
        %vm934 = vcmask 261120
        %v936 = vsel %vm934, %v908, 0
        %938 = vmatprep.subr.bf16.mxu0 0
        %939 = vmatpush1.bf16.msra.mxu0 %v930
        %940 = vmatprep.subr.bf16.mxu0 0
        %941 = vmatpush1.bf16.msra.mxu0 %v931
        %942 = vmatprep.subr.bf16.mxu0 0
        %943 = vmatpush1.bf16.msra.mxu0 0
        %944 = vmatprep.subr.bf16.mxu0 0
        %945 = vmatpush1.bf16.msra.mxu0 0
        %946 = vmatprep.subr.bf16.mxu0 0
        %947 = vmatpush1.bf16.msra.mxu0 0
        %948 = vmatprep.subr.bf16.mxu0 0
        %949 = vmatpush1.bf16.msra.mxu0 0
        %950 = vmatprep.subr.bf16.mxu0 0
        %951 = vmatpush1.bf16.msra.mxu0 0
        %952 = vmatprep.subr.bf16.mxu0 0
        %953 = vmatpush1.bf16.msra.mxu0 0
        %954 = vmatprep.subr.bf16.mxu0 0
        %955 = vmatpush1.bf16.msra.mxu0 0
        %956 = vmatprep.subr.bf16.mxu0 0
        %957 = vmatpush1.bf16.msra.mxu0 0
        %958 = vmatprep.subr.bf16.mxu0 0
        %959 = vmatpush1.bf16.msra.mxu0 0
        %960 = vmatprep.subr.bf16.mxu0 0
        %961 = vmatpush1.bf16.msra.mxu0 0
        %962 = vmatprep.subr.bf16.mxu0 0
        %963 = vmatpush1.bf16.msra.mxu0 0
        %964 = vmatprep.subr.bf16.mxu0 0
        %965 = vmatpush1.bf16.msra.mxu0 0
        %966 = vmatprep.subr.bf16.mxu0 0
        %967 = vmatpush1.bf16.msra.mxu0 0
        %968 = vmatprep.subr.bf16.mxu0 0
        %969 = vmatpush1.bf16.msra.mxu0 0
        %970 = vmatprep.mubr.bf16.mxu0 0
        %971 = vmatmul.mubr.bf16.gmra.mrb[0].mxu0 %v936
        %v972 = vpop.f32.mrb[0].mxu0
        %v973 = vadd.f32 %v920, %v972
        %v974 = vpop.f32.mrb[0].mxu0
        %v975 = vpop.f32.mrb[0].mxu0
        %v976 = vpop.f32.mrb[0].mxu0
        %977 = vdwg.mxu0
        %v978 = vpack.c.bf16 %v973, %v973
        %v979 = vld [vmem:[%s8] sm:$0xf]
        %v980 = vld [vmem:[%s8 + $0x4] sm:$0xf]
        %v981 = vld [vmem:[%s8 + $0x8] sm:$0xf]
        %v982 = vld [vmem:[%s8 + $0xc] sm:$0xf]
        %v983 = vld [vmem:[#allocation11] sm:$0x1]
        %v985 = vlaneseq
        %v986 = vshrl.u32 %v985, 7
        %v987 = vsub.s32 0, %v986
        %v988 = vrot.slane %v983, %v987
        %v994 = vunpack.c.l.b16 %v979
        %v995 = vunpack.c.l.b16 %v980
        %v996 = vunpack.c.l.b16 %v981
        %v997 = vunpack.c.l.b16 %v982
        %v998 = vpack.c.b16 %v995, %v994
        %v999 = vpack.c.b16 %v997, %v996
        %v1003 = vsel %vm934, %v910, 0
        %1005 = vmatprep.subr.bf16.mxu0 0
        %1006 = vmatpush1.bf16.msra.mxu0 %v998
        %1007 = vmatprep.subr.bf16.mxu0 0
        %1008 = vmatpush1.bf16.msra.mxu0 %v999
        %1009 = vmatprep.subr.bf16.mxu0 0
        %1010 = vmatpush1.bf16.msra.mxu0 0
        %1011 = vmatprep.subr.bf16.mxu0 0
        %1012 = vmatpush1.bf16.msra.mxu0 0
        %1013 = vmatprep.subr.bf16.mxu0 0
        %1014 = vmatpush1.bf16.msra.mxu0 0
        %1015 = vmatprep.subr.bf16.mxu0 0
        %1016 = vmatpush1.bf16.msra.mxu0 0
        %1017 = vmatprep.subr.bf16.mxu0 0
        %1018 = vmatpush1.bf16.msra.mxu0 0
        %1019 = vmatprep.subr.bf16.mxu0 0
        %1020 = vmatpush1.bf16.msra.mxu0 0
        %1021 = vmatprep.subr.bf16.mxu0 0
        %1022 = vmatpush1.bf16.msra.mxu0 0
        %1023 = vmatprep.subr.bf16.mxu0 0
        %1024 = vmatpush1.bf16.msra.mxu0 0
        %1025 = vmatprep.subr.bf16.mxu0 0
        %1026 = vmatpush1.bf16.msra.mxu0 0
        %1027 = vmatprep.subr.bf16.mxu0 0
        %1028 = vmatpush1.bf16.msra.mxu0 0
        %1029 = vmatprep.subr.bf16.mxu0 0
        %1030 = vmatpush1.bf16.msra.mxu0 0
        %1031 = vmatprep.subr.bf16.mxu0 0
        %1032 = vmatpush1.bf16.msra.mxu0 0
        %1033 = vmatprep.subr.bf16.mxu0 0
        %1034 = vmatpush1.bf16.msra.mxu0 0
        %1035 = vmatprep.subr.bf16.mxu0 0
        %1036 = vmatpush1.bf16.msra.mxu0 0
        %1037 = vmatprep.mubr.bf16.mxu0 0
        %1038 = vmatmul.mubr.bf16.gmra.mrb[0].mxu0 %v1003
        %v1039 = vpop.f32.mrb[0].mxu0
        %v1040 = vadd.f32 %v988, %v1039
        %v1041 = vpop.f32.mrb[0].mxu0
        %v1042 = vpop.f32.mrb[0].mxu0
        %v1043 = vpop.f32.mrb[0].mxu0
        %1044 = vdwg.mxu0
        %v1045 = vpack.c.bf16 %v1040, %v1040
        %v1046 = vld [vmem:[%s700] sm:$0xf]
        %v1047 = vunpack.c.l.bf16 %v1046
        %v1048 = vld [vmem:[#allocation2] sm:$0xf]
        %vm1049 = vcmask 64512
        %v1051 = vsel %vm1049, %v1048, 0
        %v1054 = vsel %vm1049, %v978, 0
        %1056 = vmatprep.subr.bf16.mxu0 0
        %1057 = vmatpush1.bf16.xpose.msra.mxu0 %v1054
        %1058 = vmatprep.subr.bf16.mxu0 0
        %1059 = vmatpush1.bf16.xpose.msra.mxu0 0
        %1060 = vmatprep.subr.bf16.mxu0 0
        %1061 = vmatpush1.bf16.xpose.msra.mxu0 0
        %1062 = vmatprep.subr.bf16.mxu0 0
        %1063 = vmatpush1.bf16.xpose.msra.mxu0 0
        %1064 = vmatprep.subr.bf16.mxu0 0
        %1065 = vmatpush1.bf16.xpose.msra.mxu0 0
        %1066 = vmatprep.subr.bf16.mxu0 0
        %1067 = vmatpush1.bf16.xpose.msra.mxu0 0
        %1068 = vmatprep.subr.bf16.mxu0 0
        %1069 = vmatpush1.bf16.xpose.msra.mxu0 0
        %1070 = vmatprep.subr.bf16.mxu0 0
        %1071 = vmatpush1.bf16.xpose.msra.mxu0 0
        %1072 = vmatprep.subr.bf16.mxu0 0
        %1073 = vmatpush1.bf16.xpose.msra.mxu0 0
        %1074 = vmatprep.subr.bf16.mxu0 0
        %1075 = vmatpush1.bf16.xpose.msra.mxu0 0
        %1076 = vmatprep.subr.bf16.mxu0 0
        %1077 = vmatpush1.bf16.xpose.msra.mxu0 0
        %1078 = vmatprep.subr.bf16.mxu0 0
        %1079 = vmatpush1.bf16.xpose.msra.mxu0 0
        %1080 = vmatprep.subr.bf16.mxu0 0
        %1081 = vmatpush1.bf16.xpose.msra.mxu0 0
        %1082 = vmatprep.subr.bf16.mxu0 0
        %1083 = vmatpush1.bf16.xpose.msra.mxu0 0
        %1084 = vmatprep.subr.bf16.mxu0 0
        %1085 = vmatpush1.bf16.xpose.msra.mxu0 0
        %1086 = vmatprep.subr.bf16.mxu0 0
        %1087 = vmatpush1.bf16.xpose.msra.mxu0 0
        %1088 = vmatprep.mubr.bf16.mxu0 0
        %1089 = vmatmul.mubr.bf16.gmra.mrb[0].mxu0 %v1051
        %v1090 = vpop.f32.mrb[0].mxu0
        %v1091 = vadd.f32 %v1047, %v1090
        %v1092 = vpop.f32.mrb[0].mxu0
        %v1093 = vpop.f32.mrb[0].mxu0
        %v1094 = vpop.f32.mrb[0].mxu0
        %1095 = vdwg.mxu0
        %v1096 = vld [vmem:[#allocation3] sm:$0xff]
        %v1097 = vsel %vm1049, %v1091, -inf
        %1098 = vmax.xlane.f32.xlu0 %v1097
        %v1099 = vpop.xlane.xlu0 %1098
        %v1100 = vmax.f32 %v1096, %v1099
        %v1101 = vsub.f32 %v1096, %v1100
        %v1102 = vmul.f32 %v1101, 1.442695
        %v1103 = vpow.pop %v1102
        %1105 = vset.pattern.permute.xlu0 0
        %1106 = vperm.xlu0 %1105, %v1100
        %v1107 = vpop.permute.xlu0 %1106
        %v1109 = vsub.f32 %v1091, %v1107
        %v1110 = vmul.f32 %v1109, 1.442695
        %v1111 = vpow.pop %v1110
        %v1112 = vld [vmem:[#allocation4] sm:$0xff]
        %v1113 = vmul.f32 %v1103, %v1112
        %v1114 = vsel %vm1049, %v1111, 0.0
        %1115 = vadd.xlane.f32.xlu0 %v1114
        %v1116 = vpop.xlane.xlu0 %1115
        %v1117 = vadd.f32 %v1113, %v1116
        %vm1118 = vcmask 7168
        %1119 = vst.msk [vmem:[#allocation4] sm:$0xff] %vm1118, %v1117
        %v1120 = vld [vmem:[#allocation5] sm:$0xff]
        %1122 = vset.pattern.permute.xlu0 0
        %1123 = vperm.xlu0 %1122, %v1103
        %v1124 = vpop.permute.xlu0 %1123
        %v1126 = vmul.f32 %v1124, %v1120
        %v1127 = vpack.c.bf16 %v1111, %v1111
        %v1129 = vsel %vm1049, %v1127, 0
        %vm1131 = vcmask 1043456
        %v1133 = vsel %vm1131, %v1045, 0
        %1135 = vmatprep.subr.bf16.mxu0 0
        %1136 = vmatpush1.bf16.msra.mxu0 %v1133
        %1137 = vmatprep.subr.bf16.mxu0 0
        %1138 = vmatpush1.bf16.msra.mxu0 0
        %1139 = vmatprep.subr.bf16.mxu0 0
        %1140 = vmatpush1.bf16.msra.mxu0 0
        %1141 = vmatprep.subr.bf16.mxu0 0
        %1142 = vmatpush1.bf16.msra.mxu0 0
        %1143 = vmatprep.subr.bf16.mxu0 0
        %1144 = vmatpush1.bf16.msra.mxu0 0
        %1145 = vmatprep.subr.bf16.mxu0 0
        %1146 = vmatpush1.bf16.msra.mxu0 0
        %1147 = vmatprep.subr.bf16.mxu0 0
        %1148 = vmatpush1.bf16.msra.mxu0 0
        %1149 = vmatprep.subr.bf16.mxu0 0
        %1150 = vmatpush1.bf16.msra.mxu0 0
        %1151 = vmatprep.subr.bf16.mxu0 0
        %1152 = vmatpush1.bf16.msra.mxu0 0
        %1153 = vmatprep.subr.bf16.mxu0 0
        %1154 = vmatpush1.bf16.msra.mxu0 0
        %1155 = vmatprep.subr.bf16.mxu0 0
        %1156 = vmatpush1.bf16.msra.mxu0 0
        %1157 = vmatprep.subr.bf16.mxu0 0
        %1158 = vmatpush1.bf16.msra.mxu0 0
        %1159 = vmatprep.subr.bf16.mxu0 0
        %1160 = vmatpush1.bf16.msra.mxu0 0
        %1161 = vmatprep.subr.bf16.mxu0 0
        %1162 = vmatpush1.bf16.msra.mxu0 0
        %1163 = vmatprep.subr.bf16.mxu0 0
        %1164 = vmatpush1.bf16.msra.mxu0 0
        %1165 = vmatprep.subr.bf16.mxu0 0
        %1166 = vmatpush1.bf16.msra.mxu0 0
        %1167 = vmatprep.mubr.bf16.mxu0 0
        %1168 = vmatmul.mubr.bf16.gmra.mrb[0].mxu0 %v1129
        %v1169 = vpop.f32.mrb[0].mxu0
        %v1170 = vadd.f32 0.0, %v1169
        %v1171 = vpop.f32.mrb[0].mxu0
        %v1172 = vpop.f32.mrb[0].mxu0
        %v1173 = vpop.f32.mrb[0].mxu0
        %1174 = vdwg.mxu0
        %v1175 = vadd.f32 %v1126, %v1170
        %1176 = vst.msk [vmem:[#allocation5] sm:$0xff] %vm1049, %v1175
        %1177 = vst.msk [vmem:[#allocation3] sm:$0xff] %vm1118, %v1100
        %v1178 = vld [vmem:[#allocation2] sm:$0xf]
        %v1180 = vunpack.c.l.b16 %v1178
        %v1181 = vpack.c.b16 %v1180, %v1180
        %1182 = vrot.lane.b32.xlu0 %v1181, 120
        %v1183 = vpop.permute.xlu0 %1182
        %1185 = vrot.lane.b32.xlu0 %v978, 120
        %v1186 = vpop.permute.xlu0 %1185
        %v1188 = vsel %vm1049, %v1183, 0
        %v1191 = vsel %vm1049, %v1186, 0
        %1193 = vmatprep.subr.bf16.mxu0 0
        %1194 = vmatpush1.bf16.xpose.msra.mxu0 %v1191
        %1195 = vmatprep.subr.bf16.mxu0 0
        %1196 = vmatpush1.bf16.xpose.msra.mxu0 0
        %1197 = vmatprep.subr.bf16.mxu0 0
        %1198 = vmatpush1.bf16.xpose.msra.mxu0 0
        %1199 = vmatprep.subr.bf16.mxu0 0
        %1200 = vmatpush1.bf16.xpose.msra.mxu0 0
        %1201 = vmatprep.subr.bf16.mxu0 0
        %1202 = vmatpush1.bf16.xpose.msra.mxu0 0
        %1203 = vmatprep.subr.bf16.mxu0 0
        %1204 = vmatpush1.bf16.xpose.msra.mxu0 0
        %1205 = vmatprep.subr.bf16.mxu0 0
        %1206 = vmatpush1.bf16.xpose.msra.mxu0 0
        %1207 = vmatprep.subr.bf16.mxu0 0
        %1208 = vmatpush1.bf16.xpose.msra.mxu0 0
        %1209 = vmatprep.subr.bf16.mxu0 0
        %1210 = vmatpush1.bf16.xpose.msra.mxu0 0
        %1211 = vmatprep.subr.bf16.mxu0 0
        %1212 = vmatpush1.bf16.xpose.msra.mxu0 0
        %1213 = vmatprep.subr.bf16.mxu0 0
        %1214 = vmatpush1.bf16.xpose.msra.mxu0 0
        %1215 = vmatprep.subr.bf16.mxu0 0
        %1216 = vmatpush1.bf16.xpose.msra.mxu0 0
        %1217 = vmatprep.subr.bf16.mxu0 0
        %1218 = vmatpush1.bf16.xpose.msra.mxu0 0
        %1219 = vmatprep.subr.bf16.mxu0 0
        %1220 = vmatpush1.bf16.xpose.msra.mxu0 0
        %1221 = vmatprep.subr.bf16.mxu0 0
        %1222 = vmatpush1.bf16.xpose.msra.mxu0 0
        %1223 = vmatprep.subr.bf16.mxu0 0
        %1224 = vmatpush1.bf16.xpose.msra.mxu0 0
        %1225 = vmatprep.mubr.bf16.mxu0 0
        %1226 = vmatmul.mubr.bf16.gmra.mrb[0].mxu0 %v1188
        %v1227 = vpop.f32.mrb[0].mxu0
        %v1228 = vadd.f32 %v1047, %v1227
        %v1229 = vpop.f32.mrb[0].mxu0
        %v1230 = vpop.f32.mrb[0].mxu0
        %v1231 = vpop.f32.mrb[0].mxu0
        %1232 = vdwg.mxu0
        %s1233 = scalar_lea.vmem [#allocation3], 8
        %v1234 = vld [vmem:[%s1233] sm:$0xff]
        %v1235 = vsel %vm1049, %v1228, -inf
        %1236 = vmax.xlane.f32.xlu0 %v1235
        %v1237 = vpop.xlane.xlu0 %1236
        %v1238 = vmax.f32 %v1234, %v1237
        %v1239 = vsub.f32 %v1234, %v1238
        %v1240 = vmul.f32 %v1239, 1.442695
        %v1241 = vpow.pop %v1240
        %1243 = vset.pattern.permute.xlu0 0
        %1244 = vperm.xlu0 %1243, %v1238
        %v1245 = vpop.permute.xlu0 %1244
        %v1247 = vsub.f32 %v1228, %v1245
        %v1248 = vmul.f32 %v1247, 1.442695
        %v1249 = vpow.pop %v1248
        %s1250 = scalar_lea.vmem [#allocation4], 8
        %v1251 = vld [vmem:[%s1250] sm:$0xff]
        %v1252 = vmul.f32 %v1241, %v1251
        %v1253 = vsel %vm1049, %v1249, 0.0
        %1254 = vadd.xlane.f32.xlu0 %v1253
        %v1255 = vpop.xlane.xlu0 %1254
        %v1256 = vadd.f32 %v1252, %v1255
        %1257 = vst.msk [vmem:[%s1250] sm:$0xff] %vm1118, %v1256
        %v1258 = vld [vmem:[#allocation5] sm:$0xff]
        %1260 = vset.pattern.permute.xlu0 0
        %1261 = vperm.xlu0 %1260, %v1241
        %v1262 = vpop.permute.xlu0 %1261
        %v1264 = vmul.f32 %v1262, %v1258
        %v1265 = vpack.c.bf16 %v1249, %v1249
        %1267 = vrot.lane.b32.xlu0 %v1045, 120
        %v1268 = vpop.permute.xlu0 %1267
        %v1270 = vsel %vm1049, %v1265, 0
        %v1273 = vsel %vm1131, %v1268, 0
        %1275 = vmatprep.subr.bf16.mxu0 0
        %1276 = vmatpush1.bf16.msra.mxu0 %v1273
        %1277 = vmatprep.subr.bf16.mxu0 0
        %1278 = vmatpush1.bf16.msra.mxu0 0
        %1279 = vmatprep.subr.bf16.mxu0 0
        %1280 = vmatpush1.bf16.msra.mxu0 0
        %1281 = vmatprep.subr.bf16.mxu0 0
        %1282 = vmatpush1.bf16.msra.mxu0 0
        %1283 = vmatprep.subr.bf16.mxu0 0
        %1284 = vmatpush1.bf16.msra.mxu0 0
        %1285 = vmatprep.subr.bf16.mxu0 0
        %1286 = vmatpush1.bf16.msra.mxu0 0
        %1287 = vmatprep.subr.bf16.mxu0 0
        %1288 = vmatpush1.bf16.msra.mxu0 0
        %1289 = vmatprep.subr.bf16.mxu0 0
        %1290 = vmatpush1.bf16.msra.mxu0 0
        %1291 = vmatprep.subr.bf16.mxu0 0
        %1292 = vmatpush1.bf16.msra.mxu0 0
        %1293 = vmatprep.subr.bf16.mxu0 0
        %1294 = vmatpush1.bf16.msra.mxu0 0
        %1295 = vmatprep.subr.bf16.mxu0 0
        %1296 = vmatpush1.bf16.msra.mxu0 0
        %1297 = vmatprep.subr.bf16.mxu0 0
        %1298 = vmatpush1.bf16.msra.mxu0 0
        %1299 = vmatprep.subr.bf16.mxu0 0
        %1300 = vmatpush1.bf16.msra.mxu0 0
        %1301 = vmatprep.subr.bf16.mxu0 0
        %1302 = vmatpush1.bf16.msra.mxu0 0
        %1303 = vmatprep.subr.bf16.mxu0 0
        %1304 = vmatpush1.bf16.msra.mxu0 0
        %1305 = vmatprep.subr.bf16.mxu0 0
        %1306 = vmatpush1.bf16.msra.mxu0 0
        %1307 = vmatprep.mubr.bf16.mxu0 0
        %1308 = vmatmul.mubr.bf16.gmra.mrb[0].mxu0 %v1270
        %v1309 = vpop.f32.mrb[0].mxu0
        %v1310 = vadd.f32 0.0, %v1309
        %v1311 = vpop.f32.mrb[0].mxu0
        %v1312 = vpop.f32.mrb[0].mxu0
        %v1313 = vpop.f32.mrb[0].mxu0
        %1314 = vdwg.mxu0
        %1316 = vrot.lane.b32.xlu0 %v1310, 8
        %v1317 = vpop.permute.xlu0 %1316
        %v1319 = vadd.f32 %v1264, %v1317
        %vm1320 = vcmask 130112
        %1321 = vst.msk [vmem:[#allocation5] sm:$0xff] %vm1320, %v1319
        %1322 = vst.msk [vmem:[%s1233] sm:$0xff] %vm1118, %v1238
        %v1323 = vld [vmem:[#allocation2] sm:$0xf]
        %v1325 = vunpack.c.l.b16 %v1323
        %v1326 = vpack.c.b16 %v1325, %v1325
        %1327 = vrot.lane.b32.xlu0 %v1326, 112
        %v1328 = vpop.permute.xlu0 %1327
        %1329 = vrot.lane.b32.xlu0 %v978, 112
        %v1330 = vpop.permute.xlu0 %1329
        %v1332 = vsel %vm1049, %v1328, 0
        %v1335 = vsel %vm1049, %v1330, 0
        %1337 = vmatprep.subr.bf16.mxu0 0
        %1338 = vmatpush1.bf16.xpose.msra.mxu0 %v1335
        %1339 = vmatprep.subr.bf16.mxu0 0
        %1340 = vmatpush1.bf16.xpose.msra.mxu0 0
        %1341 = vmatprep.subr.bf16.mxu0 0
        %1342 = vmatpush1.bf16.xpose.msra.mxu0 0
        %1343 = vmatprep.subr.bf16.mxu0 0
        %1344 = vmatpush1.bf16.xpose.msra.mxu0 0
        %1345 = vmatprep.subr.bf16.mxu0 0
        %1346 = vmatpush1.bf16.xpose.msra.mxu0 0
        %1347 = vmatprep.subr.bf16.mxu0 0
        %1348 = vmatpush1.bf16.xpose.msra.mxu0 0
        %1349 = vmatprep.subr.bf16.mxu0 0
        %1350 = vmatpush1.bf16.xpose.msra.mxu0 0
        %1351 = vmatprep.subr.bf16.mxu0 0
        %1352 = vmatpush1.bf16.xpose.msra.mxu0 0
        %1353 = vmatprep.subr.bf16.mxu0 0
        %1354 = vmatpush1.bf16.xpose.msra.mxu0 0
        %1355 = vmatprep.subr.bf16.mxu0 0
        %1356 = vmatpush1.bf16.xpose.msra.mxu0 0
        %1357 = vmatprep.subr.bf16.mxu0 0
        %1358 = vmatpush1.bf16.xpose.msra.mxu0 0
        %1359 = vmatprep.subr.bf16.mxu0 0
        %1360 = vmatpush1.bf16.xpose.msra.mxu0 0
        %1361 = vmatprep.subr.bf16.mxu0 0
        %1362 = vmatpush1.bf16.xpose.msra.mxu0 0
        %1363 = vmatprep.subr.bf16.mxu0 0
        %1364 = vmatpush1.bf16.xpose.msra.mxu0 0
        %1365 = vmatprep.subr.bf16.mxu0 0
        %1366 = vmatpush1.bf16.xpose.msra.mxu0 0
        %1367 = vmatprep.subr.bf16.mxu0 0
        %1368 = vmatpush1.bf16.xpose.msra.mxu0 0
        %1369 = vmatprep.mubr.bf16.mxu0 0
        %1370 = vmatmul.mubr.bf16.gmra.mrb[0].mxu0 %v1332
        %v1371 = vpop.f32.mrb[0].mxu0
        %v1372 = vadd.f32 %v1047, %v1371
        %v1373 = vpop.f32.mrb[0].mxu0
        %v1374 = vpop.f32.mrb[0].mxu0
        %v1375 = vpop.f32.mrb[0].mxu0
        %1376 = vdwg.mxu0
        %s1377 = scalar_lea.vmem [#allocation3], 16
        %v1378 = vld [vmem:[%s1377] sm:$0xff]
        %v1379 = vsel %vm1049, %v1372, -inf
        %1380 = vmax.xlane.f32.xlu0 %v1379
        %v1381 = vpop.xlane.xlu0 %1380
        %v1382 = vmax.f32 %v1378, %v1381
        %v1383 = vsub.f32 %v1378, %v1382
        %v1384 = vmul.f32 %v1383, 1.442695
        %v1385 = vpow.pop %v1384
        %1387 = vset.pattern.permute.xlu0 0
        %1388 = vperm.xlu0 %1387, %v1382
        %v1389 = vpop.permute.xlu0 %1388
        %v1391 = vsub.f32 %v1372, %v1389
        %v1392 = vmul.f32 %v1391, 1.442695
        %v1393 = vpow.pop %v1392
        %s1394 = scalar_lea.vmem [#allocation4], 16
        %v1395 = vld [vmem:[%s1394] sm:$0xff]
        %v1396 = vmul.f32 %v1385, %v1395
        %v1397 = vsel %vm1049, %v1393, 0.0
        %1398 = vadd.xlane.f32.xlu0 %v1397
        %v1399 = vpop.xlane.xlu0 %1398
        %v1400 = vadd.f32 %v1396, %v1399
        %1401 = vst.msk [vmem:[%s1394] sm:$0xff] %vm1118, %v1400
        %v1402 = vld [vmem:[#allocation5] sm:$0xff]
        %1404 = vset.pattern.permute.xlu0 0
        %1405 = vperm.xlu0 %1404, %v1385
        %v1406 = vpop.permute.xlu0 %1405
        %v1408 = vmul.f32 %v1406, %v1402
        %v1409 = vpack.c.bf16 %v1393, %v1393
        %1410 = vrot.lane.b32.xlu0 %v1045, 112
        %v1411 = vpop.permute.xlu0 %1410
        %v1413 = vsel %vm1049, %v1409, 0
        %v1416 = vsel %vm1131, %v1411, 0
        %1418 = vmatprep.subr.bf16.mxu0 0
        %1419 = vmatpush1.bf16.msra.mxu0 %v1416
        %1420 = vmatprep.subr.bf16.mxu0 0
        %1421 = vmatpush1.bf16.msra.mxu0 0
        %1422 = vmatprep.subr.bf16.mxu0 0
        %1423 = vmatpush1.bf16.msra.mxu0 0
        %1424 = vmatprep.subr.bf16.mxu0 0
        %1425 = vmatpush1.bf16.msra.mxu0 0
        %1426 = vmatprep.subr.bf16.mxu0 0
        %1427 = vmatpush1.bf16.msra.mxu0 0
        %1428 = vmatprep.subr.bf16.mxu0 0
        %1429 = vmatpush1.bf16.msra.mxu0 0
        %1430 = vmatprep.subr.bf16.mxu0 0
        %1431 = vmatpush1.bf16.msra.mxu0 0
        %1432 = vmatprep.subr.bf16.mxu0 0
        %1433 = vmatpush1.bf16.msra.mxu0 0
        %1434 = vmatprep.subr.bf16.mxu0 0
        %1435 = vmatpush1.bf16.msra.mxu0 0
        %1436 = vmatprep.subr.bf16.mxu0 0
        %1437 = vmatpush1.bf16.msra.mxu0 0
        %1438 = vmatprep.subr.bf16.mxu0 0
        %1439 = vmatpush1.bf16.msra.mxu0 0
        %1440 = vmatprep.subr.bf16.mxu0 0
        %1441 = vmatpush1.bf16.msra.mxu0 0
        %1442 = vmatprep.subr.bf16.mxu0 0
        %1443 = vmatpush1.bf16.msra.mxu0 0
        %1444 = vmatprep.subr.bf16.mxu0 0
        %1445 = vmatpush1.bf16.msra.mxu0 0
        %1446 = vmatprep.subr.bf16.mxu0 0
        %1447 = vmatpush1.bf16.msra.mxu0 0
        %1448 = vmatprep.subr.bf16.mxu0 0
        %1449 = vmatpush1.bf16.msra.mxu0 0
        %1450 = vmatprep.mubr.bf16.mxu0 0
        %1451 = vmatmul.mubr.bf16.gmra.mrb[0].mxu0 %v1413
        %v1452 = vpop.f32.mrb[0].mxu0
        %v1453 = vadd.f32 0.0, %v1452
        %v1454 = vpop.f32.mrb[0].mxu0
        %v1455 = vpop.f32.mrb[0].mxu0
        %v1456 = vpop.f32.mrb[0].mxu0
        %1457 = vdwg.mxu0
        %1459 = vrot.lane.b32.xlu0 %v1453, 16
        %v1460 = vpop.permute.xlu0 %1459
        %v1462 = vadd.f32 %v1408, %v1460
        %vm1463 = vcmask 195712
        %1464 = vst.msk [vmem:[#allocation5] sm:$0xff] %vm1463, %v1462
        %1465 = vst.msk [vmem:[%s1377] sm:$0xff] %vm1118, %v1382
        %v1466 = vld [vmem:[#allocation2] sm:$0xf]
        %v1468 = vunpack.c.l.b16 %v1466
        %v1469 = vpack.c.b16 %v1468, %v1468
        %1470 = vrot.lane.b32.xlu0 %v1469, 104
        %v1471 = vpop.permute.xlu0 %1470
        %1472 = vrot.lane.b32.xlu0 %v978, 104
        %v1473 = vpop.permute.xlu0 %1472
        %v1475 = vsel %vm1049, %v1471, 0
        %v1478 = vsel %vm1049, %v1473, 0
        %1480 = vmatprep.subr.bf16.mxu0 0
        %1481 = vmatpush1.bf16.xpose.msra.mxu0 %v1478
        %1482 = vmatprep.subr.bf16.mxu0 0
        %1483 = vmatpush1.bf16.xpose.msra.mxu0 0
        %1484 = vmatprep.subr.bf16.mxu0 0
        %1485 = vmatpush1.bf16.xpose.msra.mxu0 0
        %1486 = vmatprep.subr.bf16.mxu0 0
        %1487 = vmatpush1.bf16.xpose.msra.mxu0 0
        %1488 = vmatprep.subr.bf16.mxu0 0
        %1489 = vmatpush1.bf16.xpose.msra.mxu0 0
        %1490 = vmatprep.subr.bf16.mxu0 0
        %1491 = vmatpush1.bf16.xpose.msra.mxu0 0
        %1492 = vmatprep.subr.bf16.mxu0 0
        %1493 = vmatpush1.bf16.xpose.msra.mxu0 0
        %1494 = vmatprep.subr.bf16.mxu0 0
        %1495 = vmatpush1.bf16.xpose.msra.mxu0 0
        %1496 = vmatprep.subr.bf16.mxu0 0
        %1497 = vmatpush1.bf16.xpose.msra.mxu0 0
        %1498 = vmatprep.subr.bf16.mxu0 0
        %1499 = vmatpush1.bf16.xpose.msra.mxu0 0
        %1500 = vmatprep.subr.bf16.mxu0 0
        %1501 = vmatpush1.bf16.xpose.msra.mxu0 0
        %1502 = vmatprep.subr.bf16.mxu0 0
        %1503 = vmatpush1.bf16.xpose.msra.mxu0 0
        %1504 = vmatprep.subr.bf16.mxu0 0
        %1505 = vmatpush1.bf16.xpose.msra.mxu0 0
        %1506 = vmatprep.subr.bf16.mxu0 0
        %1507 = vmatpush1.bf16.xpose.msra.mxu0 0
        %1508 = vmatprep.subr.bf16.mxu0 0
        %1509 = vmatpush1.bf16.xpose.msra.mxu0 0
        %1510 = vmatprep.subr.bf16.mxu0 0
        %1511 = vmatpush1.bf16.xpose.msra.mxu0 0
        %1512 = vmatprep.mubr.bf16.mxu0 0
        %1513 = vmatmul.mubr.bf16.gmra.mrb[0].mxu0 %v1475
        %v1514 = vpop.f32.mrb[0].mxu0
        %v1515 = vadd.f32 %v1047, %v1514
        %v1516 = vpop.f32.mrb[0].mxu0
        %v1517 = vpop.f32.mrb[0].mxu0
        %v1518 = vpop.f32.mrb[0].mxu0
        %1519 = vdwg.mxu0
        %s1520 = scalar_lea.vmem [#allocation3], 24
        %v1521 = vld [vmem:[%s1520] sm:$0xff]
        %v1522 = vsel %vm1049, %v1515, -inf
        %1523 = vmax.xlane.f32.xlu0 %v1522
        %v1524 = vpop.xlane.xlu0 %1523
        %v1525 = vmax.f32 %v1521, %v1524
        %v1526 = vsub.f32 %v1521, %v1525
        %v1527 = vmul.f32 %v1526, 1.442695
        %v1528 = vpow.pop %v1527
        %1530 = vset.pattern.permute.xlu0 0
        %1531 = vperm.xlu0 %1530, %v1525
        %v1532 = vpop.permute.xlu0 %1531
        %v1534 = vsub.f32 %v1515, %v1532
        %v1535 = vmul.f32 %v1534, 1.442695
        %v1536 = vpow.pop %v1535
        %s1537 = scalar_lea.vmem [#allocation4], 24
        %v1538 = vld [vmem:[%s1537] sm:$0xff]
        %v1539 = vmul.f32 %v1528, %v1538
        %v1540 = vsel %vm1049, %v1536, 0.0
        %1541 = vadd.xlane.f32.xlu0 %v1540
        %v1542 = vpop.xlane.xlu0 %1541
        %v1543 = vadd.f32 %v1539, %v1542
        %1544 = vst.msk [vmem:[%s1537] sm:$0xff] %vm1118, %v1543
        %v1545 = vld [vmem:[#allocation5] sm:$0xff]
        %1547 = vset.pattern.permute.xlu0 0
        %1548 = vperm.xlu0 %1547, %v1528
        %v1549 = vpop.permute.xlu0 %1548
        %v1551 = vmul.f32 %v1549, %v1545
        %v1552 = vpack.c.bf16 %v1536, %v1536
        %1553 = vrot.lane.b32.xlu0 %v1045, 104
        %v1554 = vpop.permute.xlu0 %1553
        %v1556 = vsel %vm1049, %v1552, 0
        %v1559 = vsel %vm1131, %v1554, 0
        %1561 = vmatprep.subr.bf16.mxu0 0
        %1562 = vmatpush1.bf16.msra.mxu0 %v1559
        %1563 = vmatprep.subr.bf16.mxu0 0
        %1564 = vmatpush1.bf16.msra.mxu0 0
        %1565 = vmatprep.subr.bf16.mxu0 0
        %1566 = vmatpush1.bf16.msra.mxu0 0
        %1567 = vmatprep.subr.bf16.mxu0 0
        %1568 = vmatpush1.bf16.msra.mxu0 0
        %1569 = vmatprep.subr.bf16.mxu0 0
        %1570 = vmatpush1.bf16.msra.mxu0 0
        %1571 = vmatprep.subr.bf16.mxu0 0
        %1572 = vmatpush1.bf16.msra.mxu0 0
        %1573 = vmatprep.subr.bf16.mxu0 0
        %1574 = vmatpush1.bf16.msra.mxu0 0
        %1575 = vmatprep.subr.bf16.mxu0 0
        %1576 = vmatpush1.bf16.msra.mxu0 0
        %1577 = vmatprep.subr.bf16.mxu0 0
        %1578 = vmatpush1.bf16.msra.mxu0 0
        %1579 = vmatprep.subr.bf16.mxu0 0
        %1580 = vmatpush1.bf16.msra.mxu0 0
        %1581 = vmatprep.subr.bf16.mxu0 0
        %1582 = vmatpush1.bf16.msra.mxu0 0
        %1583 = vmatprep.subr.bf16.mxu0 0
        %1584 = vmatpush1.bf16.msra.mxu0 0
        %1585 = vmatprep.subr.bf16.mxu0 0
        %1586 = vmatpush1.bf16.msra.mxu0 0
        %1587 = vmatprep.subr.bf16.mxu0 0
        %1588 = vmatpush1.bf16.msra.mxu0 0
        %1589 = vmatprep.subr.bf16.mxu0 0
        %1590 = vmatpush1.bf16.msra.mxu0 0
        %1591 = vmatprep.subr.bf16.mxu0 0
        %1592 = vmatpush1.bf16.msra.mxu0 0
        %1593 = vmatprep.mubr.bf16.mxu0 0
        %1594 = vmatmul.mubr.bf16.gmra.mrb[0].mxu0 %v1556
        %v1595 = vpop.f32.mrb[0].mxu0
        %v1596 = vadd.f32 0.0, %v1595
        %v1597 = vpop.f32.mrb[0].mxu0
        %v1598 = vpop.f32.mrb[0].mxu0
        %v1599 = vpop.f32.mrb[0].mxu0
        %1600 = vdwg.mxu0
        %1602 = vrot.lane.b32.xlu0 %v1596, 24
        %v1603 = vpop.permute.xlu0 %1602
        %v1605 = vadd.f32 %v1551, %v1603
        %vm1606 = vcmask 261312
        %1607 = vst.msk [vmem:[#allocation5] sm:$0xff] %vm1606, %v1605
        %1608 = vst.msk [vmem:[%s1520] sm:$0xff] %vm1118, %v1525
        // Predicated region
        $region129: #{tpu_custom_call.1} parent=99 // pred_check
          %p1609 = pneg %p820
        $region130: #{tpu_custom_call.1} parent=99 // pred_check_branch
          %1611 = sbr.rel (%p1609) target = $region132
        $region131: #{tpu_custom_call.1} parent=99 // pred_region
          %v1612 = vld [vmem:[#allocation5] sm:$0xff]
          %v1613 = vld [vmem:[#allocation4] sm:$0xff]
          %v1614 = vrcp.pop %v1613
          %1616 = vset.pattern.permute.xlu0 0
          %1617 = vperm.xlu0 %1616, %v1614
          %v1618 = vpop.permute.xlu0 %1617
          %v1620 = vmul.f32 %v1612, %v1618
          %1621 = vst.msk [vmem:[#allocation5] sm:$0xff] %vm1049, %v1620
          %v1622 = vld [vmem:[#allocation5] sm:$0xff]
          %v1623 = vld [vmem:[%s1250] sm:$0xff]
          %v1624 = vrcp.pop %v1623
          %1626 = vset.pattern.permute.xlu0 0
          %1627 = vperm.xlu0 %1626, %v1624
          %v1628 = vpop.permute.xlu0 %1627
          %v1630 = vmul.f32 %v1622, %v1628
          %1631 = vst.msk [vmem:[#allocation5] sm:$0xff] %vm1320, %v1630
          %v1632 = vld [vmem:[#allocation5] sm:$0xff]
          %v1633 = vld [vmem:[%s1394] sm:$0xff]
          %v1634 = vrcp.pop %v1633
          %1636 = vset.pattern.permute.xlu0 0
          %1637 = vperm.xlu0 %1636, %v1634
          %v1638 = vpop.permute.xlu0 %1637
          %v1640 = vmul.f32 %v1632, %v1638
          %1641 = vst.msk [vmem:[#allocation5] sm:$0xff] %vm1463, %v1640
          %v1642 = vld [vmem:[#allocation5] sm:$0xff]
          %v1643 = vld [vmem:[%s1537] sm:$0xff]
          %v1644 = vrcp.pop %v1643
          %1646 = vset.pattern.permute.xlu0 0
          %1647 = vperm.xlu0 %1646, %v1644
          %v1648 = vpop.permute.xlu0 %1647
          %v1650 = vmul.f32 %v1642, %v1648
          %1651 = vst.msk [vmem:[#allocation5] sm:$0xff] %vm1606, %v1650
          %v1652 = vld [vmem:[#allocation5] sm:$0xff]
          %v1653 = vpack.c.bf16 %v1652, %v1652
          %v1654 = vld [vmem:[%s10] sm:$0xf]
          %v1655 = vld [vmem:[%s10 + $0x4] sm:$0xf]
          %v1656 = vld [vmem:[%s10 + $0x8] sm:$0xf]
          %v1657 = vld [vmem:[%s10 + $0xc] sm:$0xf]
          %v1658 = vld [vmem:[#allocation12] sm:$0x1]
          %v1660 = vlaneseq
          %v1661 = vshrl.u32 %v1660, 7
          %v1662 = vsub.s32 0, %v1661
          %v1663 = vrot.slane %v1658, %v1662
          %v1669 = vunpack.c.l.b16 %v1654
          %v1670 = vunpack.c.l.b16 %v1655
          %v1671 = vunpack.c.l.b16 %v1656
          %v1672 = vunpack.c.l.b16 %v1657
          %v1673 = vpack.c.b16 %v1670, %v1669
          %v1674 = vpack.c.b16 %v1672, %v1671
          %v1678 = vsel %vm934, %v1653, 0
          %1680 = vmatprep.subr.bf16.mxu0 0
          %1681 = vmatpush1.bf16.msra.mxu0 %v1673
          %1682 = vmatprep.subr.bf16.mxu0 0
          %1683 = vmatpush1.bf16.msra.mxu0 %v1674
          %1684 = vmatprep.subr.bf16.mxu0 0
          %1685 = vmatpush1.bf16.msra.mxu0 0
          %1686 = vmatprep.subr.bf16.mxu0 0
          %1687 = vmatpush1.bf16.msra.mxu0 0
          %1688 = vmatprep.subr.bf16.mxu0 0
          %1689 = vmatpush1.bf16.msra.mxu0 0
          %1690 = vmatprep.subr.bf16.mxu0 0
          %1691 = vmatpush1.bf16.msra.mxu0 0
          %1692 = vmatprep.subr.bf16.mxu0 0
          %1693 = vmatpush1.bf16.msra.mxu0 0
          %1694 = vmatprep.subr.bf16.mxu0 0
          %1695 = vmatpush1.bf16.msra.mxu0 0
          %1696 = vmatprep.subr.bf16.mxu0 0
          %1697 = vmatpush1.bf16.msra.mxu0 0
          %1698 = vmatprep.subr.bf16.mxu0 0
          %1699 = vmatpush1.bf16.msra.mxu0 0
          %1700 = vmatprep.subr.bf16.mxu0 0
          %1701 = vmatpush1.bf16.msra.mxu0 0
          %1702 = vmatprep.subr.bf16.mxu0 0
          %1703 = vmatpush1.bf16.msra.mxu0 0
          %1704 = vmatprep.subr.bf16.mxu0 0
          %1705 = vmatpush1.bf16.msra.mxu0 0
          %1706 = vmatprep.subr.bf16.mxu0 0
          %1707 = vmatpush1.bf16.msra.mxu0 0
          %1708 = vmatprep.subr.bf16.mxu0 0
          %1709 = vmatpush1.bf16.msra.mxu0 0
          %1710 = vmatprep.subr.bf16.mxu0 0
          %1711 = vmatpush1.bf16.msra.mxu0 0
          %1712 = vmatprep.mubr.bf16.mxu0 0
          %1713 = vmatmul.mubr.bf16.gmra.mrb[0].mxu0 %v1678
          %v1714 = vpop.f32.mrb[0].mxu0
          %v1715 = vadd.f32 %v1663, %v1714
          %v1716 = vpop.f32.mrb[0].mxu0
          %v1717 = vpop.f32.mrb[0].mxu0
          %v1718 = vpop.f32.mrb[0].mxu0
          %1719 = vdwg.mxu0
          %v1720 = vld [vmem:[%s804] sm:$0xff]
          %v1721 = vadd.f32 %v1715, %v1720
          %v1722 = vld [vmem:[#allocation14] sm:$0x1]
          %v1723 = vld [vmem:[#allocation15] sm:$0x1]
          %v1724 = vsel %vm934, %v1721, 0.0
          %1725 = vadd.xlane.f32.xlu0 %v1724
          %v1726 = vpop.xlane.xlu0 %1725
          %v1727 = vrcp.pop 32.0
          %v1728 = vmul.f32 %v1726, %v1727
          %v1729 = vsub.f32 %v1721, %v1728
          %v1730 = vmul.f32 %v1729, %v1729
          %v1731 = vsel %vm934, %v1730, 0.0
          %1732 = vadd.xlane.f32.xlu0 %v1731
          %v1733 = vpop.xlane.xlu0 %1732
          %v1734 = vmul.f32 %v1733, %v1727
          %v1735 = vadd.f32 %v1734, 1e-05
          %v1736 = vrsqrt.pop %v1735
          %v1737 = vmul.f32 %v1729, %v1736
          %v1739 = vlaneseq
          %v1740 = vshrl.u32 %v1739, 7
          %v1741 = vsub.s32 0, %v1740
          %v1742 = vrot.slane %v1722, %v1741
          %v1744 = vmul.f32 %v1737, %v1742
          %v1746 = vlaneseq
          %v1747 = vshrl.u32 %v1746, 7
          %v1748 = vsub.s32 0, %v1747
          %v1749 = vrot.slane %v1723, %v1748
          %v1751 = vadd.f32 %v1744, %v1749
          %v1752 = vpack.c.bf16 %v1751, %v1751
          %v1753 = vld [vmem:[%s14] sm:$0xf]
          %v1754 = vld [vmem:[%s14 + $0x4] sm:$0xf]
          %v1755 = vld [vmem:[%s14 + $0x8] sm:$0xf]
          %v1756 = vld [vmem:[%s14 + $0xc] sm:$0xf]
          %v1757 = vld [vmem:[%s15] sm:$0x1]
          %v1759 = vlaneseq
          %v1760 = vshrl.u32 %v1759, 7
          %v1761 = vsub.s32 0, %v1760
          %v1762 = vrot.slane %v1757, %v1761
          %v1768 = vunpack.c.l.b16 %v1753
          %v1769 = vunpack.c.l.b16 %v1754
          %v1770 = vunpack.c.l.b16 %v1755
          %v1771 = vunpack.c.l.b16 %v1756
          %v1772 = vpack.c.b16 %v1769, %v1768
          %v1773 = vpack.c.b16 %v1771, %v1770
          %v1777 = vsel %vm934, %v1752, 0
          %1779 = vmatprep.subr.bf16.mxu0 0
          %1780 = vmatpush1.bf16.msra.mxu0 %v1772
          %1781 = vmatprep.subr.bf16.mxu0 0
          %1782 = vmatpush1.bf16.msra.mxu0 %v1773
          %1783 = vmatprep.subr.bf16.mxu0 0
          %1784 = vmatpush1.bf16.msra.mxu0 0
          %1785 = vmatprep.subr.bf16.mxu0 0
          %1786 = vmatpush1.bf16.msra.mxu0 0
          %1787 = vmatprep.subr.bf16.mxu0 0
          %1788 = vmatpush1.bf16.msra.mxu0 0
          %1789 = vmatprep.subr.bf16.mxu0 0
          %1790 = vmatpush1.bf16.msra.mxu0 0
          %1791 = vmatprep.subr.bf16.mxu0 0
          %1792 = vmatpush1.bf16.msra.mxu0 0
          %1793 = vmatprep.subr.bf16.mxu0 0
          %1794 = vmatpush1.bf16.msra.mxu0 0
          %1795 = vmatprep.subr.bf16.mxu0 0
          %1796 = vmatpush1.bf16.msra.mxu0 0
          %1797 = vmatprep.subr.bf16.mxu0 0
          %1798 = vmatpush1.bf16.msra.mxu0 0
          %1799 = vmatprep.subr.bf16.mxu0 0
          %1800 = vmatpush1.bf16.msra.mxu0 0
          %1801 = vmatprep.subr.bf16.mxu0 0
          %1802 = vmatpush1.bf16.msra.mxu0 0
          %1803 = vmatprep.subr.bf16.mxu0 0
          %1804 = vmatpush1.bf16.msra.mxu0 0
          %1805 = vmatprep.subr.bf16.mxu0 0
          %1806 = vmatpush1.bf16.msra.mxu0 0
          %1807 = vmatprep.subr.bf16.mxu0 0
          %1808 = vmatpush1.bf16.msra.mxu0 0
          %1809 = vmatprep.subr.bf16.mxu0 0
          %1810 = vmatpush1.bf16.msra.mxu0 0
          %1811 = vmatprep.mubr.bf16.mxu0 0
          %1812 = vmatmul.mubr.bf16.gmra.mrb[0].mxu0 %v1777
          %v1813 = vpop.f32.mrb[0].mxu0
          %v1814 = vadd.f32 %v1762, %v1813
          %v1815 = vpop.f32.mrb[0].mxu0
          %v1816 = vpop.f32.mrb[0].mxu0
          %v1817 = vpop.f32.mrb[0].mxu0
          %1818 = vdwg.mxu0
          %v1819 = vmax.f32 %v1814, 0.0
          %v1820 = vpack.c.bf16 %v1819, %v1819
          %v1821 = vld [vmem:[%s16] sm:$0xf]
          %v1822 = vld [vmem:[%s16 + $0x4] sm:$0xf]
          %v1823 = vld [vmem:[%s16 + $0x8] sm:$0xf]
          %v1824 = vld [vmem:[%s16 + $0xc] sm:$0xf]
          %v1825 = vld [vmem:[%s16 + $0x10] sm:$0xf]
          %v1826 = vld [vmem:[%s16 + $0x14] sm:$0xf]
          %v1827 = vld [vmem:[%s16 + $0x18] sm:$0xf]
          %v1828 = vld [vmem:[%s16 + $0x1c] sm:$0xf]
          %v1829 = vld [vmem:[%s16 + $0x20] sm:$0xf]
          %v1830 = vld [vmem:[%s16 + $0x24] sm:$0xf]
          %v1831 = vld [vmem:[%s16 + $0x28] sm:$0xf]
          %v1832 = vld [vmem:[%s16 + $0x2c] sm:$0xf]
          %v1833 = vld [vmem:[%s16 + $0x30] sm:$0xf]
          %v1834 = vld [vmem:[%s16 + $0x34] sm:$0xf]
          %v1835 = vld [vmem:[%s16 + $0x38] sm:$0xf]
          %v1836 = vld [vmem:[%s16 + $0x3c] sm:$0xf]
          %v1837 = vld [vmem:[%s17] sm:$0x1]
          %v1839 = vlaneseq
          %v1840 = vshrl.u32 %v1839, 7
          %v1841 = vsub.s32 0, %v1840
          %v1842 = vrot.slane %v1837, %v1841
          %v1860 = vunpack.c.l.b16 %v1821
          %v1861 = vunpack.c.l.b16 %v1822
          %v1862 = vunpack.c.l.b16 %v1823
          %v1863 = vunpack.c.l.b16 %v1824
          %v1864 = vunpack.c.l.b16 %v1825
          %v1865 = vunpack.c.l.b16 %v1826
          %v1866 = vunpack.c.l.b16 %v1827
          %v1867 = vunpack.c.l.b16 %v1828
          %v1868 = vunpack.c.l.b16 %v1829
          %v1869 = vunpack.c.l.b16 %v1830
          %v1870 = vunpack.c.l.b16 %v1831
          %v1871 = vunpack.c.l.b16 %v1832
          %v1872 = vunpack.c.l.b16 %v1833
          %v1873 = vunpack.c.l.b16 %v1834
          %v1874 = vunpack.c.l.b16 %v1835
          %v1875 = vunpack.c.l.b16 %v1836
          %v1876 = vpack.c.b16 %v1861, %v1860
          %v1877 = vpack.c.b16 %v1863, %v1862
          %v1878 = vpack.c.b16 %v1865, %v1864
          %v1879 = vpack.c.b16 %v1867, %v1866
          %v1880 = vpack.c.b16 %v1869, %v1868
          %v1881 = vpack.c.b16 %v1871, %v1870
          %v1882 = vpack.c.b16 %v1873, %v1872
          %v1883 = vpack.c.b16 %v1875, %v1874
          %1892 = vmatprep.subr.bf16.mxu0 0
          %1893 = vmatpush1.bf16.msra.mxu0 %v1876
          %1894 = vmatprep.subr.bf16.mxu0 0
          %1895 = vmatpush1.bf16.msra.mxu0 %v1877
          %1896 = vmatprep.subr.bf16.mxu0 0
          %1897 = vmatpush1.bf16.msra.mxu0 %v1878
          %1898 = vmatprep.subr.bf16.mxu0 0
          %1899 = vmatpush1.bf16.msra.mxu0 %v1879
          %1900 = vmatprep.subr.bf16.mxu0 0
          %1901 = vmatpush1.bf16.msra.mxu0 %v1880
          %1902 = vmatprep.subr.bf16.mxu0 0
          %1903 = vmatpush1.bf16.msra.mxu0 %v1881
          %1904 = vmatprep.subr.bf16.mxu0 0
          %1905 = vmatpush1.bf16.msra.mxu0 %v1882
          %1906 = vmatprep.subr.bf16.mxu0 0
          %1907 = vmatpush1.bf16.msra.mxu0 %v1883
          %1908 = vmatprep.subr.bf16.mxu0 0
          %1909 = vmatpush1.bf16.msra.mxu0 0
          %1910 = vmatprep.subr.bf16.mxu0 0
          %1911 = vmatpush1.bf16.msra.mxu0 0
          %1912 = vmatprep.subr.bf16.mxu0 0
          %1913 = vmatpush1.bf16.msra.mxu0 0
          %1914 = vmatprep.subr.bf16.mxu0 0
          %1915 = vmatpush1.bf16.msra.mxu0 0
          %1916 = vmatprep.subr.bf16.mxu0 0
          %1917 = vmatpush1.bf16.msra.mxu0 0
          %1918 = vmatprep.subr.bf16.mxu0 0
          %1919 = vmatpush1.bf16.msra.mxu0 0
          %1920 = vmatprep.subr.bf16.mxu0 0
          %1921 = vmatpush1.bf16.msra.mxu0 0
          %1922 = vmatprep.subr.bf16.mxu0 0
          %1923 = vmatpush1.bf16.msra.mxu0 0
          %1924 = vmatprep.mubr.bf16.mxu0 0
          %1925 = vmatmul.mubr.bf16.gmra.mrb[0].mxu0 %v1820
          %v1926 = vpop.f32.mrb[0].mxu0
          %v1927 = vadd.f32 %v1842, %v1926
          %v1928 = vpop.f32.mrb[0].mxu0
          %v1929 = vpop.f32.mrb[0].mxu0
          %v1930 = vpop.f32.mrb[0].mxu0
          %1931 = vdwg.mxu0
          %v1932 = vadd.f32 %v1751, %v1927
          %v1933 = vld [vmem:[%s18] sm:$0x1]
          %v1934 = vld [vmem:[%s19] sm:$0x1]
          %v1935 = vsel %vm934, %v1932, 0.0
          %1936 = vadd.xlane.f32.xlu0 %v1935
          %v1937 = vpop.xlane.xlu0 %1936
          %v1938 = vmul.f32 %v1937, %v1727
          %v1939 = vsub.f32 %v1932, %v1938
          %v1940 = vmul.f32 %v1939, %v1939
          %v1941 = vsel %vm934, %v1940, 0.0
          %1942 = vadd.xlane.f32.xlu0 %v1941
          %v1943 = vpop.xlane.xlu0 %1942
          %v1944 = vmul.f32 %v1943, %v1727
          %v1945 = vadd.f32 %v1944, 1e-05
          %v1946 = vrsqrt.pop %v1945
          %v1947 = vmul.f32 %v1939, %v1946
          %v1949 = vlaneseq
          %v1950 = vshrl.u32 %v1949, 7
          %v1951 = vsub.s32 0, %v1950
          %v1952 = vrot.slane %v1933, %v1951
          %v1954 = vmul.f32 %v1947, %v1952
          %v1956 = vlaneseq
          %v1957 = vshrl.u32 %v1956, 7
          %v1958 = vsub.s32 0, %v1957
          %v1959 = vrot.slane %v1934, %v1958
          %v1961 = vadd.f32 %v1954, %v1959
          %1962 = vst.msk [vmem:[%s797] sm:$0xff] %vm934, %v1961
        $region132: #{tpu_custom_call.1} parent=99 // pred_fallthru
          _
        %s1963 = sand.u32 %s519, 1
        %s1964 = scalar_lea.sflag [#allocation8], %s1963
        %s1965 = sand.u32 %s519, 1
        %s1966 = smul.addr %s1965, 8
        %s1967 = scalar_lea.vmem [#allocation17], %s1966
        // Predicated region
        $region133: #{tpu_custom_call.1} parent=99 // pred_check
          %p1968 = pneg %p529
        $region134: #{tpu_custom_call.1} parent=99 // pred_check_branch
          %1970 = sbr.rel (%p1968) target = $region136
        $region135: #{tpu_custom_call.1} parent=99 // pred_region
          %s1972 = ssub.s32 128, 128
          %1973 = vsyncadd %s1964, %s1972
          %s1974 = sadd.s32 %s46, %s45
          %s1975 = smul.addr %s1974, 128
          %s1976 = scalar_lea.hbm %s20, %s1975
          %s1978 = sshll.u32 %s1967, 4
          %s1979 = int_to_ptr.vmem [resolvable:$true] %s1978
          %1981 = dma.vmem_to_hbm [thread:$0]  %s1979, 128, %s1976, %s1964
        $region136: #{tpu_custom_call.1} parent=99 // pred_fallthru
          _
      $region100: #{tpu_custom_call.1} parent=5 // pred_fallthru
        _
      %p1982 = scmp.le.s32.totalorder 2, %s35
      // Predicated region
      $region137: #{tpu_custom_call.1} parent=5 // pred_check
        %p1983 = pneg %p1982
      $region138: #{tpu_custom_call.1} parent=5 // pred_check_branch
        %1985 = sbr.rel (%p1983) target = $region140
      $region139: #{tpu_custom_call.1} parent=5 // pred_region
        %s1986 = ssub.s32 %s35, 2
        // Predicated region
        $region141: #{tpu_custom_call.1} parent=139 // pred_check
          %p1987 = pneg %p535
        $region142: #{tpu_custom_call.1} parent=139 // pred_check_branch
          %1989 = sbr.rel (%p1987) target = $region144
        $region143: #{tpu_custom_call.1} parent=139 // pred_region
          %s1990 = sand.u32 %s520, 1
          %s1991 = scalar_lea.sflag [#allocation8], %s1990
          %s1992 = sand.u32 %s520, 1
          %s1993 = smul.addr %s1992, 8
          %s1994 = scalar_lea.vmem [#allocation17], %s1993
          %1995 = dma.done %s1991, 128
        $region144: #{tpu_custom_call.1} parent=139 // pred_fallthru
          _
      $region140: #{tpu_custom_call.1} parent=5 // pred_fallthru
        _
    $region6: #{tpu_custom_call.1} parent=1 // loop_footer
      %s39 = sadd.s32 1, %s35
    $region7: #{tpu_custom_call.1} parent=1 // loop_footer_branch
      %34 = sbr.rel target = $region3
    $region8: #{tpu_custom_call.1} parent=1 // loop_exit
      _
    %1996 = vsyncpa [#allocation7], 1
    %s1997 = scalar_lea.sflag [#allocation7], 1
    %1998 = vsyncpa %s1997, 1
    %1999 = vsyncpa [#allocation10], 1
    %2000 = vsyncpa [#allocation13], 1
    %2001 = vsyncpa [#allocation16], 1
    %2002 = vsyncpa [#allocation8], 1
    %s2003 = scalar_lea.sflag [#allocation8], 1
    %2004 = vsyncpa %s2003, 1

</llo_original>
